<compile_context>
chip_gen: v5e
topology: v5e:2x2
jax: 0.10.0
libtpu: 0.0.40
codegen_flags: <defaults>
</compile_context>

<pallas_src>
import math

import jax
import jax.numpy as jnp
from jax.experimental import pallas as pl
from jax.experimental.pallas import tpu as pltpu

EPS = 1e-5


def _round_up(x, m):
    return (x + m - 1) // m * m


def _resblock_chain_kernel(x_ref, w1_ref, w2_ref, out_ref, xp_ref):
    """One ResBlock per grid step; the activation stays resident in out_ref.

    x_ref   : (H, W, C)     f32   original input (read only at block 0)
    w*_ref  : (3C, 3C)      bf16  packed conv weight: [dy*C + ci, dx*C + co]
    out_ref : (H, W, C)     f32   resident activation chain / final output
    xp_ref  : (H+2, Wp, C)  bf16  zero-padded activation scratch (right pad only)
    """
    H, W, C = out_ref.shape
    Hp, Wp, _ = xp_ref.shape
    M = H * Wp
    K3 = 3 * C
    blk = pl.program_id(1)

    @pl.when(blk == 0)
    def _init():
        # Border-only zeroing, once per image: top/bottom halo rows plus the
        # right zero-pad columns.  The interior writes below never touch them,
        # so they stay zero across both convs and across all chained blocks.
        xp_ref[0:1, :, :] = jnp.zeros((1, Wp, C), xp_ref.dtype)
        xp_ref[H + 1:Hp, :, :] = jnp.zeros((1, Wp, C), xp_ref.dtype)
        xp_ref[:, W:Wp, :] = jnp.zeros((Hp, Wp - W, C), xp_ref.dtype)
        # Bring the chain input into the resident output buffer.
        out_ref[...] = x_ref[...]

    def conv3x3_in(w_ref):
        # dy taps concatenated along K (pure lane-concat of bf16 slabs;
        # leading-axis H slices are free).
        xcat = jnp.concatenate(
            [xp_ref[0:H], xp_ref[1:H + 1], xp_ref[2:H + 2]], axis=-1)
        xcat2d = xcat.reshape(M, K3)        # layout-free: Wp % 16 == 0 (bf16)
        # One fat MXU matmul: N = 3C produces all three dx taps at once.
        p = jnp.dot(xcat2d, w_ref[...], preferred_element_type=jnp.float32)
        # dx shifts as XLU sublane rolls on the flattened (h, w) axis.  The
        # wrapped-in rows read zero pad columns / land in dropped columns
        # (requires Wp >= W + 1, asserted in the wrapper).
        acc = p[:, C:2 * C]                                             # dx = 1
        acc = acc + pltpu.roll(p[:, 0:C], shift=1, axis=0)              # dx = 0
        acc = acc + pltpu.roll(p[:, 2 * C:3 * C], shift=M - 1, axis=0)  # dx = 2
        # Drop the right pad columns: offset-0 slice (unmasked, aligned).
        y = acc.reshape(H, Wp, C)[:, 0:W, :]
        # InstanceNorm2d (affine=False): two-pass centered stats in f32.
        # (Conv bias omitted on purpose: it cancels exactly in this norm.)
        inv_n = 1.0 / float(H * W)
        mean = jnp.sum(y, axis=(0, 1), keepdims=True) * inv_n
        yc = y - mean
        var = jnp.sum(yc * yc, axis=(0, 1), keepdims=True) * inv_n
        return yc * jax.lax.rsqrt(var + EPS)

    # Conv2dBlock(dim, dim, 3, 1, 1, norm='in', activation='relu', pad='zero')
    xp_ref[1:H + 1, 0:W, :] = out_ref[...].astype(xp_ref.dtype)
    h = jnp.maximum(conv3x3_in(w1_ref), 0.0)
    # Conv2dBlock(..., activation='none'); h never leaves VMEM.
    xp_ref[1:H + 1, 0:W, :] = h.astype(xp_ref.dtype)
    # Residual add: out_ref still holds this block's input at this point.
    out_ref[...] = (conv3x3_in(w2_ref) + out_ref[...]).astype(out_ref.dtype)


def _pack_conv_weight(w):
    """(3, 3, C_in, C_out) HWIO -> (3*C_in, 3*C_out) bf16, [dy*Ci+ci, dx*Co+co]."""
    kh, kw, cin, cout = w.shape
    return jnp.transpose(w, (0, 2, 1, 3)).reshape(kh * cin, kw * cout).astype(
        jnp.bfloat16)


def resblocks_forward(x, params):
    """x: (B, H, W, C) NHWC f32; params: list of (w1, b1, w2, b2) per ResBlock.

    The conv biases (b1, b2) are accepted for interface parity with the
    PyTorch module but dropped: a per-channel bias before a non-affine
    InstanceNorm cancels exactly (mean shifts by the bias, variance unchanged).
    """
    B, H, W, C = x.shape
    L = len(params)
    w1_all = jnp.stack([_pack_conv_weight(w1) for (w1, _, _, _) in params])
    w2_all = jnp.stack([_pack_conv_weight(w2) for (_, _, w2, _) in params])

    Hp = H + 2
    # Right-side-only zero padding; the flattened-roll wrap supplies the left
    # halo from the previous row's zero column.  The 16 granule keeps the bf16
    # (H, Wp, C) -> (H*Wp, C) flatten layout-free.
    Wp = _round_up(W + 1, 16)
    assert Wp >= W + 1, "roll wrap-around needs >= 1 zero column on the right"
    K3 = 3 * C

    grid_spec = pltpu.PrefetchScalarGridSpec(
        num_scalar_prefetch=0,
        grid=(B, L),                                  # block axis innermost
        in_specs=[
            pl.BlockSpec((None, H, W, C), lambda b, l: (b, 0, 0, 0)),  # x
            pl.BlockSpec((None, K3, K3), lambda b, l: (l, 0, 0)),      # w1[l]
            pl.BlockSpec((None, K3, K3), lambda b, l: (l, 0, 0)),      # w2[l]
        ],
        # Constant block index along l -> activation resident in VMEM across
        # the whole block chain; HBM writeback only once per image.
        out_specs=pl.BlockSpec((None, H, W, C), lambda b, l: (b, 0, 0, 0)),
        scratch_shapes=[pltpu.VMEM((Hp, Wp, C), jnp.bfloat16)],
    )
    return pl.pallas_call(
        _resblock_chain_kernel,
        out_shape=jax.ShapeDtypeStruct((B, H, W, C), jnp.float32),
        grid_spec=grid_spec,
        compiler_params=pltpu.CompilerParams(
            dimension_semantics=("parallel", "arbitrary"),
            # <= 48 MiB leaves compiler headroom on v7x (64 MiB physical VMEM);
            # trivially safe on v5e/v6e (128 MiB).
            vmem_limit_bytes=48 * 1024 * 1024,
        ),
    )(x, w1_all, w2_all)


# ---------------- pure-JAX reference (correctness check) ----------------
def _ref_instance_norm(y):
    mean = jnp.mean(y, axis=(1, 2), keepdims=True)
    var = jnp.mean(jnp.square(y - mean), axis=(1, 2), keepdims=True)
    return (y - mean) / jnp.sqrt(var + EPS)


def _ref_conv(x, w, b):
    # Conv operands cast to bf16 (f32 accumulation) to mirror the MXU feed.
    y = jax.lax.conv_general_dilated(
        x.astype(jnp.bfloat16), w.astype(jnp.bfloat16),
        window_strides=(1, 1), padding=((1, 1), (1, 1)),
        dimension_numbers=("NHWC", "HWIO", "NHWC"),
        preferred_element_type=jnp.float32)
    return y + b.reshape(1, 1, 1, -1)   # bias kept here: it cancels in the IN


def ref_forward(x, params):
    out = x
    for (w1, b1, w2, b2) in params:
        res = out
        y = jnp.maximum(_ref_instance_norm(_ref_conv(out, w1, b1)), 0.0)
        z = _ref_instance_norm(_ref_conv(y, w2, b2))
        out = z + res
    return out


if __name__ == "__main__":
    B, C, H, W = 2, 128, 16, 16    # C = 128 -> lane-dense vregs / unmasked stores
    num_blocks = 2

    key = jax.random.PRNGKey(0)
    key, xk = jax.random.split(key)
    x_nchw = jax.random.normal(xk, (B, C, H, W), jnp.float32)   # PyTorch NCHW input
    x = jnp.transpose(x_nchw, (0, 2, 3, 1))                     # -> NHWC for the kernel

    params = []
    fan_in_scale = 1.0 / math.sqrt(9 * C)
    for _ in range(num_blocks):
        key, k1, k2, k3, k4 = jax.random.split(key, 5)
        w1 = jax.random.normal(k1, (3, 3, C, C), jnp.float32) * fan_in_scale
        b1 = jax.random.normal(k2, (1, C), jnp.float32) * 0.1
        w2 = jax.random.normal(k3, (3, 3, C, C), jnp.float32) * fan_in_scale
        b2 = jax.random.normal(k4, (1, C), jnp.float32) * 0.1
        params.append((w1, b1, w2, b2))

    out = jax.block_until_ready(jax.jit(resblocks_forward)(x, params))
    ref = ref_forward(x, params)

    assert out.shape == (B, H, W, C)
    err = jnp.max(jnp.abs(out - ref))
    assert jnp.allclose(out, ref, atol=1e-2, rtol=1e-2), f"max abs err {err}"

    print("KERNEL_OK")
</pallas_src>

<mosaic_0001>
module attributes {stable_mosaic.version = 11 : i64} {
  func.func @_resblock_chain_kernel(%arg0: i32, %arg1: i32, %arg2: memref<1x16x16x128xf32, #tpu.memory_space<vmem>>, %arg3: memref<1x384x384xbf16, #tpu.memory_space<vmem>>, %arg4: memref<1x384x384xbf16, #tpu.memory_space<vmem>>, %arg5: memref<1x16x16x128xf32, #tpu.memory_space<vmem>>, %arg6: memref<18x32x128xbf16, #tpu.memory_space<vmem>>) attributes {dimension_semantics = [#tpu.dimension_semantics<parallel>, #tpu.dimension_semantics<arbitrary>], iteration_bounds = array<i64: 2, 2>, scalar_prefetch = 0 : i64, scratch_operands = 1 : i64, tpu.core_type = #tpu.core_type<tc>, window_params = [{transform_indices = @transform_0, window_bounds = array<i64: 1, 16, 16, 128>}, {transform_indices = @transform_1, window_bounds = array<i64: 1, 384, 384>}, {transform_indices = @transform_2, window_bounds = array<i64: 1, 384, 384>}, {transform_indices = @transform_3, window_bounds = array<i64: 1, 16, 16, 128>}]} {
    %c0_i32 = arith.constant 0 : i32
    %0 = arith.cmpi eq, %arg1, %c0_i32 : i32
    %1 = arith.extui %0 : i1 to i32
    %c0_i32_0 = arith.constant 0 : i32
    %2 = arith.cmpi ne, %1, %c0_i32_0 : i32
    scf.if %2 {
      %cst_54 = arith.constant 0.000000e+00 : bf16
      %83 = vector.broadcast %cst_54 : bf16 to vector<1x32x128xbf16>
      %c0_55 = arith.constant 0 : index
      %c0_56 = arith.constant 0 : index
      %c0_57 = arith.constant 0 : index
      %84 = vector.load %arg6[%c0_55, %c0_56, %c0_57] : memref<18x32x128xbf16, #tpu.memory_space<vmem>>, vector<1x32x128xbf16>
      tpu.vector_store %arg6[%c0_55, %c0_56, %c0_57], %83 {strides = array<i32>} : memref<18x32x128xbf16, #tpu.memory_space<vmem>>, vector<1x32x128xbf16>,
      %cst_58 = arith.constant 0.000000e+00 : bf16
      %85 = vector.broadcast %cst_58 : bf16 to vector<1x32x128xbf16>
      %c17 = arith.constant 17 : index
      %c0_59 = arith.constant 0 : index
      %c0_60 = arith.constant 0 : index
      %86 = vector.load %arg6[%c17, %c0_59, %c0_60] : memref<18x32x128xbf16, #tpu.memory_space<vmem>>, vector<1x32x128xbf16>
      tpu.vector_store %arg6[%c17, %c0_59, %c0_60], %85 {strides = array<i32>} : memref<18x32x128xbf16, #tpu.memory_space<vmem>>, vector<1x32x128xbf16>,
      %cst_61 = arith.constant 0.000000e+00 : bf16
      %87 = vector.broadcast %cst_61 : bf16 to vector<18x16x128xbf16>
      %c0_62 = arith.constant 0 : index
      %c16 = arith.constant 16 : index
      %c0_63 = arith.constant 0 : index
      %88 = vector.load %arg6[%c0_62, %c16, %c0_63] : memref<18x32x128xbf16, #tpu.memory_space<vmem>>, vector<18x16x128xbf16>
      tpu.vector_store %arg6[%c0_62, %c16, %c0_63], %87 {strides = array<i32>} : memref<18x32x128xbf16, #tpu.memory_space<vmem>>, vector<18x16x128xbf16>,
      %c0_64 = arith.constant 0 : index
      %c0_65 = arith.constant 0 : index
      %c0_66 = arith.constant 0 : index
      %c0_67 = arith.constant 0 : index
      %89 = vector.load %arg2[%c0_64, %c0_65, %c0_66, %c0_67] : memref<1x16x16x128xf32, #tpu.memory_space<vmem>>, vector<1x16x16x128xf32>
      %90 = vector.shape_cast %89 : vector<1x16x16x128xf32> to vector<16x16x128xf32>
      %c0_68 = arith.constant 0 : index
      %c0_69 = arith.constant 0 : index
      %c0_70 = arith.constant 0 : index
      %c0_71 = arith.constant 0 : index
      %91 = vector.load %arg5[%c0_68, %c0_69, %c0_70, %c0_71] : memref<1x16x16x128xf32, #tpu.memory_space<vmem>>, vector<1x16x16x128xf32>
      %92 = vector.shape_cast %91 : vector<1x16x16x128xf32> to vector<16x16x128xf32>
      %93 = vector.shape_cast %90 : vector<16x16x128xf32> to vector<1x16x16x128xf32>
      tpu.vector_store %arg5[%c0_68, %c0_69, %c0_70, %c0_71], %93 {strides = array<i32>} : memref<1x16x16x128xf32, #tpu.memory_space<vmem>>, vector<1x16x16x128xf32>,
    } else {
    }
    %c0 = arith.constant 0 : index
    %c0_1 = arith.constant 0 : index
    %c0_2 = arith.constant 0 : index
    %c0_3 = arith.constant 0 : index
    %3 = vector.load %arg5[%c0, %c0_1, %c0_2, %c0_3] : memref<1x16x16x128xf32, #tpu.memory_space<vmem>>, vector<1x16x16x128xf32>
    %4 = vector.shape_cast %3 : vector<1x16x16x128xf32> to vector<16x16x128xf32>
    %5 = arith.truncf %4 : vector<16x16x128xf32> to vector<16x16x128xbf16>
    %c1 = arith.constant 1 : index
    %c0_4 = arith.constant 0 : index
    %c0_5 = arith.constant 0 : index
    %6 = vector.load %arg6[%c1, %c0_4, %c0_5] : memref<18x32x128xbf16, #tpu.memory_space<vmem>>, vector<16x16x128xbf16>
    tpu.vector_store %arg6[%c1, %c0_4, %c0_5], %5 {strides = array<i32>} : memref<18x32x128xbf16, #tpu.memory_space<vmem>>, vector<16x16x128xbf16>,
    %c0_6 = arith.constant 0 : index
    %c0_7 = arith.constant 0 : index
    %c0_8 = arith.constant 0 : index
    %7 = vector.load %arg6[%c0_6, %c0_7, %c0_8] : memref<18x32x128xbf16, #tpu.memory_space<vmem>>, vector<16x32x128xbf16>
    %c1_9 = arith.constant 1 : index
    %c0_10 = arith.constant 0 : index
    %c0_11 = arith.constant 0 : index
    %8 = vector.load %arg6[%c1_9, %c0_10, %c0_11] : memref<18x32x128xbf16, #tpu.memory_space<vmem>>, vector<16x32x128xbf16>
    %c2 = arith.constant 2 : index
    %c0_12 = arith.constant 0 : index
    %c0_13 = arith.constant 0 : index
    %9 = vector.load %arg6[%c2, %c0_12, %c0_13] : memref<18x32x128xbf16, #tpu.memory_space<vmem>>, vector<16x32x128xbf16>
    %10 = tpu.concatenate %7, %8, %9 in 2 : vector<16x32x128xbf16>, vector<16x32x128xbf16>, vector<16x32x128xbf16> -> vector<16x32x384xbf16>
    %11 = vector.shape_cast %10 : vector<16x32x384xbf16> to vector<512x384xbf16>
    %c0_14 = arith.constant 0 : index
    %c0_15 = arith.constant 0 : index
    %c0_16 = arith.constant 0 : index
    %12 = vector.load %arg3[%c0_14, %c0_15, %c0_16] : memref<1x384x384xbf16, #tpu.memory_space<vmem>>, vector<1x384x384xbf16>
    %13 = vector.shape_cast %12 : vector<1x384x384xbf16> to vector<384x384xbf16>
    %cst = arith.constant dense<0.000000e+00> : vector<512x384xf32>
    %14 = tpu.matmul %11, %13, %cst {dimension_numbers = #tpu.dot_dimension_numbers<[1], [0], [0], [1], [0, 0, 1, 1], [], []>} : vector<512x384xbf16>, vector<384x384xbf16>, vector<512x384xf32> -> vector<512x384xf32>
    %15 = vector.extract_strided_slice %14 {offsets = [0, 128], sizes = [512, 128], strides = [1, 1]} : vector<512x384xf32> to vector<512x128xf32>
    %16 = vector.extract_strided_slice %14 {offsets = [0, 0], sizes = [512, 128], strides = [1, 1]} : vector<512x384xf32> to vector<512x128xf32>
    %c1_i32 = arith.constant 1 : i32
    %17 = tpu.dynamic_rotate %16 by %c1_i32 dim 0 : vector<512x128xf32>, i32 -> vector<512x128xf32>
    %18 = arith.addf %15, %17 : vector<512x128xf32>
    %19 = vector.extract_strided_slice %14 {offsets = [0, 256], sizes = [512, 128], strides = [1, 1]} : vector<512x384xf32> to vector<512x128xf32>
    %c511_i32 = arith.constant 511 : i32
    %20 = tpu.dynamic_rotate %19 by %c511_i32 dim 0 : vector<512x128xf32>, i32 -> vector<512x128xf32>
    %21 = arith.addf %18, %20 : vector<512x128xf32>
    %22 = vector.shape_cast %21 : vector<512x128xf32> to vector<16x32x128xf32>
    %23 = vector.extract_strided_slice %22 {offsets = [0, 0, 0], sizes = [16, 16, 128], strides = [1, 1, 1]} : vector<16x32x128xf32> to vector<16x16x128xf32>
    %cst_17 = arith.constant dense<0.000000e+00> : vector<128xf32>
    %24 = vector.multi_reduction <add>, %23, %cst_17 [0, 1] : vector<16x16x128xf32> to vector<128xf32>
    %25 = vector.shape_cast %24 : vector<128xf32> to vector<1x1x128xf32>
    %cst_18 = arith.constant 3.906250e-03 : f32
    %26 = vector.broadcast %cst_18 : f32 to vector<1x1x128xf32>
    %27 = arith.mulf %25, %26 : vector<1x1x128xf32>
    %28 = vector.broadcast %27 : vector<1x1x128xf32> to vector<16x16x128xf32>
    %29 = arith.subf %23, %28 : vector<16x16x128xf32>
    %30 = arith.mulf %29, %29 : vector<16x16x128xf32>
    %cst_19 = arith.constant dense<0.000000e+00> : vector<128xf32>
    %31 = vector.multi_reduction <add>, %30, %cst_19 [0, 1] : vector<16x16x128xf32> to vector<128xf32>
    %32 = vector.shape_cast %31 : vector<128xf32> to vector<1x1x128xf32>
    %cst_20 = arith.constant 3.906250e-03 : f32
    %33 = vector.broadcast %cst_20 : f32 to vector<1x1x128xf32>
    %34 = arith.mulf %32, %33 : vector<1x1x128xf32>
    %cst_21 = arith.constant 9.99999974E-6 : f32
    %35 = vector.broadcast %cst_21 : f32 to vector<1x1x128xf32>
    %36 = arith.addf %34, %35 : vector<1x1x128xf32>
    %37 = math.rsqrt %36 : vector<1x1x128xf32>
    %38 = vector.broadcast %37 : vector<1x1x128xf32> to vector<16x16x128xf32>
    %39 = arith.mulf %29, %38 : vector<16x16x128xf32>
    %cst_22 = arith.constant 0.000000e+00 : f32
    %40 = vector.broadcast %cst_22 : f32 to vector<16x16x128xf32>
    %41 = arith.maximumf %39, %40 : vector<16x16x128xf32>
    %42 = arith.truncf %41 : vector<16x16x128xf32> to vector<16x16x128xbf16>
    %c1_23 = arith.constant 1 : index
    %c0_24 = arith.constant 0 : index
    %c0_25 = arith.constant 0 : index
    %43 = vector.load %arg6[%c1_23, %c0_24, %c0_25] : memref<18x32x128xbf16, #tpu.memory_space<vmem>>, vector<16x16x128xbf16>
    tpu.vector_store %arg6[%c1_23, %c0_24, %c0_25], %42 {strides = array<i32>} : memref<18x32x128xbf16, #tpu.memory_space<vmem>>, vector<16x16x128xbf16>,
    %c0_26 = arith.constant 0 : index
    %c0_27 = arith.constant 0 : index
    %c0_28 = arith.constant 0 : index
    %44 = vector.load %arg6[%c0_26, %c0_27, %c0_28] : memref<18x32x128xbf16, #tpu.memory_space<vmem>>, vector<16x32x128xbf16>
    %c1_29 = arith.constant 1 : index
    %c0_30 = arith.constant 0 : index
    %c0_31 = arith.constant 0 : index
    %45 = vector.load %arg6[%c1_29, %c0_30, %c0_31] : memref<18x32x128xbf16, #tpu.memory_space<vmem>>, vector<16x32x128xbf16>
    %c2_32 = arith.constant 2 : index
    %c0_33 = arith.constant 0 : index
    %c0_34 = arith.constant 0 : index
    %46 = vector.load %arg6[%c2_32, %c0_33, %c0_34] : memref<18x32x128xbf16, #tpu.memory_space<vmem>>, vector<16x32x128xbf16>
    %47 = tpu.concatenate %44, %45, %46 in 2 : vector<16x32x128xbf16>, vector<16x32x128xbf16>, vector<16x32x128xbf16> -> vector<16x32x384xbf16>
    %48 = vector.shape_cast %47 : vector<16x32x384xbf16> to vector<512x384xbf16>
    %c0_35 = arith.constant 0 : index
    %c0_36 = arith.constant 0 : index
    %c0_37 = arith.constant 0 : index
    %49 = vector.load %arg4[%c0_35, %c0_36, %c0_37] : memref<1x384x384xbf16, #tpu.memory_space<vmem>>, vector<1x384x384xbf16>
    %50 = vector.shape_cast %49 : vector<1x384x384xbf16> to vector<384x384xbf16>
    %cst_38 = arith.constant dense<0.000000e+00> : vector<512x384xf32>
    %51 = tpu.matmul %48, %50, %cst_38 {dimension_numbers = #tpu.dot_dimension_numbers<[1], [0], [0], [1], [0, 0, 1, 1], [], []>} : vector<512x384xbf16>, vector<384x384xbf16>, vector<512x384xf32> -> vector<512x384xf32>
    %52 = vector.extract_strided_slice %51 {offsets = [0, 128], sizes = [512, 128], strides = [1, 1]} : vector<512x384xf32> to vector<512x128xf32>
    %53 = vector.extract_strided_slice %51 {offsets = [0, 0], sizes = [512, 128], strides = [1, 1]} : vector<512x384xf32> to vector<512x128xf32>
    %c1_i32_39 = arith.constant 1 : i32
    %54 = tpu.dynamic_rotate %53 by %c1_i32_39 dim 0 : vector<512x128xf32>, i32 -> vector<512x128xf32>
    %55 = arith.addf %52, %54 : vector<512x128xf32>
    %56 = vector.extract_strided_slice %51 {offsets = [0, 256], sizes = [512, 128], strides = [1, 1]} : vector<512x384xf32> to vector<512x128xf32>
    %c511_i32_40 = arith.constant 511 : i32
    %57 = tpu.dynamic_rotate %56 by %c511_i32_40 dim 0 : vector<512x128xf32>, i32 -> vector<512x128xf32>
    %58 = arith.addf %55, %57 : vector<512x128xf32>
    %59 = vector.shape_cast %58 : vector<512x128xf32> to vector<16x32x128xf32>
    %60 = vector.extract_strided_slice %59 {offsets = [0, 0, 0], sizes = [16, 16, 128], strides = [1, 1, 1]} : vector<16x32x128xf32> to vector<16x16x128xf32>
    %cst_41 = arith.constant dense<0.000000e+00> : vector<128xf32>
    %61 = vector.multi_reduction <add>, %60, %cst_41 [0, 1] : vector<16x16x128xf32> to vector<128xf32>
    %62 = vector.shape_cast %61 : vector<128xf32> to vector<1x1x128xf32>
    %cst_42 = arith.constant 3.906250e-03 : f32
    %63 = vector.broadcast %cst_42 : f32 to vector<1x1x128xf32>
    %64 = arith.mulf %62, %63 : vector<1x1x128xf32>
    %65 = vector.broadcast %64 : vector<1x1x128xf32> to vector<16x16x128xf32>
    %66 = arith.subf %60, %65 : vector<16x16x128xf32>
    %67 = arith.mulf %66, %66 : vector<16x16x128xf32>
    %cst_43 = arith.constant dense<0.000000e+00> : vector<128xf32>
    %68 = vector.multi_reduction <add>, %67, %cst_43 [0, 1] : vector<16x16x128xf32> to vector<128xf32>
    %69 = vector.shape_cast %68 : vector<128xf32> to vector<1x1x128xf32>
    %cst_44 = arith.constant 3.906250e-03 : f32
    %70 = vector.broadcast %cst_44 : f32 to vector<1x1x128xf32>
    %71 = arith.mulf %69, %70 : vector<1x1x128xf32>
    %cst_45 = arith.constant 9.99999974E-6 : f32
    %72 = vector.broadcast %cst_45 : f32 to vector<1x1x128xf32>
    %73 = arith.addf %71, %72 : vector<1x1x128xf32>
    %74 = math.rsqrt %73 : vector<1x1x128xf32>
    %75 = vector.broadcast %74 : vector<1x1x128xf32> to vector<16x16x128xf32>
    %76 = arith.mulf %66, %75 : vector<16x16x128xf32>
    %c0_46 = arith.constant 0 : index
    %c0_47 = arith.constant 0 : index
    %c0_48 = arith.constant 0 : index
    %c0_49 = arith.constant 0 : index
    %77 = vector.load %arg5[%c0_46, %c0_47, %c0_48, %c0_49] : memref<1x16x16x128xf32, #tpu.memory_space<vmem>>, vector<1x16x16x128xf32>
    %78 = vector.shape_cast %77 : vector<1x16x16x128xf32> to vector<16x16x128xf32>
    %79 = arith.addf %76, %78 : vector<16x16x128xf32>
    %c0_50 = arith.constant 0 : index
    %c0_51 = arith.constant 0 : index
    %c0_52 = arith.constant 0 : index
    %c0_53 = arith.constant 0 : index
    %80 = vector.load %arg5[%c0_50, %c0_51, %c0_52, %c0_53] : memref<1x16x16x128xf32, #tpu.memory_space<vmem>>, vector<1x16x16x128xf32>
    %81 = vector.shape_cast %80 : vector<1x16x16x128xf32> to vector<16x16x128xf32>
    %82 = vector.shape_cast %79 : vector<16x16x128xf32> to vector<1x16x16x128xf32>
    tpu.vector_store %arg5[%c0_50, %c0_51, %c0_52, %c0_53], %82 {strides = array<i32>} : memref<1x16x16x128xf32, #tpu.memory_space<vmem>>, vector<1x16x16x128xf32>,
    return
  }
  func.func @transform_0(%arg0: i32, %arg1: i32) -> (i32, i32, i32, i32) {
    %c0_i32 = arith.constant 0 : i32
    %c0_i32_0 = arith.constant 0 : i32
    %c0_i32_1 = arith.constant 0 : i32
    %c0_i32_2 = arith.constant 0 : i32
    return %arg0, %c0_i32, %c0_i32_0, %c0_i32_1 : i32, i32, i32, i32
  }
  func.func @transform_1(%arg0: i32, %arg1: i32) -> (i32, i32, i32) {
    %c0_i32 = arith.constant 0 : i32
    %c0_i32_0 = arith.constant 0 : i32
    %c0_i32_1 = arith.constant 0 : i32
    return %arg1, %c0_i32, %c0_i32_0 : i32, i32, i32
  }
  func.func @transform_2(%arg0: i32, %arg1: i32) -> (i32, i32, i32) {
    %c0_i32 = arith.constant 0 : i32
    %c0_i32_0 = arith.constant 0 : i32
    %c0_i32_1 = arith.constant 0 : i32
    return %arg1, %c0_i32, %c0_i32_0 : i32, i32, i32
  }
  func.func @transform_3(%arg0: i32, %arg1: i32) -> (i32, i32, i32, i32) {
    %c0_i32 = arith.constant 0 : i32
    %c0_i32_0 = arith.constant 0 : i32
    %c0_i32_1 = arith.constant 0 : i32
    %c0_i32_2 = arith.constant 0 : i32
    return %arg0, %c0_i32, %c0_i32_0, %c0_i32_1 : i32, i32, i32, i32
  }
}

</mosaic_0001>

<llo_original>
// kernel: resblocks_forward.1
$region0: #{resblocks_forward.1}
  #allocation0 [shape = 'u32[]', space=smem, size = 0x4, offset = 0x4, fixed_abs, tag = 'smem constant byte address 0x4 - core index']
  #allocation1 [shape = 'u32[72,128]{1,0:T(1,128)}', space=vmem, size = 0x9000, scoped, tag = 'internal scratch']
  #allocation2 [shape = 'bf16[18,32,128]{2,1,0:T(8,128)(2,1)}', space=vmem, size = 0x24000, scoped, tag = 'scratch operand']
  %s0 = inlined_call_operand.vmem [shape: f32[2,16,16,128], index: 0, kind: input, shape index: {}]
  %s1 = inlined_call_operand.vmem [shape: bf16[2,384,384], index: 1, kind: input, shape index: {}]
  %s2 = inlined_call_operand.vmem [shape: bf16[2,384,384], index: 2, kind: input, shape index: {}]
  %s3 = inlined_call_operand.hbm [shape: f32[2,16,16,128], index: 3, kind: output, shape index: {}]
  %s4 = sld [smem:[#allocation0]]
  $region49: #{resblocks_forward.1} parent=0
    _
  %s6 = ssub.s32 1, %s4
  %s7 = scalar_select 0, %s6, %s4
  $region1: #{resblocks_forward.1} parent=0
    #allocation3 [shape = 'u8[262144]{0}', space=vmem, size = 0x40000, scoped, tag = 'output window, operand 0']
    #allocation4 [shape = 's32[2]{0}', space=sflag, size = 0x8, scoped, tag = 'scoped memory for resblocks_forward.1']
    %8 = vsyncpa [#allocation4], 0
    %s9 = scalar_lea.sflag [#allocation4], 1
    %10 = vsyncpa %s9, 0
    loop: start=0, step=1, limit=6
    $region2: #{resblocks_forward.1} parent=1 // loop_pre_header
      _
    $region3: #{resblocks_forward.1} parent=1 // loop_header
      %s12 = sphi 0, %s16
      %p13 = scmp.ge.s32.totalorder %s12, 6
      %s19 = sphi 0, %s31
      %s20 = sphi 0, %s27
      %s21 = sphi 0, %s19
      %s22 = sphi 0, %s20
      %s23 = sphi 0, %s21
      %s24 = sphi 0, %s22
      %s34 = sphi 0, %s36
      %s37 = sphi 0, %s34
      %s38 = sphi 0, %s37
      %s54 = sphi 0, %s38
      %s60 = sphi 0, %s62
      %s63 = sphi 0, %s60
      %s64 = sphi 0, %s63
      %s80 = sphi 0, %s64
      %s86 = sphi 0, %s88
      %s89 = sphi 0, %s86
      %s90 = sphi 0, %s89
      %s106 = sphi 0, %s90
      %s112 = sphi 0, %s114
      %s115 = sphi 0, %s112
      %s116 = sphi 0, %s115
      %s132 = sphi 0, %s116
    $region4: #{resblocks_forward.1} parent=1 // loop_header_branch
      %15 = sbr.rel (%p13) target = $region8
    $region5: #{resblocks_forward.1} parent=1 // loop_body
      %s17 = ssub.s32 %s12, 1
      %s18 = ssub.s32 %s12, 2
      %s25 = sadd.s32 1, %s20
      %p26 = scmp.ge.s32.totalorder %s25, 2
      %s27 = scalar_select %p26, 0, %s25
      %s28 = sadd.s32 1, %s19
      %s29 = scalar_select %p26, %s28, %s19
      %p30 = scmp.ge.s32.totalorder %s29, 2
      %s31 = scalar_select %p30, 0, %s29
      %s32 = ssub.s32 %s19, %s31
      %p33 = scmp.eq.s32.totalorder %s32, 0
      %s35 = sadd.s32 %s34, 1
      %s36 = scalar_select %p33, %s34, %s35
      %p39 = pneg %p33
      %p40 = scmp.eq.s32.totalorder %s12, 3
      %p41 = por %p39, %p40
      %p42 = scmp.ne.s32.totalorder %s34, %s37
      %p43 = scmp.eq.s32.totalorder %s12, 0
      %p44 = por %p42, %p43
      %p45 = scmp.ne.s32.totalorder %s34, %s37
      %p46 = scmp.eq.s32.totalorder %s17, 3
      %p47 = por %p45, %p46
      %p48 = scmp.ne.s32.totalorder %s37, %s38
      %p49 = scmp.eq.s32.totalorder %s17, 0
      %p50 = por %p48, %p49
      %p51 = scmp.ne.s32.totalorder %s37, %s38
      %p52 = scmp.eq.s32.totalorder %s18, 3
      %p53 = por %p51, %p52
      %p55 = scmp.ne.s32.totalorder %s38, %s54
      %p56 = scmp.eq.s32.totalorder %s18, 0
      %p57 = por %p55, %p56
      %s58 = ssub.s32 %s20, %s27
      %p59 = scmp.eq.s32.totalorder %s58, 0
      %s61 = sadd.s32 %s60, 1
      %s62 = scalar_select %p59, %s60, %s61
      %p65 = pneg %p59
      %p66 = scmp.eq.s32.totalorder %s12, 3
      %p67 = por %p65, %p66
      %p68 = scmp.ne.s32.totalorder %s60, %s63
      %p69 = scmp.eq.s32.totalorder %s12, 0
      %p70 = por %p68, %p69
      %p71 = scmp.ne.s32.totalorder %s60, %s63
      %p72 = scmp.eq.s32.totalorder %s17, 3
      %p73 = por %p71, %p72
      %p74 = scmp.ne.s32.totalorder %s63, %s64
      %p75 = scmp.eq.s32.totalorder %s17, 0
      %p76 = por %p74, %p75
      %p77 = scmp.ne.s32.totalorder %s63, %s64
      %p78 = scmp.eq.s32.totalorder %s18, 3
      %p79 = por %p77, %p78
      %p81 = scmp.ne.s32.totalorder %s64, %s80
      %p82 = scmp.eq.s32.totalorder %s18, 0
      %p83 = por %p81, %p82
      %s84 = ssub.s32 %s20, %s27
      %p85 = scmp.eq.s32.totalorder %s84, 0
      %s87 = sadd.s32 %s86, 1
      %s88 = scalar_select %p85, %s86, %s87
      %p91 = pneg %p85
      %p92 = scmp.eq.s32.totalorder %s12, 3
      %p93 = por %p91, %p92
      %p94 = scmp.ne.s32.totalorder %s86, %s89
      %p95 = scmp.eq.s32.totalorder %s12, 0
      %p96 = por %p94, %p95
      %p97 = scmp.ne.s32.totalorder %s86, %s89
      %p98 = scmp.eq.s32.totalorder %s17, 3
      %p99 = por %p97, %p98
      %p100 = scmp.ne.s32.totalorder %s89, %s90
      %p101 = scmp.eq.s32.totalorder %s17, 0
      %p102 = por %p100, %p101
      %p103 = scmp.ne.s32.totalorder %s89, %s90
      %p104 = scmp.eq.s32.totalorder %s18, 3
      %p105 = por %p103, %p104
      %p107 = scmp.ne.s32.totalorder %s90, %s106
      %p108 = scmp.eq.s32.totalorder %s18, 0
      %p109 = por %p107, %p108
      %s110 = ssub.s32 %s19, %s31
      %p111 = scmp.eq.s32.totalorder %s110, 0
      %s113 = sadd.s32 %s112, 1
      %s114 = scalar_select %p111, %s112, %s113
      %p117 = pneg %p111
      %p118 = scmp.eq.s32.totalorder %s12, 3
      %p119 = por %p117, %p118
      %p120 = scmp.ne.s32.totalorder %s112, %s115
      %p121 = scmp.eq.s32.totalorder %s12, 0
      %p122 = por %p120, %p121
      %p123 = scmp.ne.s32.totalorder %s112, %s115
      %p124 = scmp.eq.s32.totalorder %s17, 3
      %p125 = por %p123, %p124
      %p126 = scmp.ne.s32.totalorder %s115, %s116
      %p127 = scmp.eq.s32.totalorder %s17, 0
      %p128 = por %p126, %p127
      %p129 = scmp.ne.s32.totalorder %s115, %s116
      %p130 = scmp.eq.s32.totalorder %s18, 3
      %p131 = por %p129, %p130
      %p133 = scmp.ne.s32.totalorder %s116, %s132
      %p134 = scmp.eq.s32.totalorder %s18, 0
      %p135 = por %p133, %p134
      %p136 = scmp.le.s32.totalorder 1, %s12
      %p137 = scmp.lt.s32.totalorder %s12, 5
      %p138 = pnand %p136, %p137
      %p139 = pneg %p138
      // Predicated region
      $region9: #{resblocks_forward.1} parent=5 // pred_check
        _
      $region10: #{resblocks_forward.1} parent=5 // pred_check_branch
        %141 = sbr.rel (%p138) target = $region12
      $region11: #{resblocks_forward.1} parent=5 // pred_region
        %s142 = ssub.s32 %s12, 1
      $region12: #{resblocks_forward.1} parent=5 // pred_fallthru
        _
      %p143 = scmp.lt.s32.totalorder %s12, 4
      // Predicated region
      $region13: #{resblocks_forward.1} parent=5 // pred_check
        %p144 = pneg %p143
      $region14: #{resblocks_forward.1} parent=5 // pred_check_branch
        %146 = sbr.rel (%p144) target = $region16
      $region15: #{resblocks_forward.1} parent=5 // pred_region
        // Predicated region
        $region17: #{resblocks_forward.1} parent=15 // pred_check
          %p147 = pneg %p44
        $region18: #{resblocks_forward.1} parent=15 // pred_check_branch
          %149 = sbr.rel (%p147) target = $region20
        $region19: #{resblocks_forward.1} parent=15 // pred_region
          %p150 = scmp.lt.s32.totalorder %s19, 1
          %s151 = scalar_select %p150, %s19, 1
          %s152 = smul.addr %s151, 32
          %s153 = smul.addr %s152, 8
          %s154 = scalar_lea.vmem %s0, %s153
        $region20: #{resblocks_forward.1} parent=15 // pred_fallthru
          _
        // Predicated region
        $region21: #{resblocks_forward.1} parent=15 // pred_check
          %p155 = pneg %p70
        $region22: #{resblocks_forward.1} parent=15 // pred_check_branch
          %157 = sbr.rel (%p155) target = $region24
        $region23: #{resblocks_forward.1} parent=15 // pred_region
          %p158 = scmp.lt.s32.totalorder %s20, 1
          %s159 = scalar_select %p158, %s20, 1
          %s160 = smul.addr %s159, 144
          %s161 = smul.addr %s160, 4
          %s162 = scalar_lea.vmem %s1, %s161
        $region24: #{resblocks_forward.1} parent=15 // pred_fallthru
          _
        // Predicated region
        $region25: #{resblocks_forward.1} parent=15 // pred_check
          %p163 = pneg %p96
        $region26: #{resblocks_forward.1} parent=15 // pred_check_branch
          %165 = sbr.rel (%p163) target = $region28
        $region27: #{resblocks_forward.1} parent=15 // pred_region
          %p166 = scmp.lt.s32.totalorder %s20, 1
          %s167 = scalar_select %p166, %s20, 1
          %s168 = smul.addr %s167, 144
          %s169 = smul.addr %s168, 4
          %s170 = scalar_lea.vmem %s2, %s169
        $region28: #{resblocks_forward.1} parent=15 // pred_fallthru
          _
      $region16: #{resblocks_forward.1} parent=5 // pred_fallthru
        _
      %p171 = scmp.le.s32.totalorder 1, %s12
      %p172 = scmp.lt.s32.totalorder %s12, 5
      %p173 = pnand %p171, %p172
      %p174 = pneg %p173
      // Predicated region
      $region29: #{resblocks_forward.1} parent=5 // pred_check
        _
      $region30: #{resblocks_forward.1} parent=5 // pred_check_branch
        %176 = sbr.rel (%p173) target = $region32
      $region31: #{resblocks_forward.1} parent=5 // pred_region
        %s177 = ssub.s32 %s12, 1
        %p178 = scmp.lt.s32.totalorder %s21, 1
        %s179 = scalar_select %p178, %s21, 1
        %s180 = smul.addr %s179, 32
        %s181 = smul.addr %s180, 8
        %s182 = scalar_lea.vmem %s0, %s181
        %p183 = pneg %p50
        %p184 = pneg %p47
        %p185 = scmp.lt.s32.totalorder %s22, 1
        %s186 = scalar_select %p185, %s22, 1
        %s187 = smul.addr %s186, 144
        %s188 = smul.addr %s187, 4
        %s189 = scalar_lea.vmem %s1, %s188
        %p190 = pneg %p76
        %p191 = pneg %p73
        %p192 = scmp.lt.s32.totalorder %s22, 1
        %s193 = scalar_select %p192, %s22, 1
        %s194 = smul.addr %s193, 144
        %s195 = smul.addr %s194, 4
        %s196 = scalar_lea.vmem %s2, %s195
        %p197 = pneg %p102
        %p198 = pneg %p99
        %p199 = pneg %p128
        %p200 = pneg %p125
        %s201 = sand.u32 %s115, 1
        %s202 = scalar_lea.sflag [#allocation4], %s201
        %s203 = sand.u32 %s115, 1
        %s204 = smul.addr %s203, 256
        %s205 = scalar_lea.vmem [#allocation3], %s204
        %p206 = scmp.lt.s32.totalorder %s21, 1
        %s207 = scalar_select %p206, %s21, 1
        %s208 = smul.addr %s207, 32
        %s209 = smul.addr %s208, 8
        %s210 = scalar_lea.vmem %s0, %s209
        %p211 = scmp.lt.s32.totalorder %s22, 1
        %s212 = scalar_select %p211, %s22, 1
        %s213 = smul.addr %s212, 144
        %s214 = smul.addr %s213, 4
        %s215 = scalar_lea.vmem %s1, %s214
        %p216 = scmp.lt.s32.totalorder %s22, 1
        %s217 = scalar_select %p216, %s22, 1
        %s218 = smul.addr %s217, 144
        %s219 = smul.addr %s218, 4
        %s220 = scalar_lea.vmem %s2, %s219
        %p222 = scmp.eq.s32.totalorder %s22, 0
        // Predicated region
        $region33: #{resblocks_forward.1} parent=31 // pred_check
          %p223 = pneg %p222
        $region34: #{resblocks_forward.1} parent=31 // pred_check_branch
          %225 = sbr.rel (%p223) target = $region36
        $region35: #{resblocks_forward.1} parent=31 // pred_region
          %226 = vst [vmem:[#allocation2] sm:$0xf] 0
          %227 = vst [vmem:[#allocation2 + $0x4] sm:$0xf] 0
          %228 = vst [vmem:[#allocation2 + $0x8] sm:$0xf] 0
          %229 = vst [vmem:[#allocation2 + $0xc] sm:$0xf] 0
          %s230 = scalar_lea.vmem [#allocation2], 272
          %231 = vst [vmem:[%s230] sm:$0xf] 0
          %232 = vst [vmem:[%s230 + $0x4] sm:$0xf] 0
          %233 = vst [vmem:[%s230 + $0x8] sm:$0xf] 0
          %234 = vst [vmem:[%s230 + $0xc] sm:$0xf] 0
          %235 = vst [vmem:[#allocation2 + $0x8] sm:$0xf] 0
          %236 = vst [vmem:[#allocation2 + $0xc] sm:$0xf] 0
          %237 = vst [vmem:[#allocation2 + $0x18] sm:$0xf] 0
          %238 = vst [vmem:[#allocation2 + $0x1c] sm:$0xf] 0
          %239 = vst [vmem:[#allocation2 + $0x28] sm:$0xf] 0
          %240 = vst [vmem:[#allocation2 + $0x2c] sm:$0xf] 0
          %241 = vst [vmem:[#allocation2 + $0x38] sm:$0xf] 0
          %242 = vst [vmem:[#allocation2 + $0x3c] sm:$0xf] 0
          %243 = vst [vmem:[#allocation2 + $0x48] sm:$0xf] 0
          %244 = vst [vmem:[#allocation2 + $0x4c] sm:$0xf] 0
          %245 = vst [vmem:[#allocation2 + $0x58] sm:$0xf] 0
          %246 = vst [vmem:[#allocation2 + $0x5c] sm:$0xf] 0
          %247 = vst [vmem:[#allocation2 + $0x68] sm:$0xf] 0
          %248 = vst [vmem:[#allocation2 + $0x6c] sm:$0xf] 0
          %249 = vst [vmem:[#allocation2 + $0x78] sm:$0xf] 0
          %250 = vst [vmem:[#allocation2 + $0x7c] sm:$0xf] 0
          %251 = vst [vmem:[#allocation2 + $0x88] sm:$0xf] 0
          %252 = vst [vmem:[#allocation2 + $0x8c] sm:$0xf] 0
          %253 = vst [vmem:[#allocation2 + $0x98] sm:$0xf] 0
          %254 = vst [vmem:[#allocation2 + $0x9c] sm:$0xf] 0
          %255 = vst [vmem:[#allocation2 + $0xa8] sm:$0xf] 0
          %256 = vst [vmem:[#allocation2 + $0xac] sm:$0xf] 0
          %257 = vst [vmem:[#allocation2 + $0xb8] sm:$0xf] 0
          %258 = vst [vmem:[#allocation2 + $0xbc] sm:$0xf] 0
          %259 = vst [vmem:[#allocation2 + $0xc8] sm:$0xf] 0
          %260 = vst [vmem:[#allocation2 + $0xcc] sm:$0xf] 0
          %261 = vst [vmem:[#allocation2 + $0xd8] sm:$0xf] 0
          %262 = vst [vmem:[#allocation2 + $0xdc] sm:$0xf] 0
          %263 = vst [vmem:[#allocation2 + $0xe8] sm:$0xf] 0
          %264 = vst [vmem:[#allocation2 + $0xec] sm:$0xf] 0
          %265 = vst [vmem:[#allocation2 + $0xf8] sm:$0xf] 0
          %266 = vst [vmem:[#allocation2 + $0xfc] sm:$0xf] 0
          %267 = vst [vmem:[#allocation2 + $0x108] sm:$0xf] 0
          %268 = vst [vmem:[#allocation2 + $0x10c] sm:$0xf] 0
          %269 = vst [vmem:[#allocation2 + $0x118] sm:$0xf] 0
          %270 = vst [vmem:[#allocation2 + $0x11c] sm:$0xf] 0
          %v271 = vld [vmem:[%s210] sm:$0xff]
          %v272 = vld [vmem:[%s210 + $0x8] sm:$0xff]
          %v273 = vld [vmem:[%s210 + $0x10] sm:$0xff]
          %v274 = vld [vmem:[%s210 + $0x18] sm:$0xff]
          %v275 = vld [vmem:[%s210 + $0x20] sm:$0xff]
          %v276 = vld [vmem:[%s210 + $0x28] sm:$0xff]
          %v277 = vld [vmem:[%s210 + $0x30] sm:$0xff]
          %v278 = vld [vmem:[%s210 + $0x38] sm:$0xff]
          %v279 = vld [vmem:[%s210 + $0x40] sm:$0xff]
          %v280 = vld [vmem:[%s210 + $0x48] sm:$0xff]
          %v281 = vld [vmem:[%s210 + $0x50] sm:$0xff]
          %v282 = vld [vmem:[%s210 + $0x58] sm:$0xff]
          %v283 = vld [vmem:[%s210 + $0x60] sm:$0xff]
          %v284 = vld [vmem:[%s210 + $0x68] sm:$0xff]
          %v285 = vld [vmem:[%s210 + $0x70] sm:$0xff]
          %v286 = vld [vmem:[%s210 + $0x78] sm:$0xff]
          %v287 = vld [vmem:[%s210 + $0x80] sm:$0xff]
          %v288 = vld [vmem:[%s210 + $0x88] sm:$0xff]
          %v289 = vld [vmem:[%s210 + $0x90] sm:$0xff]
          %v290 = vld [vmem:[%s210 + $0x98] sm:$0xff]
          %v291 = vld [vmem:[%s210 + $0xa0] sm:$0xff]
          %v292 = vld [vmem:[%s210 + $0xa8] sm:$0xff]
          %v293 = vld [vmem:[%s210 + $0xb0] sm:$0xff]
          %v294 = vld [vmem:[%s210 + $0xb8] sm:$0xff]
          %v295 = vld [vmem:[%s210 + $0xc0] sm:$0xff]
          %v296 = vld [vmem:[%s210 + $0xc8] sm:$0xff]
          %v297 = vld [vmem:[%s210 + $0xd0] sm:$0xff]
          %v298 = vld [vmem:[%s210 + $0xd8] sm:$0xff]
          %v299 = vld [vmem:[%s210 + $0xe0] sm:$0xff]
          %v300 = vld [vmem:[%s210 + $0xe8] sm:$0xff]
          %v301 = vld [vmem:[%s210 + $0xf0] sm:$0xff]
          %v302 = vld [vmem:[%s210 + $0xf8] sm:$0xff]
          %303 = vst [vmem:[%s205] sm:$0xff] %v271
          %304 = vst [vmem:[%s205 + $0x8] sm:$0xff] %v272
          %305 = vst [vmem:[%s205 + $0x10] sm:$0xff] %v273
          %306 = vst [vmem:[%s205 + $0x18] sm:$0xff] %v274
          %307 = vst [vmem:[%s205 + $0x20] sm:$0xff] %v275
          %308 = vst [vmem:[%s205 + $0x28] sm:$0xff] %v276
          %309 = vst [vmem:[%s205 + $0x30] sm:$0xff] %v277
          %310 = vst [vmem:[%s205 + $0x38] sm:$0xff] %v278
          %311 = vst [vmem:[%s205 + $0x40] sm:$0xff] %v279
          %312 = vst [vmem:[%s205 + $0x48] sm:$0xff] %v280
          %313 = vst [vmem:[%s205 + $0x50] sm:$0xff] %v281
          %314 = vst [vmem:[%s205 + $0x58] sm:$0xff] %v282
          %315 = vst [vmem:[%s205 + $0x60] sm:$0xff] %v283
          %316 = vst [vmem:[%s205 + $0x68] sm:$0xff] %v284
          %317 = vst [vmem:[%s205 + $0x70] sm:$0xff] %v285
          %318 = vst [vmem:[%s205 + $0x78] sm:$0xff] %v286
          %319 = vst [vmem:[%s205 + $0x80] sm:$0xff] %v287
          %320 = vst [vmem:[%s205 + $0x88] sm:$0xff] %v288
          %321 = vst [vmem:[%s205 + $0x90] sm:$0xff] %v289
          %322 = vst [vmem:[%s205 + $0x98] sm:$0xff] %v290
          %323 = vst [vmem:[%s205 + $0xa0] sm:$0xff] %v291
          %324 = vst [vmem:[%s205 + $0xa8] sm:$0xff] %v292
          %325 = vst [vmem:[%s205 + $0xb0] sm:$0xff] %v293
          %326 = vst [vmem:[%s205 + $0xb8] sm:$0xff] %v294
          %327 = vst [vmem:[%s205 + $0xc0] sm:$0xff] %v295
          %328 = vst [vmem:[%s205 + $0xc8] sm:$0xff] %v296
          %329 = vst [vmem:[%s205 + $0xd0] sm:$0xff] %v297
          %330 = vst [vmem:[%s205 + $0xd8] sm:$0xff] %v298
          %331 = vst [vmem:[%s205 + $0xe0] sm:$0xff] %v299
          %332 = vst [vmem:[%s205 + $0xe8] sm:$0xff] %v300
          %333 = vst [vmem:[%s205 + $0xf0] sm:$0xff] %v301
          %334 = vst [vmem:[%s205 + $0xf8] sm:$0xff] %v302
        $region36: #{resblocks_forward.1} parent=31 // pred_fallthru
          _
        %v335 = vld [vmem:[%s205] sm:$0xff]
        %v336 = vld [vmem:[%s205 + $0x8] sm:$0xff]
        %v337 = vld [vmem:[%s205 + $0x10] sm:$0xff]
        %v338 = vld [vmem:[%s205 + $0x18] sm:$0xff]
        %v339 = vld [vmem:[%s205 + $0x20] sm:$0xff]
        %v340 = vld [vmem:[%s205 + $0x28] sm:$0xff]
        %v341 = vld [vmem:[%s205 + $0x30] sm:$0xff]
        %v342 = vld [vmem:[%s205 + $0x38] sm:$0xff]
        %v343 = vld [vmem:[%s205 + $0x40] sm:$0xff]
        %v344 = vld [vmem:[%s205 + $0x48] sm:$0xff]
        %v345 = vld [vmem:[%s205 + $0x50] sm:$0xff]
        %v346 = vld [vmem:[%s205 + $0x58] sm:$0xff]
        %v347 = vld [vmem:[%s205 + $0x60] sm:$0xff]
        %v348 = vld [vmem:[%s205 + $0x68] sm:$0xff]
        %v349 = vld [vmem:[%s205 + $0x70] sm:$0xff]
        %v350 = vld [vmem:[%s205 + $0x78] sm:$0xff]
        %v351 = vld [vmem:[%s205 + $0x80] sm:$0xff]
        %v352 = vld [vmem:[%s205 + $0x88] sm:$0xff]
        %v353 = vld [vmem:[%s205 + $0x90] sm:$0xff]
        %v354 = vld [vmem:[%s205 + $0x98] sm:$0xff]
        %v355 = vld [vmem:[%s205 + $0xa0] sm:$0xff]
        %v356 = vld [vmem:[%s205 + $0xa8] sm:$0xff]
        %v357 = vld [vmem:[%s205 + $0xb0] sm:$0xff]
        %v358 = vld [vmem:[%s205 + $0xb8] sm:$0xff]
        %v359 = vld [vmem:[%s205 + $0xc0] sm:$0xff]
        %v360 = vld [vmem:[%s205 + $0xc8] sm:$0xff]
        %v361 = vld [vmem:[%s205 + $0xd0] sm:$0xff]
        %v362 = vld [vmem:[%s205 + $0xd8] sm:$0xff]
        %v363 = vld [vmem:[%s205 + $0xe0] sm:$0xff]
        %v364 = vld [vmem:[%s205 + $0xe8] sm:$0xff]
        %v365 = vld [vmem:[%s205 + $0xf0] sm:$0xff]
        %v366 = vld [vmem:[%s205 + $0xf8] sm:$0xff]
        %v367 = vpack.c.bf16 %v335, %v335
        %v368 = vpack.c.bf16 %v336, %v336
        %v369 = vpack.c.bf16 %v337, %v337
        %v370 = vpack.c.bf16 %v338, %v338
        %v371 = vpack.c.bf16 %v339, %v339
        %v372 = vpack.c.bf16 %v340, %v340
        %v373 = vpack.c.bf16 %v341, %v341
        %v374 = vpack.c.bf16 %v342, %v342
        %v375 = vpack.c.bf16 %v343, %v343
        %v376 = vpack.c.bf16 %v344, %v344
        %v377 = vpack.c.bf16 %v345, %v345
        %v378 = vpack.c.bf16 %v346, %v346
        %v379 = vpack.c.bf16 %v347, %v347
        %v380 = vpack.c.bf16 %v348, %v348
        %v381 = vpack.c.bf16 %v349, %v349
        %v382 = vpack.c.bf16 %v350, %v350
        %v383 = vpack.c.bf16 %v351, %v351
        %v384 = vpack.c.bf16 %v352, %v352
        %v385 = vpack.c.bf16 %v353, %v353
        %v386 = vpack.c.bf16 %v354, %v354
        %v387 = vpack.c.bf16 %v355, %v355
        %v388 = vpack.c.bf16 %v356, %v356
        %v389 = vpack.c.bf16 %v357, %v357
        %v390 = vpack.c.bf16 %v358, %v358
        %v391 = vpack.c.bf16 %v359, %v359
        %v392 = vpack.c.bf16 %v360, %v360
        %v393 = vpack.c.bf16 %v361, %v361
        %v394 = vpack.c.bf16 %v362, %v362
        %v395 = vpack.c.bf16 %v363, %v363
        %v396 = vpack.c.bf16 %v364, %v364
        %v397 = vpack.c.bf16 %v365, %v365
        %v398 = vpack.c.bf16 %v366, %v366
        %s399 = scalar_lea.vmem [#allocation2], 16
        %400 = vst [vmem:[%s399] sm:$0xf] %v367
        %401 = vst [vmem:[%s399 + $0x4] sm:$0xf] %v368
        %402 = vst [vmem:[%s399 + $0x10] sm:$0xf] %v369
        %403 = vst [vmem:[%s399 + $0x14] sm:$0xf] %v370
        %404 = vst [vmem:[%s399 + $0x20] sm:$0xf] %v371
        %405 = vst [vmem:[%s399 + $0x24] sm:$0xf] %v372
        %406 = vst [vmem:[%s399 + $0x30] sm:$0xf] %v373
        %407 = vst [vmem:[%s399 + $0x34] sm:$0xf] %v374
        %408 = vst [vmem:[%s399 + $0x40] sm:$0xf] %v375
        %409 = vst [vmem:[%s399 + $0x44] sm:$0xf] %v376
        %410 = vst [vmem:[%s399 + $0x50] sm:$0xf] %v377
        %411 = vst [vmem:[%s399 + $0x54] sm:$0xf] %v378
        %412 = vst [vmem:[%s399 + $0x60] sm:$0xf] %v379
        %413 = vst [vmem:[%s399 + $0x64] sm:$0xf] %v380
        %414 = vst [vmem:[%s399 + $0x70] sm:$0xf] %v381
        %415 = vst [vmem:[%s399 + $0x74] sm:$0xf] %v382
        %416 = vst [vmem:[%s399 + $0x80] sm:$0xf] %v383
        %417 = vst [vmem:[%s399 + $0x84] sm:$0xf] %v384
        %418 = vst [vmem:[%s399 + $0x90] sm:$0xf] %v385
        %419 = vst [vmem:[%s399 + $0x94] sm:$0xf] %v386
        %420 = vst [vmem:[%s399 + $0xa0] sm:$0xf] %v387
        %421 = vst [vmem:[%s399 + $0xa4] sm:$0xf] %v388
        %422 = vst [vmem:[%s399 + $0xb0] sm:$0xf] %v389
        %423 = vst [vmem:[%s399 + $0xb4] sm:$0xf] %v390
        %424 = vst [vmem:[%s399 + $0xc0] sm:$0xf] %v391
        %425 = vst [vmem:[%s399 + $0xc4] sm:$0xf] %v392
        %426 = vst [vmem:[%s399 + $0xd0] sm:$0xf] %v393
        %427 = vst [vmem:[%s399 + $0xd4] sm:$0xf] %v394
        %428 = vst [vmem:[%s399 + $0xe0] sm:$0xf] %v395
        %429 = vst [vmem:[%s399 + $0xe4] sm:$0xf] %v396
        %430 = vst [vmem:[%s399 + $0xf0] sm:$0xf] %v397
        %431 = vst [vmem:[%s399 + $0xf4] sm:$0xf] %v398
        %v432 = vld [vmem:[#allocation2] sm:$0xf]
        %v433 = vld [vmem:[#allocation2 + $0x4] sm:$0xf]
        %v434 = vld [vmem:[#allocation2 + $0x8] sm:$0xf]
        %v435 = vld [vmem:[#allocation2 + $0xc] sm:$0xf]
        %v436 = vld [vmem:[#allocation2 + $0x10] sm:$0xf]
        %v437 = vld [vmem:[#allocation2 + $0x14] sm:$0xf]
        %v438 = vld [vmem:[#allocation2 + $0x18] sm:$0xf]
        %v439 = vld [vmem:[#allocation2 + $0x1c] sm:$0xf]
        %v440 = vld [vmem:[#allocation2 + $0x20] sm:$0xf]
        %v441 = vld [vmem:[#allocation2 + $0x24] sm:$0xf]
        %v442 = vld [vmem:[#allocation2 + $0x28] sm:$0xf]
        %v443 = vld [vmem:[#allocation2 + $0x2c] sm:$0xf]
        %v444 = vld [vmem:[#allocation2 + $0x30] sm:$0xf]
        %v445 = vld [vmem:[#allocation2 + $0x34] sm:$0xf]
        %v446 = vld [vmem:[#allocation2 + $0x38] sm:$0xf]
        %v447 = vld [vmem:[#allocation2 + $0x3c] sm:$0xf]
        %v448 = vld [vmem:[#allocation2 + $0x40] sm:$0xf]
        %v449 = vld [vmem:[#allocation2 + $0x44] sm:$0xf]
        %v450 = vld [vmem:[#allocation2 + $0x48] sm:$0xf]
        %v451 = vld [vmem:[#allocation2 + $0x4c] sm:$0xf]
        %v452 = vld [vmem:[#allocation2 + $0x50] sm:$0xf]
        %v453 = vld [vmem:[#allocation2 + $0x54] sm:$0xf]
        %v454 = vld [vmem:[#allocation2 + $0x58] sm:$0xf]
        %v455 = vld [vmem:[#allocation2 + $0x5c] sm:$0xf]
        %v456 = vld [vmem:[#allocation2 + $0x60] sm:$0xf]
        %v457 = vld [vmem:[#allocation2 + $0x64] sm:$0xf]
        %v458 = vld [vmem:[#allocation2 + $0x68] sm:$0xf]
        %v459 = vld [vmem:[#allocation2 + $0x6c] sm:$0xf]
        %v460 = vld [vmem:[#allocation2 + $0x70] sm:$0xf]
        %v461 = vld [vmem:[#allocation2 + $0x74] sm:$0xf]
        %v462 = vld [vmem:[#allocation2 + $0x78] sm:$0xf]
        %v463 = vld [vmem:[#allocation2 + $0x7c] sm:$0xf]
        %v464 = vld [vmem:[#allocation2 + $0x80] sm:$0xf]
        %v465 = vld [vmem:[#allocation2 + $0x84] sm:$0xf]
        %v466 = vld [vmem:[#allocation2 + $0x88] sm:$0xf]
        %v467 = vld [vmem:[#allocation2 + $0x8c] sm:$0xf]
        %v468 = vld [vmem:[#allocation2 + $0x90] sm:$0xf]
        %v469 = vld [vmem:[#allocation2 + $0x94] sm:$0xf]
        %v470 = vld [vmem:[#allocation2 + $0x98] sm:$0xf]
        %v471 = vld [vmem:[#allocation2 + $0x9c] sm:$0xf]
        %v472 = vld [vmem:[#allocation2 + $0xa0] sm:$0xf]
        %v473 = vld [vmem:[#allocation2 + $0xa4] sm:$0xf]
        %v474 = vld [vmem:[#allocation2 + $0xa8] sm:$0xf]
        %v475 = vld [vmem:[#allocation2 + $0xac] sm:$0xf]
        %v476 = vld [vmem:[#allocation2 + $0xb0] sm:$0xf]
        %v477 = vld [vmem:[#allocation2 + $0xb4] sm:$0xf]
        %v478 = vld [vmem:[#allocation2 + $0xb8] sm:$0xf]
        %v479 = vld [vmem:[#allocation2 + $0xbc] sm:$0xf]
        %v480 = vld [vmem:[#allocation2 + $0xc0] sm:$0xf]
        %v481 = vld [vmem:[#allocation2 + $0xc4] sm:$0xf]
        %v482 = vld [vmem:[#allocation2 + $0xc8] sm:$0xf]
        %v483 = vld [vmem:[#allocation2 + $0xcc] sm:$0xf]
        %v484 = vld [vmem:[#allocation2 + $0xd0] sm:$0xf]
        %v485 = vld [vmem:[#allocation2 + $0xd4] sm:$0xf]
        %v486 = vld [vmem:[#allocation2 + $0xd8] sm:$0xf]
        %v487 = vld [vmem:[#allocation2 + $0xdc] sm:$0xf]
        %v488 = vld [vmem:[#allocation2 + $0xe0] sm:$0xf]
        %v489 = vld [vmem:[#allocation2 + $0xe4] sm:$0xf]
        %v490 = vld [vmem:[#allocation2 + $0xe8] sm:$0xf]
        %v491 = vld [vmem:[#allocation2 + $0xec] sm:$0xf]
        %v492 = vld [vmem:[#allocation2 + $0xf0] sm:$0xf]
        %v493 = vld [vmem:[#allocation2 + $0xf4] sm:$0xf]
        %v494 = vld [vmem:[#allocation2 + $0xf8] sm:$0xf]
        %v495 = vld [vmem:[#allocation2 + $0xfc] sm:$0xf]
        %v496 = vld [vmem:[%s399] sm:$0xf]
        %v497 = vld [vmem:[%s399 + $0x4] sm:$0xf]
        %v498 = vld [vmem:[%s399 + $0x8] sm:$0xf]
        %v499 = vld [vmem:[%s399 + $0xc] sm:$0xf]
        %v500 = vld [vmem:[%s399 + $0x10] sm:$0xf]
        %v501 = vld [vmem:[%s399 + $0x14] sm:$0xf]
        %v502 = vld [vmem:[%s399 + $0x18] sm:$0xf]
        %v503 = vld [vmem:[%s399 + $0x1c] sm:$0xf]
        %v504 = vld [vmem:[%s399 + $0x20] sm:$0xf]
        %v505 = vld [vmem:[%s399 + $0x24] sm:$0xf]
        %v506 = vld [vmem:[%s399 + $0x28] sm:$0xf]
        %v507 = vld [vmem:[%s399 + $0x2c] sm:$0xf]
        %v508 = vld [vmem:[%s399 + $0x30] sm:$0xf]
        %v509 = vld [vmem:[%s399 + $0x34] sm:$0xf]
        %v510 = vld [vmem:[%s399 + $0x38] sm:$0xf]
        %v511 = vld [vmem:[%s399 + $0x3c] sm:$0xf]
        %v512 = vld [vmem:[%s399 + $0x40] sm:$0xf]
        %v513 = vld [vmem:[%s399 + $0x44] sm:$0xf]
        %v514 = vld [vmem:[%s399 + $0x48] sm:$0xf]
        %v515 = vld [vmem:[%s399 + $0x4c] sm:$0xf]
        %v516 = vld [vmem:[%s399 + $0x50] sm:$0xf]
        %v517 = vld [vmem:[%s399 + $0x54] sm:$0xf]
        %v518 = vld [vmem:[%s399 + $0x58] sm:$0xf]
        %v519 = vld [vmem:[%s399 + $0x5c] sm:$0xf]
        %v520 = vld [vmem:[%s399 + $0x60] sm:$0xf]
        %v521 = vld [vmem:[%s399 + $0x64] sm:$0xf]
        %v522 = vld [vmem:[%s399 + $0x68] sm:$0xf]
        %v523 = vld [vmem:[%s399 + $0x6c] sm:$0xf]
        %v524 = vld [vmem:[%s399 + $0x70] sm:$0xf]
        %v525 = vld [vmem:[%s399 + $0x74] sm:$0xf]
        %v526 = vld [vmem:[%s399 + $0x78] sm:$0xf]
        %v527 = vld [vmem:[%s399 + $0x7c] sm:$0xf]
        %v528 = vld [vmem:[%s399 + $0x80] sm:$0xf]
        %v529 = vld [vmem:[%s399 + $0x84] sm:$0xf]
        %v530 = vld [vmem:[%s399 + $0x88] sm:$0xf]
        %v531 = vld [vmem:[%s399 + $0x8c] sm:$0xf]
        %v532 = vld [vmem:[%s399 + $0x90] sm:$0xf]
        %v533 = vld [vmem:[%s399 + $0x94] sm:$0xf]
        %v534 = vld [vmem:[%s399 + $0x98] sm:$0xf]
        %v535 = vld [vmem:[%s399 + $0x9c] sm:$0xf]
        %v536 = vld [vmem:[%s399 + $0xa0] sm:$0xf]
        %v537 = vld [vmem:[%s399 + $0xa4] sm:$0xf]
        %v538 = vld [vmem:[%s399 + $0xa8] sm:$0xf]
        %v539 = vld [vmem:[%s399 + $0xac] sm:$0xf]
        %v540 = vld [vmem:[%s399 + $0xb0] sm:$0xf]
        %v541 = vld [vmem:[%s399 + $0xb4] sm:$0xf]
        %v542 = vld [vmem:[%s399 + $0xb8] sm:$0xf]
        %v543 = vld [vmem:[%s399 + $0xbc] sm:$0xf]
        %v544 = vld [vmem:[%s399 + $0xc0] sm:$0xf]
        %v545 = vld [vmem:[%s399 + $0xc4] sm:$0xf]
        %v546 = vld [vmem:[%s399 + $0xc8] sm:$0xf]
        %v547 = vld [vmem:[%s399 + $0xcc] sm:$0xf]
        %v548 = vld [vmem:[%s399 + $0xd0] sm:$0xf]
        %v549 = vld [vmem:[%s399 + $0xd4] sm:$0xf]
        %v550 = vld [vmem:[%s399 + $0xd8] sm:$0xf]
        %v551 = vld [vmem:[%s399 + $0xdc] sm:$0xf]
        %v552 = vld [vmem:[%s399 + $0xe0] sm:$0xf]
        %v553 = vld [vmem:[%s399 + $0xe4] sm:$0xf]
        %v554 = vld [vmem:[%s399 + $0xe8] sm:$0xf]
        %v555 = vld [vmem:[%s399 + $0xec] sm:$0xf]
        %v556 = vld [vmem:[%s399 + $0xf0] sm:$0xf]
        %v557 = vld [vmem:[%s399 + $0xf4] sm:$0xf]
        %v558 = vld [vmem:[%s399 + $0xf8] sm:$0xf]
        %v559 = vld [vmem:[%s399 + $0xfc] sm:$0xf]
        %s560 = scalar_lea.vmem [#allocation2], 32
        %v561 = vld [vmem:[%s560] sm:$0xf]
        %v562 = vld [vmem:[%s560 + $0x4] sm:$0xf]
        %v563 = vld [vmem:[%s560 + $0x8] sm:$0xf]
        %v564 = vld [vmem:[%s560 + $0xc] sm:$0xf]
        %v565 = vld [vmem:[%s560 + $0x10] sm:$0xf]
        %v566 = vld [vmem:[%s560 + $0x14] sm:$0xf]
        %v567 = vld [vmem:[%s560 + $0x18] sm:$0xf]
        %v568 = vld [vmem:[%s560 + $0x1c] sm:$0xf]
        %v569 = vld [vmem:[%s560 + $0x20] sm:$0xf]
        %v570 = vld [vmem:[%s560 + $0x24] sm:$0xf]
        %v571 = vld [vmem:[%s560 + $0x28] sm:$0xf]
        %v572 = vld [vmem:[%s560 + $0x2c] sm:$0xf]
        %v573 = vld [vmem:[%s560 + $0x30] sm:$0xf]
        %v574 = vld [vmem:[%s560 + $0x34] sm:$0xf]
        %v575 = vld [vmem:[%s560 + $0x38] sm:$0xf]
        %v576 = vld [vmem:[%s560 + $0x3c] sm:$0xf]
        %v577 = vld [vmem:[%s560 + $0x40] sm:$0xf]
        %v578 = vld [vmem:[%s560 + $0x44] sm:$0xf]
        %v579 = vld [vmem:[%s560 + $0x48] sm:$0xf]
        %v580 = vld [vmem:[%s560 + $0x4c] sm:$0xf]
        %v581 = vld [vmem:[%s560 + $0x50] sm:$0xf]
        %v582 = vld [vmem:[%s560 + $0x54] sm:$0xf]
        %v583 = vld [vmem:[%s560 + $0x58] sm:$0xf]
        %v584 = vld [vmem:[%s560 + $0x5c] sm:$0xf]
        %v585 = vld [vmem:[%s560 + $0x60] sm:$0xf]
        %v586 = vld [vmem:[%s560 + $0x64] sm:$0xf]
        %v587 = vld [vmem:[%s560 + $0x68] sm:$0xf]
        %v588 = vld [vmem:[%s560 + $0x6c] sm:$0xf]
        %v589 = vld [vmem:[%s560 + $0x70] sm:$0xf]
        %v590 = vld [vmem:[%s560 + $0x74] sm:$0xf]
        %v591 = vld [vmem:[%s560 + $0x78] sm:$0xf]
        %v592 = vld [vmem:[%s560 + $0x7c] sm:$0xf]
        %v593 = vld [vmem:[%s560 + $0x80] sm:$0xf]
        %v594 = vld [vmem:[%s560 + $0x84] sm:$0xf]
        %v595 = vld [vmem:[%s560 + $0x88] sm:$0xf]
        %v596 = vld [vmem:[%s560 + $0x8c] sm:$0xf]
        %v597 = vld [vmem:[%s560 + $0x90] sm:$0xf]
        %v598 = vld [vmem:[%s560 + $0x94] sm:$0xf]
        %v599 = vld [vmem:[%s560 + $0x98] sm:$0xf]
        %v600 = vld [vmem:[%s560 + $0x9c] sm:$0xf]
        %v601 = vld [vmem:[%s560 + $0xa0] sm:$0xf]
        %v602 = vld [vmem:[%s560 + $0xa4] sm:$0xf]
        %v603 = vld [vmem:[%s560 + $0xa8] sm:$0xf]
        %v604 = vld [vmem:[%s560 + $0xac] sm:$0xf]
        %v605 = vld [vmem:[%s560 + $0xb0] sm:$0xf]
        %v606 = vld [vmem:[%s560 + $0xb4] sm:$0xf]
        %v607 = vld [vmem:[%s560 + $0xb8] sm:$0xf]
        %v608 = vld [vmem:[%s560 + $0xbc] sm:$0xf]
        %v609 = vld [vmem:[%s560 + $0xc0] sm:$0xf]
        %v610 = vld [vmem:[%s560 + $0xc4] sm:$0xf]
        %v611 = vld [vmem:[%s560 + $0xc8] sm:$0xf]
        %v612 = vld [vmem:[%s560 + $0xcc] sm:$0xf]
        %v613 = vld [vmem:[%s560 + $0xd0] sm:$0xf]
        %v614 = vld [vmem:[%s560 + $0xd4] sm:$0xf]
        %v615 = vld [vmem:[%s560 + $0xd8] sm:$0xf]
        %v616 = vld [vmem:[%s560 + $0xdc] sm:$0xf]
        %v617 = vld [vmem:[%s560 + $0xe0] sm:$0xf]
        %v618 = vld [vmem:[%s560 + $0xe4] sm:$0xf]
        %v619 = vld [vmem:[%s560 + $0xe8] sm:$0xf]
        %v620 = vld [vmem:[%s560 + $0xec] sm:$0xf]
        %v621 = vld [vmem:[%s560 + $0xf0] sm:$0xf]
        %v622 = vld [vmem:[%s560 + $0xf4] sm:$0xf]
        %v623 = vld [vmem:[%s560 + $0xf8] sm:$0xf]
        %v624 = vld [vmem:[%s560 + $0xfc] sm:$0xf]
        %v689 = vunpack.c.l.b16 %v432
        %v690 = vunpack.c.l.b16 %v433
        %v691 = vunpack.c.l.b16 %v434
        %v692 = vunpack.c.l.b16 %v435
        %v693 = vunpack.c.l.b16 %v436
        %v694 = vunpack.c.l.b16 %v437
        %v695 = vunpack.c.l.b16 %v438
        %v696 = vunpack.c.l.b16 %v439
        %v697 = vunpack.c.l.b16 %v440
        %v698 = vunpack.c.l.b16 %v441
        %v699 = vunpack.c.l.b16 %v442
        %v700 = vunpack.c.l.b16 %v443
        %v701 = vunpack.c.l.b16 %v444
        %v702 = vunpack.c.l.b16 %v445
        %v703 = vunpack.c.l.b16 %v446
        %v704 = vunpack.c.l.b16 %v447
        %v705 = vunpack.c.l.b16 %v448
        %v706 = vunpack.c.l.b16 %v449
        %v707 = vunpack.c.l.b16 %v450
        %v708 = vunpack.c.l.b16 %v451
        %v709 = vunpack.c.l.b16 %v452
        %v710 = vunpack.c.l.b16 %v453
        %v711 = vunpack.c.l.b16 %v454
        %v712 = vunpack.c.l.b16 %v455
        %v713 = vunpack.c.l.b16 %v456
        %v714 = vunpack.c.l.b16 %v457
        %v715 = vunpack.c.l.b16 %v458
        %v716 = vunpack.c.l.b16 %v459
        %v717 = vunpack.c.l.b16 %v460
        %v718 = vunpack.c.l.b16 %v461
        %v719 = vunpack.c.l.b16 %v462
        %v720 = vunpack.c.l.b16 %v463
        %v721 = vunpack.c.l.b16 %v464
        %v722 = vunpack.c.l.b16 %v465
        %v723 = vunpack.c.l.b16 %v466
        %v724 = vunpack.c.l.b16 %v467
        %v725 = vunpack.c.l.b16 %v468
        %v726 = vunpack.c.l.b16 %v469
        %v727 = vunpack.c.l.b16 %v470
        %v728 = vunpack.c.l.b16 %v471
        %v729 = vunpack.c.l.b16 %v472
        %v730 = vunpack.c.l.b16 %v473
        %v731 = vunpack.c.l.b16 %v474
        %v732 = vunpack.c.l.b16 %v475
        %v733 = vunpack.c.l.b16 %v476
        %v734 = vunpack.c.l.b16 %v477
        %v735 = vunpack.c.l.b16 %v478
        %v736 = vunpack.c.l.b16 %v479
        %v737 = vunpack.c.l.b16 %v480
        %v738 = vunpack.c.l.b16 %v481
        %v739 = vunpack.c.l.b16 %v482
        %v740 = vunpack.c.l.b16 %v483
        %v741 = vunpack.c.l.b16 %v484
        %v742 = vunpack.c.l.b16 %v485
        %v743 = vunpack.c.l.b16 %v486
        %v744 = vunpack.c.l.b16 %v487
        %v745 = vunpack.c.l.b16 %v488
        %v746 = vunpack.c.l.b16 %v489
        %v747 = vunpack.c.l.b16 %v490
        %v748 = vunpack.c.l.b16 %v491
        %v749 = vunpack.c.l.b16 %v492
        %v750 = vunpack.c.l.b16 %v493
        %v751 = vunpack.c.l.b16 %v494
        %v752 = vunpack.c.l.b16 %v495
        %v753 = vpack.c.b16 %v690, %v689
        %v754 = vpack.c.b16 %v692, %v691
        %v755 = vpack.c.b16 %v694, %v693
        %v756 = vpack.c.b16 %v696, %v695
        %v757 = vpack.c.b16 %v698, %v697
        %v758 = vpack.c.b16 %v700, %v699
        %v759 = vpack.c.b16 %v702, %v701
        %v760 = vpack.c.b16 %v704, %v703
        %v761 = vpack.c.b16 %v706, %v705
        %v762 = vpack.c.b16 %v708, %v707
        %v763 = vpack.c.b16 %v710, %v709
        %v764 = vpack.c.b16 %v712, %v711
        %v765 = vpack.c.b16 %v714, %v713
        %v766 = vpack.c.b16 %v716, %v715
        %v767 = vpack.c.b16 %v718, %v717
        %v768 = vpack.c.b16 %v720, %v719
        %v769 = vpack.c.b16 %v722, %v721
        %v770 = vpack.c.b16 %v724, %v723
        %v771 = vpack.c.b16 %v726, %v725
        %v772 = vpack.c.b16 %v728, %v727
        %v773 = vpack.c.b16 %v730, %v729
        %v774 = vpack.c.b16 %v732, %v731
        %v775 = vpack.c.b16 %v734, %v733
        %v776 = vpack.c.b16 %v736, %v735
        %v777 = vpack.c.b16 %v738, %v737
        %v778 = vpack.c.b16 %v740, %v739
        %v779 = vpack.c.b16 %v742, %v741
        %v780 = vpack.c.b16 %v744, %v743
        %v781 = vpack.c.b16 %v746, %v745
        %v782 = vpack.c.b16 %v748, %v747
        %v783 = vpack.c.b16 %v750, %v749
        %v784 = vpack.c.b16 %v752, %v751
        %v881 = vunpack.c.l.b16 %v496
        %v882 = vunpack.c.l.b16 %v497
        %v883 = vunpack.c.l.b16 %v498
        %v884 = vunpack.c.l.b16 %v499
        %v885 = vunpack.c.l.b16 %v500
        %v886 = vunpack.c.l.b16 %v501
        %v887 = vunpack.c.l.b16 %v502
        %v888 = vunpack.c.l.b16 %v503
        %v889 = vunpack.c.l.b16 %v504
        %v890 = vunpack.c.l.b16 %v505
        %v891 = vunpack.c.l.b16 %v506
        %v892 = vunpack.c.l.b16 %v507
        %v893 = vunpack.c.l.b16 %v508
        %v894 = vunpack.c.l.b16 %v509
        %v895 = vunpack.c.l.b16 %v510
        %v896 = vunpack.c.l.b16 %v511
        %v897 = vunpack.c.l.b16 %v512
        %v898 = vunpack.c.l.b16 %v513
        %v899 = vunpack.c.l.b16 %v514
        %v900 = vunpack.c.l.b16 %v515
        %v901 = vunpack.c.l.b16 %v516
        %v902 = vunpack.c.l.b16 %v517
        %v903 = vunpack.c.l.b16 %v518
        %v904 = vunpack.c.l.b16 %v519
        %v905 = vunpack.c.l.b16 %v520
        %v906 = vunpack.c.l.b16 %v521
        %v907 = vunpack.c.l.b16 %v522
        %v908 = vunpack.c.l.b16 %v523
        %v909 = vunpack.c.l.b16 %v524
        %v910 = vunpack.c.l.b16 %v525
        %v911 = vunpack.c.l.b16 %v526
        %v912 = vunpack.c.l.b16 %v527
        %v913 = vunpack.c.l.b16 %v528
        %v914 = vunpack.c.l.b16 %v529
        %v915 = vunpack.c.l.b16 %v530
        %v916 = vunpack.c.l.b16 %v531
        %v917 = vunpack.c.l.b16 %v532
        %v918 = vunpack.c.l.b16 %v533
        %v919 = vunpack.c.l.b16 %v534
        %v920 = vunpack.c.l.b16 %v535
        %v921 = vunpack.c.l.b16 %v536
        %v922 = vunpack.c.l.b16 %v537
        %v923 = vunpack.c.l.b16 %v538
        %v924 = vunpack.c.l.b16 %v539
        %v925 = vunpack.c.l.b16 %v540
        %v926 = vunpack.c.l.b16 %v541
        %v927 = vunpack.c.l.b16 %v542
        %v928 = vunpack.c.l.b16 %v543
        %v929 = vunpack.c.l.b16 %v544
        %v930 = vunpack.c.l.b16 %v545
        %v931 = vunpack.c.l.b16 %v546
        %v932 = vunpack.c.l.b16 %v547
        %v933 = vunpack.c.l.b16 %v548
        %v934 = vunpack.c.l.b16 %v549
        %v935 = vunpack.c.l.b16 %v550
        %v936 = vunpack.c.l.b16 %v551
        %v937 = vunpack.c.l.b16 %v552
        %v938 = vunpack.c.l.b16 %v553
        %v939 = vunpack.c.l.b16 %v554
        %v940 = vunpack.c.l.b16 %v555
        %v941 = vunpack.c.l.b16 %v556
        %v942 = vunpack.c.l.b16 %v557
        %v943 = vunpack.c.l.b16 %v558
        %v944 = vunpack.c.l.b16 %v559
        %v945 = vpack.c.b16 %v882, %v881
        %v946 = vpack.c.b16 %v884, %v883
        %v947 = vpack.c.b16 %v886, %v885
        %v948 = vpack.c.b16 %v888, %v887
        %v949 = vpack.c.b16 %v890, %v889
        %v950 = vpack.c.b16 %v892, %v891
        %v951 = vpack.c.b16 %v894, %v893
        %v952 = vpack.c.b16 %v896, %v895
        %v953 = vpack.c.b16 %v898, %v897
        %v954 = vpack.c.b16 %v900, %v899
        %v955 = vpack.c.b16 %v902, %v901
        %v956 = vpack.c.b16 %v904, %v903
        %v957 = vpack.c.b16 %v906, %v905
        %v958 = vpack.c.b16 %v908, %v907
        %v959 = vpack.c.b16 %v910, %v909
        %v960 = vpack.c.b16 %v912, %v911
        %v961 = vpack.c.b16 %v914, %v913
        %v962 = vpack.c.b16 %v916, %v915
        %v963 = vpack.c.b16 %v918, %v917
        %v964 = vpack.c.b16 %v920, %v919
        %v965 = vpack.c.b16 %v922, %v921
        %v966 = vpack.c.b16 %v924, %v923
        %v967 = vpack.c.b16 %v926, %v925
        %v968 = vpack.c.b16 %v928, %v927
        %v969 = vpack.c.b16 %v930, %v929
        %v970 = vpack.c.b16 %v932, %v931
        %v971 = vpack.c.b16 %v934, %v933
        %v972 = vpack.c.b16 %v936, %v935
        %v973 = vpack.c.b16 %v938, %v937
        %v974 = vpack.c.b16 %v940, %v939
        %v975 = vpack.c.b16 %v942, %v941
        %v976 = vpack.c.b16 %v944, %v943
        %v1073 = vunpack.c.l.b16 %v561
        %v1074 = vunpack.c.l.b16 %v562
        %v1075 = vunpack.c.l.b16 %v563
        %v1076 = vunpack.c.l.b16 %v564
        %v1077 = vunpack.c.l.b16 %v565
        %v1078 = vunpack.c.l.b16 %v566
        %v1079 = vunpack.c.l.b16 %v567
        %v1080 = vunpack.c.l.b16 %v568
        %v1081 = vunpack.c.l.b16 %v569
        %v1082 = vunpack.c.l.b16 %v570
        %v1083 = vunpack.c.l.b16 %v571
        %v1084 = vunpack.c.l.b16 %v572
        %v1085 = vunpack.c.l.b16 %v573
        %v1086 = vunpack.c.l.b16 %v574
        %v1087 = vunpack.c.l.b16 %v575
        %v1088 = vunpack.c.l.b16 %v576
        %v1089 = vunpack.c.l.b16 %v577
        %v1090 = vunpack.c.l.b16 %v578
        %v1091 = vunpack.c.l.b16 %v579
        %v1092 = vunpack.c.l.b16 %v580
        %v1093 = vunpack.c.l.b16 %v581
        %v1094 = vunpack.c.l.b16 %v582
        %v1095 = vunpack.c.l.b16 %v583
        %v1096 = vunpack.c.l.b16 %v584
        %v1097 = vunpack.c.l.b16 %v585
        %v1098 = vunpack.c.l.b16 %v586
        %v1099 = vunpack.c.l.b16 %v587
        %v1100 = vunpack.c.l.b16 %v588
        %v1101 = vunpack.c.l.b16 %v589
        %v1102 = vunpack.c.l.b16 %v590
        %v1103 = vunpack.c.l.b16 %v591
        %v1104 = vunpack.c.l.b16 %v592
        %v1105 = vunpack.c.l.b16 %v593
        %v1106 = vunpack.c.l.b16 %v594
        %v1107 = vunpack.c.l.b16 %v595
        %v1108 = vunpack.c.l.b16 %v596
        %v1109 = vunpack.c.l.b16 %v597
        %v1110 = vunpack.c.l.b16 %v598
        %v1111 = vunpack.c.l.b16 %v599
        %v1112 = vunpack.c.l.b16 %v600
        %v1113 = vunpack.c.l.b16 %v601
        %v1114 = vunpack.c.l.b16 %v602
        %v1115 = vunpack.c.l.b16 %v603
        %v1116 = vunpack.c.l.b16 %v604
        %v1117 = vunpack.c.l.b16 %v605
        %v1118 = vunpack.c.l.b16 %v606
        %v1119 = vunpack.c.l.b16 %v607
        %v1120 = vunpack.c.l.b16 %v608
        %v1121 = vunpack.c.l.b16 %v609
        %v1122 = vunpack.c.l.b16 %v610
        %v1123 = vunpack.c.l.b16 %v611
        %v1124 = vunpack.c.l.b16 %v612
        %v1125 = vunpack.c.l.b16 %v613
        %v1126 = vunpack.c.l.b16 %v614
        %v1127 = vunpack.c.l.b16 %v615
        %v1128 = vunpack.c.l.b16 %v616
        %v1129 = vunpack.c.l.b16 %v617
        %v1130 = vunpack.c.l.b16 %v618
        %v1131 = vunpack.c.l.b16 %v619
        %v1132 = vunpack.c.l.b16 %v620
        %v1133 = vunpack.c.l.b16 %v621
        %v1134 = vunpack.c.l.b16 %v622
        %v1135 = vunpack.c.l.b16 %v623
        %v1136 = vunpack.c.l.b16 %v624
        %v1137 = vpack.c.b16 %v1074, %v1073
        %v1138 = vpack.c.b16 %v1076, %v1075
        %v1139 = vpack.c.b16 %v1078, %v1077
        %v1140 = vpack.c.b16 %v1080, %v1079
        %v1141 = vpack.c.b16 %v1082, %v1081
        %v1142 = vpack.c.b16 %v1084, %v1083
        %v1143 = vpack.c.b16 %v1086, %v1085
        %v1144 = vpack.c.b16 %v1088, %v1087
        %v1145 = vpack.c.b16 %v1090, %v1089
        %v1146 = vpack.c.b16 %v1092, %v1091
        %v1147 = vpack.c.b16 %v1094, %v1093
        %v1148 = vpack.c.b16 %v1096, %v1095
        %v1149 = vpack.c.b16 %v1098, %v1097
        %v1150 = vpack.c.b16 %v1100, %v1099
        %v1151 = vpack.c.b16 %v1102, %v1101
        %v1152 = vpack.c.b16 %v1104, %v1103
        %v1153 = vpack.c.b16 %v1106, %v1105
        %v1154 = vpack.c.b16 %v1108, %v1107
        %v1155 = vpack.c.b16 %v1110, %v1109
        %v1156 = vpack.c.b16 %v1112, %v1111
        %v1157 = vpack.c.b16 %v1114, %v1113
        %v1158 = vpack.c.b16 %v1116, %v1115
        %v1159 = vpack.c.b16 %v1118, %v1117
        %v1160 = vpack.c.b16 %v1120, %v1119
        %v1161 = vpack.c.b16 %v1122, %v1121
        %v1162 = vpack.c.b16 %v1124, %v1123
        %v1163 = vpack.c.b16 %v1126, %v1125
        %v1164 = vpack.c.b16 %v1128, %v1127
        %v1165 = vpack.c.b16 %v1130, %v1129
        %v1166 = vpack.c.b16 %v1132, %v1131
        %v1167 = vpack.c.b16 %v1134, %v1133
        %v1168 = vpack.c.b16 %v1136, %v1135
        %v1201 = vld [vmem:[%s215] sm:$0xff]
        %v1202 = vld [vmem:[%s215 + $0x8] sm:$0xf]
        %v1203 = vld [vmem:[%s215 + $0xc] sm:$0xff]
        %v1204 = vld [vmem:[%s215 + $0x14] sm:$0xf]
        %v1205 = vld [vmem:[%s215 + $0x18] sm:$0xff]
        %v1206 = vld [vmem:[%s215 + $0x20] sm:$0xf]
        %v1207 = vld [vmem:[%s215 + $0x24] sm:$0xff]
        %v1208 = vld [vmem:[%s215 + $0x2c] sm:$0xf]
        %v1209 = vld [vmem:[%s215 + $0x30] sm:$0xff]
        %v1210 = vld [vmem:[%s215 + $0x38] sm:$0xf]
        %v1211 = vld [vmem:[%s215 + $0x3c] sm:$0xff]
        %v1212 = vld [vmem:[%s215 + $0x44] sm:$0xf]
        %v1213 = vld [vmem:[%s215 + $0x48] sm:$0xff]
        %v1214 = vld [vmem:[%s215 + $0x50] sm:$0xf]
        %v1215 = vld [vmem:[%s215 + $0x54] sm:$0xff]
        %v1216 = vld [vmem:[%s215 + $0x5c] sm:$0xf]
        %v1217 = vld [vmem:[%s215 + $0x60] sm:$0xff]
        %v1218 = vld [vmem:[%s215 + $0x68] sm:$0xf]
        %v1219 = vld [vmem:[%s215 + $0x6c] sm:$0xff]
        %v1220 = vld [vmem:[%s215 + $0x74] sm:$0xf]
        %v1221 = vld [vmem:[%s215 + $0x78] sm:$0xff]
        %v1222 = vld [vmem:[%s215 + $0x80] sm:$0xf]
        %v1223 = vld [vmem:[%s215 + $0x84] sm:$0xff]
        %v1224 = vld [vmem:[%s215 + $0x8c] sm:$0xf]
        %v1225 = vld [vmem:[%s215 + $0x90] sm:$0xff]
        %v1226 = vld [vmem:[%s215 + $0x98] sm:$0xf]
        %v1227 = vld [vmem:[%s215 + $0x9c] sm:$0xff]
        %v1228 = vld [vmem:[%s215 + $0xa4] sm:$0xf]
        %v1229 = vld [vmem:[%s215 + $0xa8] sm:$0xff]
        %v1230 = vld [vmem:[%s215 + $0xb0] sm:$0xf]
        %v1231 = vld [vmem:[%s215 + $0xb4] sm:$0xff]
        %v1232 = vld [vmem:[%s215 + $0xbc] sm:$0xf]
        %v1233 = vld [vmem:[%s215 + $0xc0] sm:$0xff]
        %v1234 = vld [vmem:[%s215 + $0xc8] sm:$0xf]
        %v1235 = vld [vmem:[%s215 + $0xcc] sm:$0xff]
        %v1236 = vld [vmem:[%s215 + $0xd4] sm:$0xf]
        %v1237 = vld [vmem:[%s215 + $0xd8] sm:$0xff]
        %v1238 = vld [vmem:[%s215 + $0xe0] sm:$0xf]
        %v1239 = vld [vmem:[%s215 + $0xe4] sm:$0xff]
        %v1240 = vld [vmem:[%s215 + $0xec] sm:$0xf]
        %v1241 = vld [vmem:[%s215 + $0xf0] sm:$0xff]
        %v1242 = vld [vmem:[%s215 + $0xf8] sm:$0xf]
        %v1243 = vld [vmem:[%s215 + $0xfc] sm:$0xff]
        %v1244 = vld [vmem:[%s215 + $0x104] sm:$0xf]
        %v1245 = vld [vmem:[%s215 + $0x108] sm:$0xff]
        %v1246 = vld [vmem:[%s215 + $0x110] sm:$0xf]
        %v1247 = vld [vmem:[%s215 + $0x114] sm:$0xff]
        %v1248 = vld [vmem:[%s215 + $0x11c] sm:$0xf]
        %v1249 = vld [vmem:[%s215 + $0x120] sm:$0xff]
        %v1250 = vld [vmem:[%s215 + $0x128] sm:$0xf]
        %v1251 = vld [vmem:[%s215 + $0x12c] sm:$0xff]
        %v1252 = vld [vmem:[%s215 + $0x134] sm:$0xf]
        %v1253 = vld [vmem:[%s215 + $0x138] sm:$0xff]
        %v1254 = vld [vmem:[%s215 + $0x140] sm:$0xf]
        %v1255 = vld [vmem:[%s215 + $0x144] sm:$0xff]
        %v1256 = vld [vmem:[%s215 + $0x14c] sm:$0xf]
        %v1257 = vld [vmem:[%s215 + $0x150] sm:$0xff]
        %v1258 = vld [vmem:[%s215 + $0x158] sm:$0xf]
        %v1259 = vld [vmem:[%s215 + $0x15c] sm:$0xff]
        %v1260 = vld [vmem:[%s215 + $0x164] sm:$0xf]
        %v1261 = vld [vmem:[%s215 + $0x168] sm:$0xff]
        %v1262 = vld [vmem:[%s215 + $0x170] sm:$0xf]
        %v1263 = vld [vmem:[%s215 + $0x174] sm:$0xff]
        %v1264 = vld [vmem:[%s215 + $0x17c] sm:$0xf]
        %v1265 = vld [vmem:[%s215 + $0x180] sm:$0xff]
        %v1266 = vld [vmem:[%s215 + $0x188] sm:$0xf]
        %v1267 = vld [vmem:[%s215 + $0x18c] sm:$0xff]
        %v1268 = vld [vmem:[%s215 + $0x194] sm:$0xf]
        %v1269 = vld [vmem:[%s215 + $0x198] sm:$0xff]
        %v1270 = vld [vmem:[%s215 + $0x1a0] sm:$0xf]
        %v1271 = vld [vmem:[%s215 + $0x1a4] sm:$0xff]
        %v1272 = vld [vmem:[%s215 + $0x1ac] sm:$0xf]
        %v1273 = vld [vmem:[%s215 + $0x1b0] sm:$0xff]
        %v1274 = vld [vmem:[%s215 + $0x1b8] sm:$0xf]
        %v1275 = vld [vmem:[%s215 + $0x1bc] sm:$0xff]
        %v1276 = vld [vmem:[%s215 + $0x1c4] sm:$0xf]
        %v1277 = vld [vmem:[%s215 + $0x1c8] sm:$0xff]
        %v1278 = vld [vmem:[%s215 + $0x1d0] sm:$0xf]
        %v1279 = vld [vmem:[%s215 + $0x1d4] sm:$0xff]
        %v1280 = vld [vmem:[%s215 + $0x1dc] sm:$0xf]
        %v1281 = vld [vmem:[%s215 + $0x1e0] sm:$0xff]
        %v1282 = vld [vmem:[%s215 + $0x1e8] sm:$0xf]
        %v1283 = vld [vmem:[%s215 + $0x1ec] sm:$0xff]
        %v1284 = vld [vmem:[%s215 + $0x1f4] sm:$0xf]
        %v1285 = vld [vmem:[%s215 + $0x1f8] sm:$0xff]
        %v1286 = vld [vmem:[%s215 + $0x200] sm:$0xf]
        %v1287 = vld [vmem:[%s215 + $0x204] sm:$0xff]
        %v1288 = vld [vmem:[%s215 + $0x20c] sm:$0xf]
        %v1289 = vld [vmem:[%s215 + $0x210] sm:$0xff]
        %v1290 = vld [vmem:[%s215 + $0x218] sm:$0xf]
        %v1291 = vld [vmem:[%s215 + $0x21c] sm:$0xff]
        %v1292 = vld [vmem:[%s215 + $0x224] sm:$0xf]
        %v1293 = vld [vmem:[%s215 + $0x228] sm:$0xff]
        %v1294 = vld [vmem:[%s215 + $0x230] sm:$0xf]
        %v1295 = vld [vmem:[%s215 + $0x234] sm:$0xff]
        %v1296 = vld [vmem:[%s215 + $0x23c] sm:$0xf]
        %v1393 = vunpack.c.l.b16 %v1201
        %v1394 = vunpack.c.h.b16 %v1201
        %v1395 = vunpack.c.l.b16 %v1202
        %v1396 = vunpack.c.l.b16 %v1203
        %v1397 = vunpack.c.h.b16 %v1203
        %v1398 = vunpack.c.l.b16 %v1204
        %v1399 = vunpack.c.l.b16 %v1205
        %v1400 = vunpack.c.h.b16 %v1205
        %v1401 = vunpack.c.l.b16 %v1206
        %v1402 = vunpack.c.l.b16 %v1207
        %v1403 = vunpack.c.h.b16 %v1207
        %v1404 = vunpack.c.l.b16 %v1208
        %v1405 = vunpack.c.l.b16 %v1209
        %v1406 = vunpack.c.h.b16 %v1209
        %v1407 = vunpack.c.l.b16 %v1210
        %v1408 = vunpack.c.l.b16 %v1211
        %v1409 = vunpack.c.h.b16 %v1211
        %v1410 = vunpack.c.l.b16 %v1212
        %v1411 = vunpack.c.l.b16 %v1213
        %v1412 = vunpack.c.h.b16 %v1213
        %v1413 = vunpack.c.l.b16 %v1214
        %v1414 = vunpack.c.l.b16 %v1215
        %v1415 = vunpack.c.h.b16 %v1215
        %v1416 = vunpack.c.l.b16 %v1216
        %v1417 = vunpack.c.l.b16 %v1217
        %v1418 = vunpack.c.h.b16 %v1217
        %v1419 = vunpack.c.l.b16 %v1218
        %v1420 = vunpack.c.l.b16 %v1219
        %v1421 = vunpack.c.h.b16 %v1219
        %v1422 = vunpack.c.l.b16 %v1220
        %v1423 = vunpack.c.l.b16 %v1221
        %v1424 = vunpack.c.h.b16 %v1221
        %v1425 = vunpack.c.l.b16 %v1222
        %v1426 = vunpack.c.l.b16 %v1223
        %v1427 = vunpack.c.h.b16 %v1223
        %v1428 = vunpack.c.l.b16 %v1224
        %v1429 = vunpack.c.l.b16 %v1225
        %v1430 = vunpack.c.h.b16 %v1225
        %v1431 = vunpack.c.l.b16 %v1226
        %v1432 = vunpack.c.l.b16 %v1227
        %v1433 = vunpack.c.h.b16 %v1227
        %v1434 = vunpack.c.l.b16 %v1228
        %v1435 = vunpack.c.l.b16 %v1229
        %v1436 = vunpack.c.h.b16 %v1229
        %v1437 = vunpack.c.l.b16 %v1230
        %v1438 = vunpack.c.l.b16 %v1231
        %v1439 = vunpack.c.h.b16 %v1231
        %v1440 = vunpack.c.l.b16 %v1232
        %v1441 = vunpack.c.l.b16 %v1233
        %v1442 = vunpack.c.h.b16 %v1233
        %v1443 = vunpack.c.l.b16 %v1234
        %v1444 = vunpack.c.l.b16 %v1235
        %v1445 = vunpack.c.h.b16 %v1235
        %v1446 = vunpack.c.l.b16 %v1236
        %v1447 = vunpack.c.l.b16 %v1237
        %v1448 = vunpack.c.h.b16 %v1237
        %v1449 = vunpack.c.l.b16 %v1238
        %v1450 = vunpack.c.l.b16 %v1239
        %v1451 = vunpack.c.h.b16 %v1239
        %v1452 = vunpack.c.l.b16 %v1240
        %v1453 = vunpack.c.l.b16 %v1241
        %v1454 = vunpack.c.h.b16 %v1241
        %v1455 = vunpack.c.l.b16 %v1242
        %v1456 = vunpack.c.l.b16 %v1243
        %v1457 = vunpack.c.h.b16 %v1243
        %v1458 = vunpack.c.l.b16 %v1244
        %v1459 = vunpack.c.l.b16 %v1245
        %v1460 = vunpack.c.h.b16 %v1245
        %v1461 = vunpack.c.l.b16 %v1246
        %v1462 = vunpack.c.l.b16 %v1247
        %v1463 = vunpack.c.h.b16 %v1247
        %v1464 = vunpack.c.l.b16 %v1248
        %v1465 = vunpack.c.l.b16 %v1249
        %v1466 = vunpack.c.h.b16 %v1249
        %v1467 = vunpack.c.l.b16 %v1250
        %v1468 = vunpack.c.l.b16 %v1251
        %v1469 = vunpack.c.h.b16 %v1251
        %v1470 = vunpack.c.l.b16 %v1252
        %v1471 = vunpack.c.l.b16 %v1253
        %v1472 = vunpack.c.h.b16 %v1253
        %v1473 = vunpack.c.l.b16 %v1254
        %v1474 = vunpack.c.l.b16 %v1255
        %v1475 = vunpack.c.h.b16 %v1255
        %v1476 = vunpack.c.l.b16 %v1256
        %v1477 = vunpack.c.l.b16 %v1257
        %v1478 = vunpack.c.h.b16 %v1257
        %v1479 = vunpack.c.l.b16 %v1258
        %v1480 = vunpack.c.l.b16 %v1259
        %v1481 = vunpack.c.h.b16 %v1259
        %v1482 = vunpack.c.l.b16 %v1260
        %v1483 = vunpack.c.l.b16 %v1261
        %v1484 = vunpack.c.h.b16 %v1261
        %v1485 = vunpack.c.l.b16 %v1262
        %v1486 = vunpack.c.l.b16 %v1263
        %v1487 = vunpack.c.h.b16 %v1263
        %v1488 = vunpack.c.l.b16 %v1264
        %v1489 = vunpack.c.l.b16 %v1265
        %v1490 = vunpack.c.h.b16 %v1265
        %v1491 = vunpack.c.l.b16 %v1266
        %v1492 = vunpack.c.l.b16 %v1267
        %v1493 = vunpack.c.h.b16 %v1267
        %v1494 = vunpack.c.l.b16 %v1268
        %v1495 = vunpack.c.l.b16 %v1269
        %v1496 = vunpack.c.h.b16 %v1269
        %v1497 = vunpack.c.l.b16 %v1270
        %v1498 = vunpack.c.l.b16 %v1271
        %v1499 = vunpack.c.h.b16 %v1271
        %v1500 = vunpack.c.l.b16 %v1272
        %v1501 = vunpack.c.l.b16 %v1273
        %v1502 = vunpack.c.h.b16 %v1273
        %v1503 = vunpack.c.l.b16 %v1274
        %v1504 = vunpack.c.l.b16 %v1275
        %v1505 = vunpack.c.h.b16 %v1275
        %v1506 = vunpack.c.l.b16 %v1276
        %v1507 = vunpack.c.l.b16 %v1277
        %v1508 = vunpack.c.h.b16 %v1277
        %v1509 = vunpack.c.l.b16 %v1278
        %v1510 = vunpack.c.l.b16 %v1279
        %v1511 = vunpack.c.h.b16 %v1279
        %v1512 = vunpack.c.l.b16 %v1280
        %v1513 = vunpack.c.l.b16 %v1281
        %v1514 = vunpack.c.h.b16 %v1281
        %v1515 = vunpack.c.l.b16 %v1282
        %v1516 = vunpack.c.l.b16 %v1283
        %v1517 = vunpack.c.h.b16 %v1283
        %v1518 = vunpack.c.l.b16 %v1284
        %v1519 = vunpack.c.l.b16 %v1285
        %v1520 = vunpack.c.h.b16 %v1285
        %v1521 = vunpack.c.l.b16 %v1286
        %v1522 = vunpack.c.l.b16 %v1287
        %v1523 = vunpack.c.h.b16 %v1287
        %v1524 = vunpack.c.l.b16 %v1288
        %v1525 = vunpack.c.l.b16 %v1289
        %v1526 = vunpack.c.h.b16 %v1289
        %v1527 = vunpack.c.l.b16 %v1290
        %v1528 = vunpack.c.l.b16 %v1291
        %v1529 = vunpack.c.h.b16 %v1291
        %v1530 = vunpack.c.l.b16 %v1292
        %v1531 = vunpack.c.l.b16 %v1293
        %v1532 = vunpack.c.h.b16 %v1293
        %v1533 = vunpack.c.l.b16 %v1294
        %v1534 = vunpack.c.l.b16 %v1295
        %v1535 = vunpack.c.h.b16 %v1295
        %v1536 = vunpack.c.l.b16 %v1296
        %v1537 = vpack.c.b16 %v1396, %v1393
        %v1538 = vpack.c.b16 %v1397, %v1394
        %v1539 = vpack.c.b16 %v1398, %v1395
        %v1540 = vpack.c.b16 %v1402, %v1399
        %v1541 = vpack.c.b16 %v1403, %v1400
        %v1542 = vpack.c.b16 %v1404, %v1401
        %v1543 = vpack.c.b16 %v1408, %v1405
        %v1544 = vpack.c.b16 %v1409, %v1406
        %v1545 = vpack.c.b16 %v1410, %v1407
        %v1546 = vpack.c.b16 %v1414, %v1411
        %v1547 = vpack.c.b16 %v1415, %v1412
        %v1548 = vpack.c.b16 %v1416, %v1413
        %v1549 = vpack.c.b16 %v1420, %v1417
        %v1550 = vpack.c.b16 %v1421, %v1418
        %v1551 = vpack.c.b16 %v1422, %v1419
        %v1552 = vpack.c.b16 %v1426, %v1423
        %v1553 = vpack.c.b16 %v1427, %v1424
        %v1554 = vpack.c.b16 %v1428, %v1425
        %v1555 = vpack.c.b16 %v1432, %v1429
        %v1556 = vpack.c.b16 %v1433, %v1430
        %v1557 = vpack.c.b16 %v1434, %v1431
        %v1558 = vpack.c.b16 %v1438, %v1435
        %v1559 = vpack.c.b16 %v1439, %v1436
        %v1560 = vpack.c.b16 %v1440, %v1437
        %v1561 = vpack.c.b16 %v1444, %v1441
        %v1562 = vpack.c.b16 %v1445, %v1442
        %v1563 = vpack.c.b16 %v1446, %v1443
        %v1564 = vpack.c.b16 %v1450, %v1447
        %v1565 = vpack.c.b16 %v1451, %v1448
        %v1566 = vpack.c.b16 %v1452, %v1449
        %v1567 = vpack.c.b16 %v1456, %v1453
        %v1568 = vpack.c.b16 %v1457, %v1454
        %v1569 = vpack.c.b16 %v1458, %v1455
        %v1570 = vpack.c.b16 %v1462, %v1459
        %v1571 = vpack.c.b16 %v1463, %v1460
        %v1572 = vpack.c.b16 %v1464, %v1461
        %v1573 = vpack.c.b16 %v1468, %v1465
        %v1574 = vpack.c.b16 %v1469, %v1466
        %v1575 = vpack.c.b16 %v1470, %v1467
        %v1576 = vpack.c.b16 %v1474, %v1471
        %v1577 = vpack.c.b16 %v1475, %v1472
        %v1578 = vpack.c.b16 %v1476, %v1473
        %v1579 = vpack.c.b16 %v1480, %v1477
        %v1580 = vpack.c.b16 %v1481, %v1478
        %v1581 = vpack.c.b16 %v1482, %v1479
        %v1582 = vpack.c.b16 %v1486, %v1483
        %v1583 = vpack.c.b16 %v1487, %v1484
        %v1584 = vpack.c.b16 %v1488, %v1485
        %v1585 = vpack.c.b16 %v1492, %v1489
        %v1586 = vpack.c.b16 %v1493, %v1490
        %v1587 = vpack.c.b16 %v1494, %v1491
        %v1588 = vpack.c.b16 %v1498, %v1495
        %v1589 = vpack.c.b16 %v1499, %v1496
        %v1590 = vpack.c.b16 %v1500, %v1497
        %v1591 = vpack.c.b16 %v1504, %v1501
        %v1592 = vpack.c.b16 %v1505, %v1502
        %v1593 = vpack.c.b16 %v1506, %v1503
        %v1594 = vpack.c.b16 %v1510, %v1507
        %v1595 = vpack.c.b16 %v1511, %v1508
        %v1596 = vpack.c.b16 %v1512, %v1509
        %v1597 = vpack.c.b16 %v1516, %v1513
        %v1598 = vpack.c.b16 %v1517, %v1514
        %v1599 = vpack.c.b16 %v1518, %v1515
        %v1600 = vpack.c.b16 %v1522, %v1519
        %v1601 = vpack.c.b16 %v1523, %v1520
        %v1602 = vpack.c.b16 %v1524, %v1521
        %v1603 = vpack.c.b16 %v1528, %v1525
        %v1604 = vpack.c.b16 %v1529, %v1526
        %v1605 = vpack.c.b16 %v1530, %v1527
        %v1606 = vpack.c.b16 %v1534, %v1531
        %v1607 = vpack.c.b16 %v1535, %v1532
        %v1608 = vpack.c.b16 %v1536, %v1533
        %1681 = vmatpush.bf16.msra.mxu0 %v1558
        %1682 = vmatpush.bf16.msra.mxu0 %v1555
        %1683 = vmatpush.bf16.msra.mxu0 %v1552
        %1684 = vmatpush.bf16.msra.mxu0 %v1549
        %1685 = vmatpush.bf16.msra.mxu0 %v1546
        %1686 = vmatpush.bf16.msra.mxu0 %v1543
        %1687 = vmatpush.bf16.msra.mxu0 %v1540
        %1688 = vmatpush.bf16.msra.mxu0 %v1537
        %1689 = vmatmul.bf16.gmra.mxu0 %v753
        %v1690 = vpop.f32.mrf.mxu0
        %v1691 = vadd.f32 0.0, %v1690
        %v1692 = vpop.f32.mrf.mxu0
        %v1693 = vadd.f32 0.0, %v1692
        %1694 = vmatmul.bf16.gmra.mxu0 %v754
        %v1695 = vpop.f32.mrf.mxu0
        %v1696 = vpop.f32.mrf.mxu0
        %v1697 = vadd.f32 0.0, %v1696
        %1698 = vmatmul.bf16.gmra.mxu0 %v755
        %v1699 = vpop.f32.mrf.mxu0
        %v1700 = vadd.f32 0.0, %v1699
        %v1701 = vpop.f32.mrf.mxu0
        %v1702 = vadd.f32 0.0, %v1701
        %1703 = vmatmul.bf16.gmra.mxu0 %v756
        %v1704 = vpop.f32.mrf.mxu0
        %v1705 = vpop.f32.mrf.mxu0
        %v1706 = vadd.f32 0.0, %v1705
        %1707 = vmatmul.bf16.gmra.mxu0 %v757
        %v1708 = vpop.f32.mrf.mxu0
        %v1709 = vadd.f32 0.0, %v1708
        %v1710 = vpop.f32.mrf.mxu0
        %v1711 = vadd.f32 0.0, %v1710
        %1712 = vmatmul.bf16.gmra.mxu0 %v758
        %v1713 = vpop.f32.mrf.mxu0
        %v1714 = vpop.f32.mrf.mxu0
        %v1715 = vadd.f32 0.0, %v1714
        %1716 = vmatmul.bf16.gmra.mxu0 %v759
        %v1717 = vpop.f32.mrf.mxu0
        %v1718 = vadd.f32 0.0, %v1717
        %v1719 = vpop.f32.mrf.mxu0
        %v1720 = vadd.f32 0.0, %v1719
        %1721 = vmatmul.bf16.gmra.mxu0 %v760
        %v1722 = vpop.f32.mrf.mxu0
        %v1723 = vpop.f32.mrf.mxu0
        %v1724 = vadd.f32 0.0, %v1723
        %1725 = vmatmul.bf16.gmra.mxu0 %v761
        %v1726 = vpop.f32.mrf.mxu0
        %v1727 = vadd.f32 0.0, %v1726
        %v1728 = vpop.f32.mrf.mxu0
        %v1729 = vadd.f32 0.0, %v1728
        %1730 = vmatmul.bf16.gmra.mxu0 %v762
        %v1731 = vpop.f32.mrf.mxu0
        %v1732 = vpop.f32.mrf.mxu0
        %v1733 = vadd.f32 0.0, %v1732
        %1734 = vmatmul.bf16.gmra.mxu0 %v763
        %v1735 = vpop.f32.mrf.mxu0
        %v1736 = vadd.f32 0.0, %v1735
        %v1737 = vpop.f32.mrf.mxu0
        %v1738 = vadd.f32 0.0, %v1737
        %1739 = vmatmul.bf16.gmra.mxu0 %v764
        %v1740 = vpop.f32.mrf.mxu0
        %v1741 = vpop.f32.mrf.mxu0
        %v1742 = vadd.f32 0.0, %v1741
        %1743 = vmatmul.bf16.gmra.mxu0 %v765
        %v1744 = vpop.f32.mrf.mxu0
        %v1745 = vadd.f32 0.0, %v1744
        %v1746 = vpop.f32.mrf.mxu0
        %v1747 = vadd.f32 0.0, %v1746
        %1748 = vmatmul.bf16.gmra.mxu0 %v766
        %v1749 = vpop.f32.mrf.mxu0
        %v1750 = vpop.f32.mrf.mxu0
        %v1751 = vadd.f32 0.0, %v1750
        %1752 = vmatmul.bf16.gmra.mxu0 %v767
        %v1753 = vpop.f32.mrf.mxu0
        %v1754 = vadd.f32 0.0, %v1753
        %v1755 = vpop.f32.mrf.mxu0
        %v1756 = vadd.f32 0.0, %v1755
        %1757 = vmatmul.bf16.gmra.mxu0 %v768
        %v1758 = vpop.f32.mrf.mxu0
        %v1759 = vpop.f32.mrf.mxu0
        %v1760 = vadd.f32 0.0, %v1759
        %1761 = vmatmul.bf16.gmra.mxu0 %v769
        %v1762 = vpop.f32.mrf.mxu0
        %v1763 = vadd.f32 0.0, %v1762
        %v1764 = vpop.f32.mrf.mxu0
        %v1765 = vadd.f32 0.0, %v1764
        %1766 = vmatmul.bf16.gmra.mxu0 %v770
        %v1767 = vpop.f32.mrf.mxu0
        %v1768 = vpop.f32.mrf.mxu0
        %v1769 = vadd.f32 0.0, %v1768
        %1770 = vmatmul.bf16.gmra.mxu0 %v771
        %v1771 = vpop.f32.mrf.mxu0
        %v1772 = vadd.f32 0.0, %v1771
        %v1773 = vpop.f32.mrf.mxu0
        %v1774 = vadd.f32 0.0, %v1773
        %1775 = vmatmul.bf16.gmra.mxu0 %v772
        %v1776 = vpop.f32.mrf.mxu0
        %v1777 = vpop.f32.mrf.mxu0
        %v1778 = vadd.f32 0.0, %v1777
        %1779 = vmatmul.bf16.gmra.mxu0 %v773
        %v1780 = vpop.f32.mrf.mxu0
        %v1781 = vadd.f32 0.0, %v1780
        %v1782 = vpop.f32.mrf.mxu0
        %v1783 = vadd.f32 0.0, %v1782
        %1784 = vmatmul.bf16.gmra.mxu0 %v774
        %v1785 = vpop.f32.mrf.mxu0
        %v1786 = vpop.f32.mrf.mxu0
        %v1787 = vadd.f32 0.0, %v1786
        %1788 = vmatmul.bf16.gmra.mxu0 %v775
        %v1789 = vpop.f32.mrf.mxu0
        %v1790 = vadd.f32 0.0, %v1789
        %v1791 = vpop.f32.mrf.mxu0
        %v1792 = vadd.f32 0.0, %v1791
        %1793 = vmatmul.bf16.gmra.mxu0 %v776
        %v1794 = vpop.f32.mrf.mxu0
        %v1795 = vpop.f32.mrf.mxu0
        %v1796 = vadd.f32 0.0, %v1795
        %1797 = vmatmul.bf16.gmra.mxu0 %v777
        %v1798 = vpop.f32.mrf.mxu0
        %v1799 = vadd.f32 0.0, %v1798
        %v1800 = vpop.f32.mrf.mxu0
        %v1801 = vadd.f32 0.0, %v1800
        %1802 = vmatmul.bf16.gmra.mxu0 %v778
        %v1803 = vpop.f32.mrf.mxu0
        %v1804 = vpop.f32.mrf.mxu0
        %v1805 = vadd.f32 0.0, %v1804
        %1806 = vmatmul.bf16.gmra.mxu0 %v779
        %v1807 = vpop.f32.mrf.mxu0
        %v1808 = vadd.f32 0.0, %v1807
        %v1809 = vpop.f32.mrf.mxu0
        %v1810 = vadd.f32 0.0, %v1809
        %1811 = vmatmul.bf16.gmra.mxu0 %v780
        %v1812 = vpop.f32.mrf.mxu0
        %v1813 = vpop.f32.mrf.mxu0
        %v1814 = vadd.f32 0.0, %v1813
        %1815 = vmatmul.bf16.gmra.mxu0 %v781
        %v1816 = vpop.f32.mrf.mxu0
        %v1817 = vadd.f32 0.0, %v1816
        %v1818 = vpop.f32.mrf.mxu0
        %v1819 = vadd.f32 0.0, %v1818
        %1820 = vmatmul.bf16.gmra.mxu0 %v782
        %v1821 = vpop.f32.mrf.mxu0
        %v1822 = vpop.f32.mrf.mxu0
        %v1823 = vadd.f32 0.0, %v1822
        %1824 = vmatmul.bf16.gmra.mxu0 %v783
        %v1825 = vpop.f32.mrf.mxu0
        %v1826 = vadd.f32 0.0, %v1825
        %v1827 = vpop.f32.mrf.mxu0
        %v1828 = vadd.f32 0.0, %v1827
        %1829 = vmatmul.bf16.gmra.mxu0 %v784
        %v1830 = vpop.f32.mrf.mxu0
        %v1831 = vpop.f32.mrf.mxu0
        %v1832 = vadd.f32 0.0, %v1831
        %1833 = vdwg.mxu0
        %1834 = vmatpush.bf16.msra.mxu0 %v1582
        %1835 = vmatpush.bf16.msra.mxu0 %v1579
        %1836 = vmatpush.bf16.msra.mxu0 %v1576
        %1837 = vmatpush.bf16.msra.mxu0 %v1573
        %1838 = vmatpush.bf16.msra.mxu0 %v1570
        %1839 = vmatpush.bf16.msra.mxu0 %v1567
        %1840 = vmatpush.bf16.msra.mxu0 %v1564
        %1841 = vmatpush.bf16.msra.mxu0 %v1561
        %1842 = vmatmul.bf16.gmra.mxu0 %v945
        %v1843 = vpop.f32.mrf.mxu0
        %v1844 = vadd.f32 %v1691, %v1843
        %v1845 = vpop.f32.mrf.mxu0
        %v1846 = vadd.f32 %v1693, %v1845
        %1847 = vmatmul.bf16.gmra.mxu0 %v946
        %v1848 = vpop.f32.mrf.mxu0
        %v1849 = vpop.f32.mrf.mxu0
        %v1850 = vadd.f32 %v1697, %v1849
        %1851 = vmatmul.bf16.gmra.mxu0 %v947
        %v1852 = vpop.f32.mrf.mxu0
        %v1853 = vadd.f32 %v1700, %v1852
        %v1854 = vpop.f32.mrf.mxu0
        %v1855 = vadd.f32 %v1702, %v1854
        %1856 = vmatmul.bf16.gmra.mxu0 %v948
        %v1857 = vpop.f32.mrf.mxu0
        %v1858 = vpop.f32.mrf.mxu0
        %v1859 = vadd.f32 %v1706, %v1858
        %1860 = vmatmul.bf16.gmra.mxu0 %v949
        %v1861 = vpop.f32.mrf.mxu0
        %v1862 = vadd.f32 %v1709, %v1861
        %v1863 = vpop.f32.mrf.mxu0
        %v1864 = vadd.f32 %v1711, %v1863
        %1865 = vmatmul.bf16.gmra.mxu0 %v950
        %v1866 = vpop.f32.mrf.mxu0
        %v1867 = vpop.f32.mrf.mxu0
        %v1868 = vadd.f32 %v1715, %v1867
        %1869 = vmatmul.bf16.gmra.mxu0 %v951
        %v1870 = vpop.f32.mrf.mxu0
        %v1871 = vadd.f32 %v1718, %v1870
        %v1872 = vpop.f32.mrf.mxu0
        %v1873 = vadd.f32 %v1720, %v1872
        %1874 = vmatmul.bf16.gmra.mxu0 %v952
        %v1875 = vpop.f32.mrf.mxu0
        %v1876 = vpop.f32.mrf.mxu0
        %v1877 = vadd.f32 %v1724, %v1876
        %1878 = vmatmul.bf16.gmra.mxu0 %v953
        %v1879 = vpop.f32.mrf.mxu0
        %v1880 = vadd.f32 %v1727, %v1879
        %v1881 = vpop.f32.mrf.mxu0
        %v1882 = vadd.f32 %v1729, %v1881
        %1883 = vmatmul.bf16.gmra.mxu0 %v954
        %v1884 = vpop.f32.mrf.mxu0
        %v1885 = vpop.f32.mrf.mxu0
        %v1886 = vadd.f32 %v1733, %v1885
        %1887 = vmatmul.bf16.gmra.mxu0 %v955
        %v1888 = vpop.f32.mrf.mxu0
        %v1889 = vadd.f32 %v1736, %v1888
        %v1890 = vpop.f32.mrf.mxu0
        %v1891 = vadd.f32 %v1738, %v1890
        %1892 = vmatmul.bf16.gmra.mxu0 %v956
        %v1893 = vpop.f32.mrf.mxu0
        %v1894 = vpop.f32.mrf.mxu0
        %v1895 = vadd.f32 %v1742, %v1894
        %1896 = vmatmul.bf16.gmra.mxu0 %v957
        %v1897 = vpop.f32.mrf.mxu0
        %v1898 = vadd.f32 %v1745, %v1897
        %v1899 = vpop.f32.mrf.mxu0
        %v1900 = vadd.f32 %v1747, %v1899
        %1901 = vmatmul.bf16.gmra.mxu0 %v958
        %v1902 = vpop.f32.mrf.mxu0
        %v1903 = vpop.f32.mrf.mxu0
        %v1904 = vadd.f32 %v1751, %v1903
        %1905 = vmatmul.bf16.gmra.mxu0 %v959
        %v1906 = vpop.f32.mrf.mxu0
        %v1907 = vadd.f32 %v1754, %v1906
        %v1908 = vpop.f32.mrf.mxu0
        %v1909 = vadd.f32 %v1756, %v1908
        %1910 = vmatmul.bf16.gmra.mxu0 %v960
        %v1911 = vpop.f32.mrf.mxu0
        %v1912 = vpop.f32.mrf.mxu0
        %v1913 = vadd.f32 %v1760, %v1912
        %1914 = vmatmul.bf16.gmra.mxu0 %v961
        %v1915 = vpop.f32.mrf.mxu0
        %v1916 = vadd.f32 %v1763, %v1915
        %v1917 = vpop.f32.mrf.mxu0
        %v1918 = vadd.f32 %v1765, %v1917
        %1919 = vmatmul.bf16.gmra.mxu0 %v962
        %v1920 = vpop.f32.mrf.mxu0
        %v1921 = vpop.f32.mrf.mxu0
        %v1922 = vadd.f32 %v1769, %v1921
        %1923 = vmatmul.bf16.gmra.mxu0 %v963
        %v1924 = vpop.f32.mrf.mxu0
        %v1925 = vadd.f32 %v1772, %v1924
        %v1926 = vpop.f32.mrf.mxu0
        %v1927 = vadd.f32 %v1774, %v1926
        %1928 = vmatmul.bf16.gmra.mxu0 %v964
        %v1929 = vpop.f32.mrf.mxu0
        %v1930 = vpop.f32.mrf.mxu0
        %v1931 = vadd.f32 %v1778, %v1930
        %1932 = vmatmul.bf16.gmra.mxu0 %v965
        %v1933 = vpop.f32.mrf.mxu0
        %v1934 = vadd.f32 %v1781, %v1933
        %v1935 = vpop.f32.mrf.mxu0
        %v1936 = vadd.f32 %v1783, %v1935
        %1937 = vmatmul.bf16.gmra.mxu0 %v966
        %v1938 = vpop.f32.mrf.mxu0
        %v1939 = vpop.f32.mrf.mxu0
        %v1940 = vadd.f32 %v1787, %v1939
        %1941 = vmatmul.bf16.gmra.mxu0 %v967
        %v1942 = vpop.f32.mrf.mxu0
        %v1943 = vadd.f32 %v1790, %v1942
        %v1944 = vpop.f32.mrf.mxu0
        %v1945 = vadd.f32 %v1792, %v1944
        %1946 = vmatmul.bf16.gmra.mxu0 %v968
        %v1947 = vpop.f32.mrf.mxu0
        %v1948 = vpop.f32.mrf.mxu0
        %v1949 = vadd.f32 %v1796, %v1948
        %1950 = vmatmul.bf16.gmra.mxu0 %v969
        %v1951 = vpop.f32.mrf.mxu0
        %v1952 = vadd.f32 %v1799, %v1951
        %v1953 = vpop.f32.mrf.mxu0
        %v1954 = vadd.f32 %v1801, %v1953
        %1955 = vmatmul.bf16.gmra.mxu0 %v970
        %v1956 = vpop.f32.mrf.mxu0
        %v1957 = vpop.f32.mrf.mxu0
        %v1958 = vadd.f32 %v1805, %v1957
        %1959 = vmatmul.bf16.gmra.mxu0 %v971
        %v1960 = vpop.f32.mrf.mxu0
        %v1961 = vadd.f32 %v1808, %v1960
        %v1962 = vpop.f32.mrf.mxu0
        %v1963 = vadd.f32 %v1810, %v1962
        %1964 = vmatmul.bf16.gmra.mxu0 %v972
        %v1965 = vpop.f32.mrf.mxu0
        %v1966 = vpop.f32.mrf.mxu0
        %v1967 = vadd.f32 %v1814, %v1966
        %1968 = vmatmul.bf16.gmra.mxu0 %v973
        %v1969 = vpop.f32.mrf.mxu0
        %v1970 = vadd.f32 %v1817, %v1969
        %v1971 = vpop.f32.mrf.mxu0
        %v1972 = vadd.f32 %v1819, %v1971
        %1973 = vmatmul.bf16.gmra.mxu0 %v974
        %v1974 = vpop.f32.mrf.mxu0
        %v1975 = vpop.f32.mrf.mxu0
        %v1976 = vadd.f32 %v1823, %v1975
        %1977 = vmatmul.bf16.gmra.mxu0 %v975
        %v1978 = vpop.f32.mrf.mxu0
        %v1979 = vadd.f32 %v1826, %v1978
        %v1980 = vpop.f32.mrf.mxu0
        %v1981 = vadd.f32 %v1828, %v1980
        %1982 = vmatmul.bf16.gmra.mxu0 %v976
        %v1983 = vpop.f32.mrf.mxu0
        %v1984 = vpop.f32.mrf.mxu0
        %v1985 = vadd.f32 %v1832, %v1984
        %1986 = vdwg.mxu0
        %1987 = vmatpush.bf16.msra.mxu0 %v1606
        %1988 = vmatpush.bf16.msra.mxu0 %v1603
        %1989 = vmatpush.bf16.msra.mxu0 %v1600
        %1990 = vmatpush.bf16.msra.mxu0 %v1597
        %1991 = vmatpush.bf16.msra.mxu0 %v1594
        %1992 = vmatpush.bf16.msra.mxu0 %v1591
        %1993 = vmatpush.bf16.msra.mxu0 %v1588
        %1994 = vmatpush.bf16.msra.mxu0 %v1585
        %1995 = vmatmul.bf16.gmra.mxu0 %v1137
        %v1996 = vpop.f32.mrf.mxu0
        %v1997 = vadd.f32 %v1844, %v1996
        %v1998 = vpop.f32.mrf.mxu0
        %v1999 = vadd.f32 %v1846, %v1998
        %2000 = vmatmul.bf16.gmra.mxu0 %v1138
        %v2001 = vpop.f32.mrf.mxu0
        %v2002 = vpop.f32.mrf.mxu0
        %v2003 = vadd.f32 %v1850, %v2002
        %2004 = vmatmul.bf16.gmra.mxu0 %v1139
        %v2005 = vpop.f32.mrf.mxu0
        %v2006 = vadd.f32 %v1853, %v2005
        %v2007 = vpop.f32.mrf.mxu0
        %v2008 = vadd.f32 %v1855, %v2007
        %2009 = vmatmul.bf16.gmra.mxu0 %v1140
        %v2010 = vpop.f32.mrf.mxu0
        %v2011 = vpop.f32.mrf.mxu0
        %v2012 = vadd.f32 %v1859, %v2011
        %2013 = vmatmul.bf16.gmra.mxu0 %v1141
        %v2014 = vpop.f32.mrf.mxu0
        %v2015 = vadd.f32 %v1862, %v2014
        %v2016 = vpop.f32.mrf.mxu0
        %v2017 = vadd.f32 %v1864, %v2016
        %2018 = vmatmul.bf16.gmra.mxu0 %v1142
        %v2019 = vpop.f32.mrf.mxu0
        %v2020 = vpop.f32.mrf.mxu0
        %v2021 = vadd.f32 %v1868, %v2020
        %2022 = vmatmul.bf16.gmra.mxu0 %v1143
        %v2023 = vpop.f32.mrf.mxu0
        %v2024 = vadd.f32 %v1871, %v2023
        %v2025 = vpop.f32.mrf.mxu0
        %v2026 = vadd.f32 %v1873, %v2025
        %2027 = vmatmul.bf16.gmra.mxu0 %v1144
        %v2028 = vpop.f32.mrf.mxu0
        %v2029 = vpop.f32.mrf.mxu0
        %v2030 = vadd.f32 %v1877, %v2029
        %2031 = vmatmul.bf16.gmra.mxu0 %v1145
        %v2032 = vpop.f32.mrf.mxu0
        %v2033 = vadd.f32 %v1880, %v2032
        %v2034 = vpop.f32.mrf.mxu0
        %v2035 = vadd.f32 %v1882, %v2034
        %2036 = vmatmul.bf16.gmra.mxu0 %v1146
        %v2037 = vpop.f32.mrf.mxu0
        %v2038 = vpop.f32.mrf.mxu0
        %v2039 = vadd.f32 %v1886, %v2038
        %2040 = vmatmul.bf16.gmra.mxu0 %v1147
        %v2041 = vpop.f32.mrf.mxu0
        %v2042 = vadd.f32 %v1889, %v2041
        %v2043 = vpop.f32.mrf.mxu0
        %v2044 = vadd.f32 %v1891, %v2043
        %2045 = vmatmul.bf16.gmra.mxu0 %v1148
        %v2046 = vpop.f32.mrf.mxu0
        %v2047 = vpop.f32.mrf.mxu0
        %v2048 = vadd.f32 %v1895, %v2047
        %2049 = vmatmul.bf16.gmra.mxu0 %v1149
        %v2050 = vpop.f32.mrf.mxu0
        %v2051 = vadd.f32 %v1898, %v2050
        %v2052 = vpop.f32.mrf.mxu0
        %v2053 = vadd.f32 %v1900, %v2052
        %2054 = vmatmul.bf16.gmra.mxu0 %v1150
        %v2055 = vpop.f32.mrf.mxu0
        %v2056 = vpop.f32.mrf.mxu0
        %v2057 = vadd.f32 %v1904, %v2056
        %2058 = vmatmul.bf16.gmra.mxu0 %v1151
        %v2059 = vpop.f32.mrf.mxu0
        %v2060 = vadd.f32 %v1907, %v2059
        %v2061 = vpop.f32.mrf.mxu0
        %v2062 = vadd.f32 %v1909, %v2061
        %2063 = vmatmul.bf16.gmra.mxu0 %v1152
        %v2064 = vpop.f32.mrf.mxu0
        %v2065 = vpop.f32.mrf.mxu0
        %v2066 = vadd.f32 %v1913, %v2065
        %2067 = vmatmul.bf16.gmra.mxu0 %v1153
        %v2068 = vpop.f32.mrf.mxu0
        %v2069 = vadd.f32 %v1916, %v2068
        %v2070 = vpop.f32.mrf.mxu0
        %v2071 = vadd.f32 %v1918, %v2070
        %2072 = vmatmul.bf16.gmra.mxu0 %v1154
        %v2073 = vpop.f32.mrf.mxu0
        %v2074 = vpop.f32.mrf.mxu0
        %v2075 = vadd.f32 %v1922, %v2074
        %2076 = vmatmul.bf16.gmra.mxu0 %v1155
        %v2077 = vpop.f32.mrf.mxu0
        %v2078 = vadd.f32 %v1925, %v2077
        %v2079 = vpop.f32.mrf.mxu0
        %v2080 = vadd.f32 %v1927, %v2079
        %2081 = vmatmul.bf16.gmra.mxu0 %v1156
        %v2082 = vpop.f32.mrf.mxu0
        %v2083 = vpop.f32.mrf.mxu0
        %v2084 = vadd.f32 %v1931, %v2083
        %2085 = vmatmul.bf16.gmra.mxu0 %v1157
        %v2086 = vpop.f32.mrf.mxu0
        %v2087 = vadd.f32 %v1934, %v2086
        %v2088 = vpop.f32.mrf.mxu0
        %v2089 = vadd.f32 %v1936, %v2088
        %2090 = vmatmul.bf16.gmra.mxu0 %v1158
        %v2091 = vpop.f32.mrf.mxu0
        %v2092 = vpop.f32.mrf.mxu0
        %v2093 = vadd.f32 %v1940, %v2092
        %2094 = vmatmul.bf16.gmra.mxu0 %v1159
        %v2095 = vpop.f32.mrf.mxu0
        %v2096 = vadd.f32 %v1943, %v2095
        %v2097 = vpop.f32.mrf.mxu0
        %v2098 = vadd.f32 %v1945, %v2097
        %2099 = vmatmul.bf16.gmra.mxu0 %v1160
        %v2100 = vpop.f32.mrf.mxu0
        %v2101 = vpop.f32.mrf.mxu0
        %v2102 = vadd.f32 %v1949, %v2101
        %2103 = vmatmul.bf16.gmra.mxu0 %v1161
        %v2104 = vpop.f32.mrf.mxu0
        %v2105 = vadd.f32 %v1952, %v2104
        %v2106 = vpop.f32.mrf.mxu0
        %v2107 = vadd.f32 %v1954, %v2106
        %2108 = vmatmul.bf16.gmra.mxu0 %v1162
        %v2109 = vpop.f32.mrf.mxu0
        %v2110 = vpop.f32.mrf.mxu0
        %v2111 = vadd.f32 %v1958, %v2110
        %2112 = vmatmul.bf16.gmra.mxu0 %v1163
        %v2113 = vpop.f32.mrf.mxu0
        %v2114 = vadd.f32 %v1961, %v2113
        %v2115 = vpop.f32.mrf.mxu0
        %v2116 = vadd.f32 %v1963, %v2115
        %2117 = vmatmul.bf16.gmra.mxu0 %v1164
        %v2118 = vpop.f32.mrf.mxu0
        %v2119 = vpop.f32.mrf.mxu0
        %v2120 = vadd.f32 %v1967, %v2119
        %2121 = vmatmul.bf16.gmra.mxu0 %v1165
        %v2122 = vpop.f32.mrf.mxu0
        %v2123 = vadd.f32 %v1970, %v2122
        %v2124 = vpop.f32.mrf.mxu0
        %v2125 = vadd.f32 %v1972, %v2124
        %2126 = vmatmul.bf16.gmra.mxu0 %v1166
        %v2127 = vpop.f32.mrf.mxu0
        %v2128 = vpop.f32.mrf.mxu0
        %v2129 = vadd.f32 %v1976, %v2128
        %2130 = vmatmul.bf16.gmra.mxu0 %v1167
        %v2131 = vpop.f32.mrf.mxu0
        %v2132 = vadd.f32 %v1979, %v2131
        %v2133 = vpop.f32.mrf.mxu0
        %v2134 = vadd.f32 %v1981, %v2133
        %2135 = vmatmul.bf16.gmra.mxu0 %v1168
        %v2136 = vpop.f32.mrf.mxu0
        %v2137 = vpop.f32.mrf.mxu0
        %v2138 = vadd.f32 %v1985, %v2137
        %2139 = vdwg.mxu0
        %2140 = vmatpush.bf16.msra.mxu0 %v1559
        %2141 = vmatpush.bf16.msra.mxu0 %v1556
        %2142 = vmatpush.bf16.msra.mxu0 %v1553
        %2143 = vmatpush.bf16.msra.mxu0 %v1550
        %2144 = vmatpush.bf16.msra.mxu0 %v1547
        %2145 = vmatpush.bf16.msra.mxu0 %v1544
        %2146 = vmatpush.bf16.msra.mxu0 %v1541
        %2147 = vmatpush.bf16.msra.mxu0 %v1538
        %2148 = vmatmul.bf16.gmra.mxu0 %v753
        %v2149 = vpop.f32.mrf.mxu0
        %v2150 = vadd.f32 0.0, %v2149
        %v2151 = vpop.f32.mrf.mxu0
        %v2152 = vadd.f32 0.0, %v2151
        %2153 = vmatmul.bf16.gmra.mxu0 %v754
        %v2154 = vpop.f32.mrf.mxu0
        %v2155 = vpop.f32.mrf.mxu0
        %2156 = vmatmul.bf16.gmra.mxu0 %v755
        %v2157 = vpop.f32.mrf.mxu0
        %v2158 = vadd.f32 0.0, %v2157
        %v2159 = vpop.f32.mrf.mxu0
        %v2160 = vadd.f32 0.0, %v2159
        %2161 = vmatmul.bf16.gmra.mxu0 %v756
        %v2162 = vpop.f32.mrf.mxu0
        %v2163 = vpop.f32.mrf.mxu0
        %2164 = vmatmul.bf16.gmra.mxu0 %v757
        %v2165 = vpop.f32.mrf.mxu0
        %v2166 = vadd.f32 0.0, %v2165
        %v2167 = vpop.f32.mrf.mxu0
        %v2168 = vadd.f32 0.0, %v2167
        %2169 = vmatmul.bf16.gmra.mxu0 %v758
        %v2170 = vpop.f32.mrf.mxu0
        %v2171 = vpop.f32.mrf.mxu0
        %2172 = vmatmul.bf16.gmra.mxu0 %v759
        %v2173 = vpop.f32.mrf.mxu0
        %v2174 = vadd.f32 0.0, %v2173
        %v2175 = vpop.f32.mrf.mxu0
        %v2176 = vadd.f32 0.0, %v2175
        %2177 = vmatmul.bf16.gmra.mxu0 %v760
        %v2178 = vpop.f32.mrf.mxu0
        %v2179 = vpop.f32.mrf.mxu0
        %2180 = vmatmul.bf16.gmra.mxu0 %v761
        %v2181 = vpop.f32.mrf.mxu0
        %v2182 = vadd.f32 0.0, %v2181
        %v2183 = vpop.f32.mrf.mxu0
        %v2184 = vadd.f32 0.0, %v2183
        %2185 = vmatmul.bf16.gmra.mxu0 %v762
        %v2186 = vpop.f32.mrf.mxu0
        %v2187 = vpop.f32.mrf.mxu0
        %2188 = vmatmul.bf16.gmra.mxu0 %v763
        %v2189 = vpop.f32.mrf.mxu0
        %v2190 = vadd.f32 0.0, %v2189
        %v2191 = vpop.f32.mrf.mxu0
        %v2192 = vadd.f32 0.0, %v2191
        %2193 = vmatmul.bf16.gmra.mxu0 %v764
        %v2194 = vpop.f32.mrf.mxu0
        %v2195 = vpop.f32.mrf.mxu0
        %2196 = vmatmul.bf16.gmra.mxu0 %v765
        %v2197 = vpop.f32.mrf.mxu0
        %v2198 = vadd.f32 0.0, %v2197
        %v2199 = vpop.f32.mrf.mxu0
        %v2200 = vadd.f32 0.0, %v2199
        %2201 = vmatmul.bf16.gmra.mxu0 %v766
        %v2202 = vpop.f32.mrf.mxu0
        %v2203 = vpop.f32.mrf.mxu0
        %2204 = vmatmul.bf16.gmra.mxu0 %v767
        %v2205 = vpop.f32.mrf.mxu0
        %v2206 = vadd.f32 0.0, %v2205
        %v2207 = vpop.f32.mrf.mxu0
        %v2208 = vadd.f32 0.0, %v2207
        %2209 = vmatmul.bf16.gmra.mxu0 %v768
        %v2210 = vpop.f32.mrf.mxu0
        %v2211 = vpop.f32.mrf.mxu0
        %2212 = vmatmul.bf16.gmra.mxu0 %v769
        %v2213 = vpop.f32.mrf.mxu0
        %v2214 = vadd.f32 0.0, %v2213
        %v2215 = vpop.f32.mrf.mxu0
        %v2216 = vadd.f32 0.0, %v2215
        %2217 = vmatmul.bf16.gmra.mxu0 %v770
        %v2218 = vpop.f32.mrf.mxu0
        %v2219 = vpop.f32.mrf.mxu0
        %2220 = vmatmul.bf16.gmra.mxu0 %v771
        %v2221 = vpop.f32.mrf.mxu0
        %v2222 = vadd.f32 0.0, %v2221
        %v2223 = vpop.f32.mrf.mxu0
        %v2224 = vadd.f32 0.0, %v2223
        %2225 = vmatmul.bf16.gmra.mxu0 %v772
        %v2226 = vpop.f32.mrf.mxu0
        %v2227 = vpop.f32.mrf.mxu0
        %2228 = vmatmul.bf16.gmra.mxu0 %v773
        %v2229 = vpop.f32.mrf.mxu0
        %v2230 = vadd.f32 0.0, %v2229
        %v2231 = vpop.f32.mrf.mxu0
        %v2232 = vadd.f32 0.0, %v2231
        %2233 = vmatmul.bf16.gmra.mxu0 %v774
        %v2234 = vpop.f32.mrf.mxu0
        %v2235 = vpop.f32.mrf.mxu0
        %2236 = vmatmul.bf16.gmra.mxu0 %v775
        %v2237 = vpop.f32.mrf.mxu0
        %v2238 = vadd.f32 0.0, %v2237
        %v2239 = vpop.f32.mrf.mxu0
        %v2240 = vadd.f32 0.0, %v2239
        %2241 = vmatmul.bf16.gmra.mxu0 %v776
        %v2242 = vpop.f32.mrf.mxu0
        %v2243 = vpop.f32.mrf.mxu0
        %2244 = vmatmul.bf16.gmra.mxu0 %v777
        %v2245 = vpop.f32.mrf.mxu0
        %v2246 = vadd.f32 0.0, %v2245
        %v2247 = vpop.f32.mrf.mxu0
        %v2248 = vadd.f32 0.0, %v2247
        %2249 = vmatmul.bf16.gmra.mxu0 %v778
        %v2250 = vpop.f32.mrf.mxu0
        %v2251 = vpop.f32.mrf.mxu0
        %2252 = vmatmul.bf16.gmra.mxu0 %v779
        %v2253 = vpop.f32.mrf.mxu0
        %v2254 = vadd.f32 0.0, %v2253
        %v2255 = vpop.f32.mrf.mxu0
        %v2256 = vadd.f32 0.0, %v2255
        %2257 = vmatmul.bf16.gmra.mxu0 %v780
        %v2258 = vpop.f32.mrf.mxu0
        %v2259 = vpop.f32.mrf.mxu0
        %2260 = vmatmul.bf16.gmra.mxu0 %v781
        %v2261 = vpop.f32.mrf.mxu0
        %v2262 = vadd.f32 0.0, %v2261
        %v2263 = vpop.f32.mrf.mxu0
        %v2264 = vadd.f32 0.0, %v2263
        %2265 = vmatmul.bf16.gmra.mxu0 %v782
        %v2266 = vpop.f32.mrf.mxu0
        %v2267 = vpop.f32.mrf.mxu0
        %2268 = vmatmul.bf16.gmra.mxu0 %v783
        %v2269 = vpop.f32.mrf.mxu0
        %v2270 = vadd.f32 0.0, %v2269
        %v2271 = vpop.f32.mrf.mxu0
        %v2272 = vadd.f32 0.0, %v2271
        %2273 = vmatmul.bf16.gmra.mxu0 %v784
        %v2274 = vpop.f32.mrf.mxu0
        %v2275 = vpop.f32.mrf.mxu0
        %2276 = vdwg.mxu0
        %2277 = vmatpush.bf16.msra.mxu0 %v1583
        %2278 = vmatpush.bf16.msra.mxu0 %v1580
        %2279 = vmatpush.bf16.msra.mxu0 %v1577
        %2280 = vmatpush.bf16.msra.mxu0 %v1574
        %2281 = vmatpush.bf16.msra.mxu0 %v1571
        %2282 = vmatpush.bf16.msra.mxu0 %v1568
        %2283 = vmatpush.bf16.msra.mxu0 %v1565
        %2284 = vmatpush.bf16.msra.mxu0 %v1562
        %2285 = vmatmul.bf16.gmra.mxu0 %v945
        %v2286 = vpop.f32.mrf.mxu0
        %v2287 = vadd.f32 %v2150, %v2286
        %v2288 = vpop.f32.mrf.mxu0
        %v2289 = vadd.f32 %v2152, %v2288
        %2290 = vmatmul.bf16.gmra.mxu0 %v946
        %v2291 = vpop.f32.mrf.mxu0
        %v2292 = vpop.f32.mrf.mxu0
        %2293 = vmatmul.bf16.gmra.mxu0 %v947
        %v2294 = vpop.f32.mrf.mxu0
        %v2295 = vadd.f32 %v2158, %v2294
        %v2296 = vpop.f32.mrf.mxu0
        %v2297 = vadd.f32 %v2160, %v2296
        %2298 = vmatmul.bf16.gmra.mxu0 %v948
        %v2299 = vpop.f32.mrf.mxu0
        %v2300 = vpop.f32.mrf.mxu0
        %2301 = vmatmul.bf16.gmra.mxu0 %v949
        %v2302 = vpop.f32.mrf.mxu0
        %v2303 = vadd.f32 %v2166, %v2302
        %v2304 = vpop.f32.mrf.mxu0
        %v2305 = vadd.f32 %v2168, %v2304
        %2306 = vmatmul.bf16.gmra.mxu0 %v950
        %v2307 = vpop.f32.mrf.mxu0
        %v2308 = vpop.f32.mrf.mxu0
        %2309 = vmatmul.bf16.gmra.mxu0 %v951
        %v2310 = vpop.f32.mrf.mxu0
        %v2311 = vadd.f32 %v2174, %v2310
        %v2312 = vpop.f32.mrf.mxu0
        %v2313 = vadd.f32 %v2176, %v2312
        %2314 = vmatmul.bf16.gmra.mxu0 %v952
        %v2315 = vpop.f32.mrf.mxu0
        %v2316 = vpop.f32.mrf.mxu0
        %2317 = vmatmul.bf16.gmra.mxu0 %v953
        %v2318 = vpop.f32.mrf.mxu0
        %v2319 = vadd.f32 %v2182, %v2318
        %v2320 = vpop.f32.mrf.mxu0
        %v2321 = vadd.f32 %v2184, %v2320
        %2322 = vmatmul.bf16.gmra.mxu0 %v954
        %v2323 = vpop.f32.mrf.mxu0
        %v2324 = vpop.f32.mrf.mxu0
        %2325 = vmatmul.bf16.gmra.mxu0 %v955
        %v2326 = vpop.f32.mrf.mxu0
        %v2327 = vadd.f32 %v2190, %v2326
        %v2328 = vpop.f32.mrf.mxu0
        %v2329 = vadd.f32 %v2192, %v2328
        %2330 = vmatmul.bf16.gmra.mxu0 %v956
        %v2331 = vpop.f32.mrf.mxu0
        %v2332 = vpop.f32.mrf.mxu0
        %2333 = vmatmul.bf16.gmra.mxu0 %v957
        %v2334 = vpop.f32.mrf.mxu0
        %v2335 = vadd.f32 %v2198, %v2334
        %v2336 = vpop.f32.mrf.mxu0
        %v2337 = vadd.f32 %v2200, %v2336
        %2338 = vmatmul.bf16.gmra.mxu0 %v958
        %v2339 = vpop.f32.mrf.mxu0
        %v2340 = vpop.f32.mrf.mxu0
        %2341 = vmatmul.bf16.gmra.mxu0 %v959
        %v2342 = vpop.f32.mrf.mxu0
        %v2343 = vadd.f32 %v2206, %v2342
        %v2344 = vpop.f32.mrf.mxu0
        %v2345 = vadd.f32 %v2208, %v2344
        %2346 = vmatmul.bf16.gmra.mxu0 %v960
        %v2347 = vpop.f32.mrf.mxu0
        %v2348 = vpop.f32.mrf.mxu0
        %2349 = vmatmul.bf16.gmra.mxu0 %v961
        %v2350 = vpop.f32.mrf.mxu0
        %v2351 = vadd.f32 %v2214, %v2350
        %v2352 = vpop.f32.mrf.mxu0
        %v2353 = vadd.f32 %v2216, %v2352
        %2354 = vmatmul.bf16.gmra.mxu0 %v962
        %v2355 = vpop.f32.mrf.mxu0
        %v2356 = vpop.f32.mrf.mxu0
        %2357 = vmatmul.bf16.gmra.mxu0 %v963
        %v2358 = vpop.f32.mrf.mxu0
        %v2359 = vadd.f32 %v2222, %v2358
        %v2360 = vpop.f32.mrf.mxu0
        %v2361 = vadd.f32 %v2224, %v2360
        %2362 = vmatmul.bf16.gmra.mxu0 %v964
        %v2363 = vpop.f32.mrf.mxu0
        %v2364 = vpop.f32.mrf.mxu0
        %2365 = vmatmul.bf16.gmra.mxu0 %v965
        %v2366 = vpop.f32.mrf.mxu0
        %v2367 = vadd.f32 %v2230, %v2366
        %v2368 = vpop.f32.mrf.mxu0
        %v2369 = vadd.f32 %v2232, %v2368
        %2370 = vmatmul.bf16.gmra.mxu0 %v966
        %v2371 = vpop.f32.mrf.mxu0
        %v2372 = vpop.f32.mrf.mxu0
        %2373 = vmatmul.bf16.gmra.mxu0 %v967
        %v2374 = vpop.f32.mrf.mxu0
        %v2375 = vadd.f32 %v2238, %v2374
        %v2376 = vpop.f32.mrf.mxu0
        %v2377 = vadd.f32 %v2240, %v2376
        %2378 = vmatmul.bf16.gmra.mxu0 %v968
        %v2379 = vpop.f32.mrf.mxu0
        %v2380 = vpop.f32.mrf.mxu0
        %2381 = vmatmul.bf16.gmra.mxu0 %v969
        %v2382 = vpop.f32.mrf.mxu0
        %v2383 = vadd.f32 %v2246, %v2382
        %v2384 = vpop.f32.mrf.mxu0
        %v2385 = vadd.f32 %v2248, %v2384
        %2386 = vmatmul.bf16.gmra.mxu0 %v970
        %v2387 = vpop.f32.mrf.mxu0
        %v2388 = vpop.f32.mrf.mxu0
        %2389 = vmatmul.bf16.gmra.mxu0 %v971
        %v2390 = vpop.f32.mrf.mxu0
        %v2391 = vadd.f32 %v2254, %v2390
        %v2392 = vpop.f32.mrf.mxu0
        %v2393 = vadd.f32 %v2256, %v2392
        %2394 = vmatmul.bf16.gmra.mxu0 %v972
        %v2395 = vpop.f32.mrf.mxu0
        %v2396 = vpop.f32.mrf.mxu0
        %2397 = vmatmul.bf16.gmra.mxu0 %v973
        %v2398 = vpop.f32.mrf.mxu0
        %v2399 = vadd.f32 %v2262, %v2398
        %v2400 = vpop.f32.mrf.mxu0
        %v2401 = vadd.f32 %v2264, %v2400
        %2402 = vmatmul.bf16.gmra.mxu0 %v974
        %v2403 = vpop.f32.mrf.mxu0
        %v2404 = vpop.f32.mrf.mxu0
        %2405 = vmatmul.bf16.gmra.mxu0 %v975
        %v2406 = vpop.f32.mrf.mxu0
        %v2407 = vadd.f32 %v2270, %v2406
        %v2408 = vpop.f32.mrf.mxu0
        %v2409 = vadd.f32 %v2272, %v2408
        %2410 = vmatmul.bf16.gmra.mxu0 %v976
        %v2411 = vpop.f32.mrf.mxu0
        %v2412 = vpop.f32.mrf.mxu0
        %2413 = vdwg.mxu0
        %2414 = vmatpush.bf16.msra.mxu0 %v1607
        %2415 = vmatpush.bf16.msra.mxu0 %v1604
        %2416 = vmatpush.bf16.msra.mxu0 %v1601
        %2417 = vmatpush.bf16.msra.mxu0 %v1598
        %2418 = vmatpush.bf16.msra.mxu0 %v1595
        %2419 = vmatpush.bf16.msra.mxu0 %v1592
        %2420 = vmatpush.bf16.msra.mxu0 %v1589
        %2421 = vmatpush.bf16.msra.mxu0 %v1586
        %2422 = vmatmul.bf16.gmra.mxu0 %v1137
        %v2423 = vpop.f32.mrf.mxu0
        %v2424 = vadd.f32 %v2287, %v2423
        %v2425 = vpop.f32.mrf.mxu0
        %v2426 = vadd.f32 %v2289, %v2425
        %2427 = vmatmul.bf16.gmra.mxu0 %v1138
        %v2428 = vpop.f32.mrf.mxu0
        %v2429 = vpop.f32.mrf.mxu0
        %2430 = vmatmul.bf16.gmra.mxu0 %v1139
        %v2431 = vpop.f32.mrf.mxu0
        %v2432 = vadd.f32 %v2295, %v2431
        %v2433 = vpop.f32.mrf.mxu0
        %v2434 = vadd.f32 %v2297, %v2433
        %2435 = vmatmul.bf16.gmra.mxu0 %v1140
        %v2436 = vpop.f32.mrf.mxu0
        %v2437 = vpop.f32.mrf.mxu0
        %2438 = vmatmul.bf16.gmra.mxu0 %v1141
        %v2439 = vpop.f32.mrf.mxu0
        %v2440 = vadd.f32 %v2303, %v2439
        %v2441 = vpop.f32.mrf.mxu0
        %v2442 = vadd.f32 %v2305, %v2441
        %2443 = vmatmul.bf16.gmra.mxu0 %v1142
        %v2444 = vpop.f32.mrf.mxu0
        %v2445 = vpop.f32.mrf.mxu0
        %2446 = vmatmul.bf16.gmra.mxu0 %v1143
        %v2447 = vpop.f32.mrf.mxu0
        %v2448 = vadd.f32 %v2311, %v2447
        %v2449 = vpop.f32.mrf.mxu0
        %v2450 = vadd.f32 %v2313, %v2449
        %2451 = vmatmul.bf16.gmra.mxu0 %v1144
        %v2452 = vpop.f32.mrf.mxu0
        %v2453 = vpop.f32.mrf.mxu0
        %2454 = vmatmul.bf16.gmra.mxu0 %v1145
        %v2455 = vpop.f32.mrf.mxu0
        %v2456 = vadd.f32 %v2319, %v2455
        %v2457 = vpop.f32.mrf.mxu0
        %v2458 = vadd.f32 %v2321, %v2457
        %2459 = vmatmul.bf16.gmra.mxu0 %v1146
        %v2460 = vpop.f32.mrf.mxu0
        %v2461 = vpop.f32.mrf.mxu0
        %2462 = vmatmul.bf16.gmra.mxu0 %v1147
        %v2463 = vpop.f32.mrf.mxu0
        %v2464 = vadd.f32 %v2327, %v2463
        %v2465 = vpop.f32.mrf.mxu0
        %v2466 = vadd.f32 %v2329, %v2465
        %2467 = vmatmul.bf16.gmra.mxu0 %v1148
        %v2468 = vpop.f32.mrf.mxu0
        %v2469 = vpop.f32.mrf.mxu0
        %2470 = vmatmul.bf16.gmra.mxu0 %v1149
        %v2471 = vpop.f32.mrf.mxu0
        %v2472 = vadd.f32 %v2335, %v2471
        %v2473 = vpop.f32.mrf.mxu0
        %v2474 = vadd.f32 %v2337, %v2473
        %2475 = vmatmul.bf16.gmra.mxu0 %v1150
        %v2476 = vpop.f32.mrf.mxu0
        %v2477 = vpop.f32.mrf.mxu0
        %2478 = vmatmul.bf16.gmra.mxu0 %v1151
        %v2479 = vpop.f32.mrf.mxu0
        %v2480 = vadd.f32 %v2343, %v2479
        %v2481 = vpop.f32.mrf.mxu0
        %v2482 = vadd.f32 %v2345, %v2481
        %2483 = vmatmul.bf16.gmra.mxu0 %v1152
        %v2484 = vpop.f32.mrf.mxu0
        %v2485 = vpop.f32.mrf.mxu0
        %2486 = vmatmul.bf16.gmra.mxu0 %v1153
        %v2487 = vpop.f32.mrf.mxu0
        %v2488 = vadd.f32 %v2351, %v2487
        %v2489 = vpop.f32.mrf.mxu0
        %v2490 = vadd.f32 %v2353, %v2489
        %2491 = vmatmul.bf16.gmra.mxu0 %v1154
        %v2492 = vpop.f32.mrf.mxu0
        %v2493 = vpop.f32.mrf.mxu0
        %2494 = vmatmul.bf16.gmra.mxu0 %v1155
        %v2495 = vpop.f32.mrf.mxu0
        %v2496 = vadd.f32 %v2359, %v2495
        %v2497 = vpop.f32.mrf.mxu0
        %v2498 = vadd.f32 %v2361, %v2497
        %2499 = vmatmul.bf16.gmra.mxu0 %v1156
        %v2500 = vpop.f32.mrf.mxu0
        %v2501 = vpop.f32.mrf.mxu0
        %2502 = vmatmul.bf16.gmra.mxu0 %v1157
        %v2503 = vpop.f32.mrf.mxu0
        %v2504 = vadd.f32 %v2367, %v2503
        %v2505 = vpop.f32.mrf.mxu0
        %v2506 = vadd.f32 %v2369, %v2505
        %2507 = vmatmul.bf16.gmra.mxu0 %v1158
        %v2508 = vpop.f32.mrf.mxu0
        %v2509 = vpop.f32.mrf.mxu0
        %2510 = vmatmul.bf16.gmra.mxu0 %v1159
        %v2511 = vpop.f32.mrf.mxu0
        %v2512 = vadd.f32 %v2375, %v2511
        %v2513 = vpop.f32.mrf.mxu0
        %v2514 = vadd.f32 %v2377, %v2513
        %2515 = vmatmul.bf16.gmra.mxu0 %v1160
        %v2516 = vpop.f32.mrf.mxu0
        %v2517 = vpop.f32.mrf.mxu0
        %2518 = vmatmul.bf16.gmra.mxu0 %v1161
        %v2519 = vpop.f32.mrf.mxu0
        %v2520 = vadd.f32 %v2383, %v2519
        %v2521 = vpop.f32.mrf.mxu0
        %v2522 = vadd.f32 %v2385, %v2521
        %2523 = vmatmul.bf16.gmra.mxu0 %v1162
        %v2524 = vpop.f32.mrf.mxu0
        %v2525 = vpop.f32.mrf.mxu0
        %2526 = vmatmul.bf16.gmra.mxu0 %v1163
        %v2527 = vpop.f32.mrf.mxu0
        %v2528 = vadd.f32 %v2391, %v2527
        %v2529 = vpop.f32.mrf.mxu0
        %v2530 = vadd.f32 %v2393, %v2529
        %2531 = vmatmul.bf16.gmra.mxu0 %v1164
        %v2532 = vpop.f32.mrf.mxu0
        %v2533 = vpop.f32.mrf.mxu0
        %2534 = vmatmul.bf16.gmra.mxu0 %v1165
        %v2535 = vpop.f32.mrf.mxu0
        %v2536 = vadd.f32 %v2399, %v2535
        %v2537 = vpop.f32.mrf.mxu0
        %v2538 = vadd.f32 %v2401, %v2537
        %2539 = vmatmul.bf16.gmra.mxu0 %v1166
        %v2540 = vpop.f32.mrf.mxu0
        %v2541 = vpop.f32.mrf.mxu0
        %2542 = vmatmul.bf16.gmra.mxu0 %v1167
        %v2543 = vpop.f32.mrf.mxu0
        %v2544 = vadd.f32 %v2407, %v2543
        %v2545 = vpop.f32.mrf.mxu0
        %v2546 = vadd.f32 %v2409, %v2545
        %2547 = vmatmul.bf16.gmra.mxu0 %v1168
        %v2548 = vpop.f32.mrf.mxu0
        %v2549 = vpop.f32.mrf.mxu0
        %2550 = vdwg.mxu0
        %2551 = vmatpush.bf16.msra.mxu0 %v1560
        %2552 = vmatpush.bf16.msra.mxu0 %v1557
        %2553 = vmatpush.bf16.msra.mxu0 %v1554
        %2554 = vmatpush.bf16.msra.mxu0 %v1551
        %2555 = vmatpush.bf16.msra.mxu0 %v1548
        %2556 = vmatpush.bf16.msra.mxu0 %v1545
        %2557 = vmatpush.bf16.msra.mxu0 %v1542
        %2558 = vmatpush.bf16.msra.mxu0 %v1539
        %2559 = vmatmul.bf16.gmra.mxu0 %v753
        %v2560 = vpop.f32.mrf.mxu0
        %v2561 = vadd.f32 0.0, %v2560
        %v2562 = vpop.f32.mrf.mxu0
        %v2563 = vadd.f32 0.0, %v2562
        %2564 = vmatmul.bf16.gmra.mxu0 %v754
        %v2565 = vpop.f32.mrf.mxu0
        %v2566 = vadd.f32 0.0, %v2565
        %v2567 = vpop.f32.mrf.mxu0
        %2568 = vmatmul.bf16.gmra.mxu0 %v755
        %v2569 = vpop.f32.mrf.mxu0
        %v2570 = vadd.f32 0.0, %v2569
        %v2571 = vpop.f32.mrf.mxu0
        %v2572 = vadd.f32 0.0, %v2571
        %2573 = vmatmul.bf16.gmra.mxu0 %v756
        %v2574 = vpop.f32.mrf.mxu0
        %v2575 = vadd.f32 0.0, %v2574
        %v2576 = vpop.f32.mrf.mxu0
        %2577 = vmatmul.bf16.gmra.mxu0 %v757
        %v2578 = vpop.f32.mrf.mxu0
        %v2579 = vadd.f32 0.0, %v2578
        %v2580 = vpop.f32.mrf.mxu0
        %v2581 = vadd.f32 0.0, %v2580
        %2582 = vmatmul.bf16.gmra.mxu0 %v758
        %v2583 = vpop.f32.mrf.mxu0
        %v2584 = vadd.f32 0.0, %v2583
        %v2585 = vpop.f32.mrf.mxu0
        %2586 = vmatmul.bf16.gmra.mxu0 %v759
        %v2587 = vpop.f32.mrf.mxu0
        %v2588 = vadd.f32 0.0, %v2587
        %v2589 = vpop.f32.mrf.mxu0
        %v2590 = vadd.f32 0.0, %v2589
        %2591 = vmatmul.bf16.gmra.mxu0 %v760
        %v2592 = vpop.f32.mrf.mxu0
        %v2593 = vadd.f32 0.0, %v2592
        %v2594 = vpop.f32.mrf.mxu0
        %2595 = vmatmul.bf16.gmra.mxu0 %v761
        %v2596 = vpop.f32.mrf.mxu0
        %v2597 = vadd.f32 0.0, %v2596
        %v2598 = vpop.f32.mrf.mxu0
        %v2599 = vadd.f32 0.0, %v2598
        %2600 = vmatmul.bf16.gmra.mxu0 %v762
        %v2601 = vpop.f32.mrf.mxu0
        %v2602 = vadd.f32 0.0, %v2601
        %v2603 = vpop.f32.mrf.mxu0
        %2604 = vmatmul.bf16.gmra.mxu0 %v763
        %v2605 = vpop.f32.mrf.mxu0
        %v2606 = vadd.f32 0.0, %v2605
        %v2607 = vpop.f32.mrf.mxu0
        %v2608 = vadd.f32 0.0, %v2607
        %2609 = vmatmul.bf16.gmra.mxu0 %v764
        %v2610 = vpop.f32.mrf.mxu0
        %v2611 = vadd.f32 0.0, %v2610
        %v2612 = vpop.f32.mrf.mxu0
        %2613 = vmatmul.bf16.gmra.mxu0 %v765
        %v2614 = vpop.f32.mrf.mxu0
        %v2615 = vadd.f32 0.0, %v2614
        %v2616 = vpop.f32.mrf.mxu0
        %v2617 = vadd.f32 0.0, %v2616
        %2618 = vmatmul.bf16.gmra.mxu0 %v766
        %v2619 = vpop.f32.mrf.mxu0
        %v2620 = vadd.f32 0.0, %v2619
        %v2621 = vpop.f32.mrf.mxu0
        %2622 = vmatmul.bf16.gmra.mxu0 %v767
        %v2623 = vpop.f32.mrf.mxu0
        %v2624 = vadd.f32 0.0, %v2623
        %v2625 = vpop.f32.mrf.mxu0
        %v2626 = vadd.f32 0.0, %v2625
        %2627 = vmatmul.bf16.gmra.mxu0 %v768
        %v2628 = vpop.f32.mrf.mxu0
        %v2629 = vadd.f32 0.0, %v2628
        %v2630 = vpop.f32.mrf.mxu0
        %2631 = vmatmul.bf16.gmra.mxu0 %v769
        %v2632 = vpop.f32.mrf.mxu0
        %v2633 = vadd.f32 0.0, %v2632
        %v2634 = vpop.f32.mrf.mxu0
        %v2635 = vadd.f32 0.0, %v2634
        %2636 = vmatmul.bf16.gmra.mxu0 %v770
        %v2637 = vpop.f32.mrf.mxu0
        %v2638 = vadd.f32 0.0, %v2637
        %v2639 = vpop.f32.mrf.mxu0
        %2640 = vmatmul.bf16.gmra.mxu0 %v771
        %v2641 = vpop.f32.mrf.mxu0
        %v2642 = vadd.f32 0.0, %v2641
        %v2643 = vpop.f32.mrf.mxu0
        %v2644 = vadd.f32 0.0, %v2643
        %2645 = vmatmul.bf16.gmra.mxu0 %v772
        %v2646 = vpop.f32.mrf.mxu0
        %v2647 = vadd.f32 0.0, %v2646
        %v2648 = vpop.f32.mrf.mxu0
        %2649 = vmatmul.bf16.gmra.mxu0 %v773
        %v2650 = vpop.f32.mrf.mxu0
        %v2651 = vadd.f32 0.0, %v2650
        %v2652 = vpop.f32.mrf.mxu0
        %v2653 = vadd.f32 0.0, %v2652
        %2654 = vmatmul.bf16.gmra.mxu0 %v774
        %v2655 = vpop.f32.mrf.mxu0
        %v2656 = vadd.f32 0.0, %v2655
        %v2657 = vpop.f32.mrf.mxu0
        %2658 = vmatmul.bf16.gmra.mxu0 %v775
        %v2659 = vpop.f32.mrf.mxu0
        %v2660 = vadd.f32 0.0, %v2659
        %v2661 = vpop.f32.mrf.mxu0
        %v2662 = vadd.f32 0.0, %v2661
        %2663 = vmatmul.bf16.gmra.mxu0 %v776
        %v2664 = vpop.f32.mrf.mxu0
        %v2665 = vadd.f32 0.0, %v2664
        %v2666 = vpop.f32.mrf.mxu0
        %2667 = vmatmul.bf16.gmra.mxu0 %v777
        %v2668 = vpop.f32.mrf.mxu0
        %v2669 = vadd.f32 0.0, %v2668
        %v2670 = vpop.f32.mrf.mxu0
        %v2671 = vadd.f32 0.0, %v2670
        %2672 = vmatmul.bf16.gmra.mxu0 %v778
        %v2673 = vpop.f32.mrf.mxu0
        %v2674 = vadd.f32 0.0, %v2673
        %v2675 = vpop.f32.mrf.mxu0
        %2676 = vmatmul.bf16.gmra.mxu0 %v779
        %v2677 = vpop.f32.mrf.mxu0
        %v2678 = vadd.f32 0.0, %v2677
        %v2679 = vpop.f32.mrf.mxu0
        %v2680 = vadd.f32 0.0, %v2679
        %2681 = vmatmul.bf16.gmra.mxu0 %v780
        %v2682 = vpop.f32.mrf.mxu0
        %v2683 = vadd.f32 0.0, %v2682
        %v2684 = vpop.f32.mrf.mxu0
        %2685 = vmatmul.bf16.gmra.mxu0 %v781
        %v2686 = vpop.f32.mrf.mxu0
        %v2687 = vadd.f32 0.0, %v2686
        %v2688 = vpop.f32.mrf.mxu0
        %v2689 = vadd.f32 0.0, %v2688
        %2690 = vmatmul.bf16.gmra.mxu0 %v782
        %v2691 = vpop.f32.mrf.mxu0
        %v2692 = vadd.f32 0.0, %v2691
        %v2693 = vpop.f32.mrf.mxu0
        %2694 = vmatmul.bf16.gmra.mxu0 %v783
        %v2695 = vpop.f32.mrf.mxu0
        %v2696 = vadd.f32 0.0, %v2695
        %v2697 = vpop.f32.mrf.mxu0
        %v2698 = vadd.f32 0.0, %v2697
        %2699 = vmatmul.bf16.gmra.mxu0 %v784
        %v2700 = vpop.f32.mrf.mxu0
        %v2701 = vadd.f32 0.0, %v2700
        %v2702 = vpop.f32.mrf.mxu0
        %2703 = vdwg.mxu0
        %2704 = vmatpush.bf16.msra.mxu0 %v1584
        %2705 = vmatpush.bf16.msra.mxu0 %v1581
        %2706 = vmatpush.bf16.msra.mxu0 %v1578
        %2707 = vmatpush.bf16.msra.mxu0 %v1575
        %2708 = vmatpush.bf16.msra.mxu0 %v1572
        %2709 = vmatpush.bf16.msra.mxu0 %v1569
        %2710 = vmatpush.bf16.msra.mxu0 %v1566
        %2711 = vmatpush.bf16.msra.mxu0 %v1563
        %2712 = vmatmul.bf16.gmra.mxu0 %v945
        %v2713 = vpop.f32.mrf.mxu0
        %v2714 = vadd.f32 %v2561, %v2713
        %v2715 = vpop.f32.mrf.mxu0
        %v2716 = vadd.f32 %v2563, %v2715
        %2717 = vmatmul.bf16.gmra.mxu0 %v946
        %v2718 = vpop.f32.mrf.mxu0
        %v2719 = vadd.f32 %v2566, %v2718
        %v2720 = vpop.f32.mrf.mxu0
        %2721 = vmatmul.bf16.gmra.mxu0 %v947
        %v2722 = vpop.f32.mrf.mxu0
        %v2723 = vadd.f32 %v2570, %v2722
        %v2724 = vpop.f32.mrf.mxu0
        %v2725 = vadd.f32 %v2572, %v2724
        %2726 = vmatmul.bf16.gmra.mxu0 %v948
        %v2727 = vpop.f32.mrf.mxu0
        %v2728 = vadd.f32 %v2575, %v2727
        %v2729 = vpop.f32.mrf.mxu0
        %2730 = vmatmul.bf16.gmra.mxu0 %v949
        %v2731 = vpop.f32.mrf.mxu0
        %v2732 = vadd.f32 %v2579, %v2731
        %v2733 = vpop.f32.mrf.mxu0
        %v2734 = vadd.f32 %v2581, %v2733
        %2735 = vmatmul.bf16.gmra.mxu0 %v950
        %v2736 = vpop.f32.mrf.mxu0
        %v2737 = vadd.f32 %v2584, %v2736
        %v2738 = vpop.f32.mrf.mxu0
        %2739 = vmatmul.bf16.gmra.mxu0 %v951
        %v2740 = vpop.f32.mrf.mxu0
        %v2741 = vadd.f32 %v2588, %v2740
        %v2742 = vpop.f32.mrf.mxu0
        %v2743 = vadd.f32 %v2590, %v2742
        %2744 = vmatmul.bf16.gmra.mxu0 %v952
        %v2745 = vpop.f32.mrf.mxu0
        %v2746 = vadd.f32 %v2593, %v2745
        %v2747 = vpop.f32.mrf.mxu0
        %2748 = vmatmul.bf16.gmra.mxu0 %v953
        %v2749 = vpop.f32.mrf.mxu0
        %v2750 = vadd.f32 %v2597, %v2749
        %v2751 = vpop.f32.mrf.mxu0
        %v2752 = vadd.f32 %v2599, %v2751
        %2753 = vmatmul.bf16.gmra.mxu0 %v954
        %v2754 = vpop.f32.mrf.mxu0
        %v2755 = vadd.f32 %v2602, %v2754
        %v2756 = vpop.f32.mrf.mxu0
        %2757 = vmatmul.bf16.gmra.mxu0 %v955
        %v2758 = vpop.f32.mrf.mxu0
        %v2759 = vadd.f32 %v2606, %v2758
        %v2760 = vpop.f32.mrf.mxu0
        %v2761 = vadd.f32 %v2608, %v2760
        %2762 = vmatmul.bf16.gmra.mxu0 %v956
        %v2763 = vpop.f32.mrf.mxu0
        %v2764 = vadd.f32 %v2611, %v2763
        %v2765 = vpop.f32.mrf.mxu0
        %2766 = vmatmul.bf16.gmra.mxu0 %v957
        %v2767 = vpop.f32.mrf.mxu0
        %v2768 = vadd.f32 %v2615, %v2767
        %v2769 = vpop.f32.mrf.mxu0
        %v2770 = vadd.f32 %v2617, %v2769
        %2771 = vmatmul.bf16.gmra.mxu0 %v958
        %v2772 = vpop.f32.mrf.mxu0
        %v2773 = vadd.f32 %v2620, %v2772
        %v2774 = vpop.f32.mrf.mxu0
        %2775 = vmatmul.bf16.gmra.mxu0 %v959
        %v2776 = vpop.f32.mrf.mxu0
        %v2777 = vadd.f32 %v2624, %v2776
        %v2778 = vpop.f32.mrf.mxu0
        %v2779 = vadd.f32 %v2626, %v2778
        %2780 = vmatmul.bf16.gmra.mxu0 %v960
        %v2781 = vpop.f32.mrf.mxu0
        %v2782 = vadd.f32 %v2629, %v2781
        %v2783 = vpop.f32.mrf.mxu0
        %2784 = vmatmul.bf16.gmra.mxu0 %v961
        %v2785 = vpop.f32.mrf.mxu0
        %v2786 = vadd.f32 %v2633, %v2785
        %v2787 = vpop.f32.mrf.mxu0
        %v2788 = vadd.f32 %v2635, %v2787
        %2789 = vmatmul.bf16.gmra.mxu0 %v962
        %v2790 = vpop.f32.mrf.mxu0
        %v2791 = vadd.f32 %v2638, %v2790
        %v2792 = vpop.f32.mrf.mxu0
        %2793 = vmatmul.bf16.gmra.mxu0 %v963
        %v2794 = vpop.f32.mrf.mxu0
        %v2795 = vadd.f32 %v2642, %v2794
        %v2796 = vpop.f32.mrf.mxu0
        %v2797 = vadd.f32 %v2644, %v2796
        %2798 = vmatmul.bf16.gmra.mxu0 %v964
        %v2799 = vpop.f32.mrf.mxu0
        %v2800 = vadd.f32 %v2647, %v2799
        %v2801 = vpop.f32.mrf.mxu0
        %2802 = vmatmul.bf16.gmra.mxu0 %v965
        %v2803 = vpop.f32.mrf.mxu0
        %v2804 = vadd.f32 %v2651, %v2803
        %v2805 = vpop.f32.mrf.mxu0
        %v2806 = vadd.f32 %v2653, %v2805
        %2807 = vmatmul.bf16.gmra.mxu0 %v966
        %v2808 = vpop.f32.mrf.mxu0
        %v2809 = vadd.f32 %v2656, %v2808
        %v2810 = vpop.f32.mrf.mxu0
        %2811 = vmatmul.bf16.gmra.mxu0 %v967
        %v2812 = vpop.f32.mrf.mxu0
        %v2813 = vadd.f32 %v2660, %v2812
        %v2814 = vpop.f32.mrf.mxu0
        %v2815 = vadd.f32 %v2662, %v2814
        %2816 = vmatmul.bf16.gmra.mxu0 %v968
        %v2817 = vpop.f32.mrf.mxu0
        %v2818 = vadd.f32 %v2665, %v2817
        %v2819 = vpop.f32.mrf.mxu0
        %2820 = vmatmul.bf16.gmra.mxu0 %v969
        %v2821 = vpop.f32.mrf.mxu0
        %v2822 = vadd.f32 %v2669, %v2821
        %v2823 = vpop.f32.mrf.mxu0
        %v2824 = vadd.f32 %v2671, %v2823
        %2825 = vmatmul.bf16.gmra.mxu0 %v970
        %v2826 = vpop.f32.mrf.mxu0
        %v2827 = vadd.f32 %v2674, %v2826
        %v2828 = vpop.f32.mrf.mxu0
        %2829 = vmatmul.bf16.gmra.mxu0 %v971
        %v2830 = vpop.f32.mrf.mxu0
        %v2831 = vadd.f32 %v2678, %v2830
        %v2832 = vpop.f32.mrf.mxu0
        %v2833 = vadd.f32 %v2680, %v2832
        %2834 = vmatmul.bf16.gmra.mxu0 %v972
        %v2835 = vpop.f32.mrf.mxu0
        %v2836 = vadd.f32 %v2683, %v2835
        %v2837 = vpop.f32.mrf.mxu0
        %2838 = vmatmul.bf16.gmra.mxu0 %v973
        %v2839 = vpop.f32.mrf.mxu0
        %v2840 = vadd.f32 %v2687, %v2839
        %v2841 = vpop.f32.mrf.mxu0
        %v2842 = vadd.f32 %v2689, %v2841
        %2843 = vmatmul.bf16.gmra.mxu0 %v974
        %v2844 = vpop.f32.mrf.mxu0
        %v2845 = vadd.f32 %v2692, %v2844
        %v2846 = vpop.f32.mrf.mxu0
        %2847 = vmatmul.bf16.gmra.mxu0 %v975
        %v2848 = vpop.f32.mrf.mxu0
        %v2849 = vadd.f32 %v2696, %v2848
        %v2850 = vpop.f32.mrf.mxu0
        %v2851 = vadd.f32 %v2698, %v2850
        %2852 = vmatmul.bf16.gmra.mxu0 %v976
        %v2853 = vpop.f32.mrf.mxu0
        %v2854 = vadd.f32 %v2701, %v2853
        %v2855 = vpop.f32.mrf.mxu0
        %2856 = vdwg.mxu0
        %2857 = vmatpush.bf16.msra.mxu0 %v1608
        %2858 = vmatpush.bf16.msra.mxu0 %v1605
        %2859 = vmatpush.bf16.msra.mxu0 %v1602
        %2860 = vmatpush.bf16.msra.mxu0 %v1599
        %2861 = vmatpush.bf16.msra.mxu0 %v1596
        %2862 = vmatpush.bf16.msra.mxu0 %v1593
        %2863 = vmatpush.bf16.msra.mxu0 %v1590
        %2864 = vmatpush.bf16.msra.mxu0 %v1587
        %2865 = vmatmul.bf16.gmra.mxu0 %v1137
        %v2866 = vpop.f32.mrf.mxu0
        %v2867 = vadd.f32 %v2714, %v2866
        %v2868 = vpop.f32.mrf.mxu0
        %v2869 = vadd.f32 %v2716, %v2868
        %2870 = vmatmul.bf16.gmra.mxu0 %v1138
        %v2871 = vpop.f32.mrf.mxu0
        %v2872 = vadd.f32 %v2719, %v2871
        %v2873 = vpop.f32.mrf.mxu0
        %2874 = vmatmul.bf16.gmra.mxu0 %v1139
        %v2875 = vpop.f32.mrf.mxu0
        %v2876 = vadd.f32 %v2723, %v2875
        %v2877 = vpop.f32.mrf.mxu0
        %v2878 = vadd.f32 %v2725, %v2877
        %2879 = vmatmul.bf16.gmra.mxu0 %v1140
        %v2880 = vpop.f32.mrf.mxu0
        %v2881 = vadd.f32 %v2728, %v2880
        %v2882 = vpop.f32.mrf.mxu0
        %2883 = vmatmul.bf16.gmra.mxu0 %v1141
        %v2884 = vpop.f32.mrf.mxu0
        %v2885 = vadd.f32 %v2732, %v2884
        %v2886 = vpop.f32.mrf.mxu0
        %v2887 = vadd.f32 %v2734, %v2886
        %2888 = vmatmul.bf16.gmra.mxu0 %v1142
        %v2889 = vpop.f32.mrf.mxu0
        %v2890 = vadd.f32 %v2737, %v2889
        %v2891 = vpop.f32.mrf.mxu0
        %2892 = vmatmul.bf16.gmra.mxu0 %v1143
        %v2893 = vpop.f32.mrf.mxu0
        %v2894 = vadd.f32 %v2741, %v2893
        %v2895 = vpop.f32.mrf.mxu0
        %v2896 = vadd.f32 %v2743, %v2895
        %2897 = vmatmul.bf16.gmra.mxu0 %v1144
        %v2898 = vpop.f32.mrf.mxu0
        %v2899 = vadd.f32 %v2746, %v2898
        %v2900 = vpop.f32.mrf.mxu0
        %2901 = vmatmul.bf16.gmra.mxu0 %v1145
        %v2902 = vpop.f32.mrf.mxu0
        %v2903 = vadd.f32 %v2750, %v2902
        %v2904 = vpop.f32.mrf.mxu0
        %v2905 = vadd.f32 %v2752, %v2904
        %2906 = vmatmul.bf16.gmra.mxu0 %v1146
        %v2907 = vpop.f32.mrf.mxu0
        %v2908 = vadd.f32 %v2755, %v2907
        %v2909 = vpop.f32.mrf.mxu0
        %2910 = vmatmul.bf16.gmra.mxu0 %v1147
        %v2911 = vpop.f32.mrf.mxu0
        %v2912 = vadd.f32 %v2759, %v2911
        %v2913 = vpop.f32.mrf.mxu0
        %v2914 = vadd.f32 %v2761, %v2913
        %2915 = vmatmul.bf16.gmra.mxu0 %v1148
        %v2916 = vpop.f32.mrf.mxu0
        %v2917 = vadd.f32 %v2764, %v2916
        %v2918 = vpop.f32.mrf.mxu0
        %2919 = vmatmul.bf16.gmra.mxu0 %v1149
        %v2920 = vpop.f32.mrf.mxu0
        %v2921 = vadd.f32 %v2768, %v2920
        %v2922 = vpop.f32.mrf.mxu0
        %v2923 = vadd.f32 %v2770, %v2922
        %2924 = vmatmul.bf16.gmra.mxu0 %v1150
        %v2925 = vpop.f32.mrf.mxu0
        %v2926 = vadd.f32 %v2773, %v2925
        %v2927 = vpop.f32.mrf.mxu0
        %2928 = vmatmul.bf16.gmra.mxu0 %v1151
        %v2929 = vpop.f32.mrf.mxu0
        %v2930 = vadd.f32 %v2777, %v2929
        %v2931 = vpop.f32.mrf.mxu0
        %v2932 = vadd.f32 %v2779, %v2931
        %2933 = vmatmul.bf16.gmra.mxu0 %v1152
        %v2934 = vpop.f32.mrf.mxu0
        %v2935 = vadd.f32 %v2782, %v2934
        %v2936 = vpop.f32.mrf.mxu0
        %2937 = vmatmul.bf16.gmra.mxu0 %v1153
        %v2938 = vpop.f32.mrf.mxu0
        %v2939 = vadd.f32 %v2786, %v2938
        %v2940 = vpop.f32.mrf.mxu0
        %v2941 = vadd.f32 %v2788, %v2940
        %2942 = vmatmul.bf16.gmra.mxu0 %v1154
        %v2943 = vpop.f32.mrf.mxu0
        %v2944 = vadd.f32 %v2791, %v2943
        %v2945 = vpop.f32.mrf.mxu0
        %2946 = vmatmul.bf16.gmra.mxu0 %v1155
        %v2947 = vpop.f32.mrf.mxu0
        %v2948 = vadd.f32 %v2795, %v2947
        %v2949 = vpop.f32.mrf.mxu0
        %v2950 = vadd.f32 %v2797, %v2949
        %2951 = vmatmul.bf16.gmra.mxu0 %v1156
        %v2952 = vpop.f32.mrf.mxu0
        %v2953 = vadd.f32 %v2800, %v2952
        %v2954 = vpop.f32.mrf.mxu0
        %2955 = vmatmul.bf16.gmra.mxu0 %v1157
        %v2956 = vpop.f32.mrf.mxu0
        %v2957 = vadd.f32 %v2804, %v2956
        %v2958 = vpop.f32.mrf.mxu0
        %v2959 = vadd.f32 %v2806, %v2958
        %2960 = vmatmul.bf16.gmra.mxu0 %v1158
        %v2961 = vpop.f32.mrf.mxu0
        %v2962 = vadd.f32 %v2809, %v2961
        %v2963 = vpop.f32.mrf.mxu0
        %2964 = vmatmul.bf16.gmra.mxu0 %v1159
        %v2965 = vpop.f32.mrf.mxu0
        %v2966 = vadd.f32 %v2813, %v2965
        %v2967 = vpop.f32.mrf.mxu0
        %v2968 = vadd.f32 %v2815, %v2967
        %2969 = vmatmul.bf16.gmra.mxu0 %v1160
        %v2970 = vpop.f32.mrf.mxu0
        %v2971 = vadd.f32 %v2818, %v2970
        %v2972 = vpop.f32.mrf.mxu0
        %2973 = vmatmul.bf16.gmra.mxu0 %v1161
        %v2974 = vpop.f32.mrf.mxu0
        %v2975 = vadd.f32 %v2822, %v2974
        %v2976 = vpop.f32.mrf.mxu0
        %v2977 = vadd.f32 %v2824, %v2976
        %2978 = vmatmul.bf16.gmra.mxu0 %v1162
        %v2979 = vpop.f32.mrf.mxu0
        %v2980 = vadd.f32 %v2827, %v2979
        %v2981 = vpop.f32.mrf.mxu0
        %2982 = vmatmul.bf16.gmra.mxu0 %v1163
        %v2983 = vpop.f32.mrf.mxu0
        %v2984 = vadd.f32 %v2831, %v2983
        %v2985 = vpop.f32.mrf.mxu0
        %v2986 = vadd.f32 %v2833, %v2985
        %2987 = vmatmul.bf16.gmra.mxu0 %v1164
        %v2988 = vpop.f32.mrf.mxu0
        %v2989 = vadd.f32 %v2836, %v2988
        %v2990 = vpop.f32.mrf.mxu0
        %2991 = vmatmul.bf16.gmra.mxu0 %v1165
        %v2992 = vpop.f32.mrf.mxu0
        %v2993 = vadd.f32 %v2840, %v2992
        %v2994 = vpop.f32.mrf.mxu0
        %v2995 = vadd.f32 %v2842, %v2994
        %2996 = vmatmul.bf16.gmra.mxu0 %v1166
        %v2997 = vpop.f32.mrf.mxu0
        %v2998 = vadd.f32 %v2845, %v2997
        %v2999 = vpop.f32.mrf.mxu0
        %3000 = vmatmul.bf16.gmra.mxu0 %v1167
        %v3001 = vpop.f32.mrf.mxu0
        %v3002 = vadd.f32 %v2849, %v3001
        %v3003 = vpop.f32.mrf.mxu0
        %v3004 = vadd.f32 %v2851, %v3003
        %3005 = vmatmul.bf16.gmra.mxu0 %v1168
        %v3006 = vpop.f32.mrf.mxu0
        %v3007 = vadd.f32 %v2854, %v3006
        %v3008 = vpop.f32.mrf.mxu0
        %3009 = vdwg.mxu0
        %v3010 = vrot.slane %v1997, 7
        %v3011 = vrot.slane %v1999, 7
        %v3012 = vrot.slane %v2003, 7
        %v3013 = vrot.slane %v2006, 7
        %v3014 = vrot.slane %v2008, 7
        %v3015 = vrot.slane %v2012, 7
        %v3016 = vrot.slane %v2015, 7
        %v3017 = vrot.slane %v2017, 7
        %v3018 = vrot.slane %v2021, 7
        %v3019 = vrot.slane %v2024, 7
        %v3020 = vrot.slane %v2026, 7
        %v3021 = vrot.slane %v2030, 7
        %v3022 = vrot.slane %v2033, 7
        %v3023 = vrot.slane %v2035, 7
        %v3024 = vrot.slane %v2039, 7
        %v3025 = vrot.slane %v2042, 7
        %v3026 = vrot.slane %v2044, 7
        %v3027 = vrot.slane %v2048, 7
        %v3028 = vrot.slane %v2051, 7
        %v3029 = vrot.slane %v2053, 7
        %v3030 = vrot.slane %v2057, 7
        %v3031 = vrot.slane %v2060, 7
        %v3032 = vrot.slane %v2062, 7
        %v3033 = vrot.slane %v2066, 7
        %v3034 = vrot.slane %v2069, 7
        %v3035 = vrot.slane %v2071, 7
        %v3036 = vrot.slane %v2075, 7
        %v3037 = vrot.slane %v2078, 7
        %v3038 = vrot.slane %v2080, 7
        %v3039 = vrot.slane %v2084, 7
        %v3040 = vrot.slane %v2087, 7
        %v3041 = vrot.slane %v2089, 7
        %v3042 = vrot.slane %v2093, 7
        %v3043 = vrot.slane %v2096, 7
        %v3044 = vrot.slane %v2098, 7
        %v3045 = vrot.slane %v2102, 7
        %v3046 = vrot.slane %v2105, 7
        %v3047 = vrot.slane %v2107, 7
        %v3048 = vrot.slane %v2111, 7
        %v3049 = vrot.slane %v2114, 7
        %v3050 = vrot.slane %v2116, 7
        %v3051 = vrot.slane %v2120, 7
        %v3052 = vrot.slane %v2123, 7
        %v3053 = vrot.slane %v2125, 7
        %v3054 = vrot.slane %v2129, 7
        %v3055 = vrot.slane %v2132, 7
        %v3056 = vrot.slane %v2134, 7
        %v3057 = vrot.slane %v2138, 7
        %v3058 = vlaneseq
        %v3059 = vshrl.u32 %v3058, 7
        %vm3060 = vcmp.lt.s32.totalorder %v3059, 1
        %v3061 = vsel %vm3060, %v3055, %v3056
        %v3062 = vsel %vm3060, %v3054, %v3055
        %v3063 = vsel %vm3060, %v3052, %v3053
        %v3064 = vsel %vm3060, %v3051, %v3052
        %v3065 = vsel %vm3060, %v3049, %v3050
        %v3066 = vsel %vm3060, %v3048, %v3049
        %v3067 = vsel %vm3060, %v3046, %v3047
        %v3068 = vsel %vm3060, %v3045, %v3046
        %v3069 = vsel %vm3060, %v3043, %v3044
        %v3070 = vsel %vm3060, %v3042, %v3043
        %v3071 = vsel %vm3060, %v3040, %v3041
        %v3072 = vsel %vm3060, %v3039, %v3040
        %v3073 = vsel %vm3060, %v3037, %v3038
        %v3074 = vsel %vm3060, %v3036, %v3037
        %v3075 = vsel %vm3060, %v3034, %v3035
        %v3076 = vsel %vm3060, %v3033, %v3034
        %v3077 = vsel %vm3060, %v3031, %v3032
        %v3078 = vsel %vm3060, %v3030, %v3031
        %v3079 = vsel %vm3060, %v3028, %v3029
        %v3080 = vsel %vm3060, %v3027, %v3028
        %v3081 = vsel %vm3060, %v3025, %v3026
        %v3082 = vsel %vm3060, %v3024, %v3025
        %v3083 = vsel %vm3060, %v3022, %v3023
        %v3084 = vsel %vm3060, %v3021, %v3022
        %v3085 = vsel %vm3060, %v3019, %v3020
        %v3086 = vsel %vm3060, %v3018, %v3019
        %v3087 = vsel %vm3060, %v3016, %v3017
        %v3088 = vsel %vm3060, %v3015, %v3016
        %v3089 = vsel %vm3060, %v3013, %v3014
        %v3090 = vsel %vm3060, %v3012, %v3013
        %v3091 = vsel %vm3060, %v3010, %v3011
        %v3092 = vsel %vm3060, %v3057, %v3010
        %v3093 = vadd.f32 %v2424, %v3092
        %v3094 = vadd.f32 %v2426, %v3091
        %v3095 = vadd.f32 %v2432, %v3090
        %v3096 = vadd.f32 %v2434, %v3089
        %v3097 = vadd.f32 %v2440, %v3088
        %v3098 = vadd.f32 %v2442, %v3087
        %v3099 = vadd.f32 %v2448, %v3086
        %v3100 = vadd.f32 %v2450, %v3085
        %v3101 = vadd.f32 %v2456, %v3084
        %v3102 = vadd.f32 %v2458, %v3083
        %v3103 = vadd.f32 %v2464, %v3082
        %v3104 = vadd.f32 %v2466, %v3081
        %v3105 = vadd.f32 %v2472, %v3080
        %v3106 = vadd.f32 %v2474, %v3079
        %v3107 = vadd.f32 %v2480, %v3078
        %v3108 = vadd.f32 %v2482, %v3077
        %v3109 = vadd.f32 %v2488, %v3076
        %v3110 = vadd.f32 %v2490, %v3075
        %v3111 = vadd.f32 %v2496, %v3074
        %v3112 = vadd.f32 %v2498, %v3073
        %v3113 = vadd.f32 %v2504, %v3072
        %v3114 = vadd.f32 %v2506, %v3071
        %v3115 = vadd.f32 %v2512, %v3070
        %v3116 = vadd.f32 %v2514, %v3069
        %v3117 = vadd.f32 %v2520, %v3068
        %v3118 = vadd.f32 %v2522, %v3067
        %v3119 = vadd.f32 %v2528, %v3066
        %v3120 = vadd.f32 %v2530, %v3065
        %v3121 = vadd.f32 %v2536, %v3064
        %v3122 = vadd.f32 %v2538, %v3063
        %v3123 = vadd.f32 %v2544, %v3062
        %v3124 = vadd.f32 %v2546, %v3061
        %v3125 = vrot.slane %v2867, 1
        %v3126 = vrot.slane %v2869, 1
        %v3127 = vrot.slane %v2872, 1
        %v3128 = vrot.slane %v2876, 1
        %v3129 = vrot.slane %v2878, 1
        %v3130 = vrot.slane %v2881, 1
        %v3131 = vrot.slane %v2885, 1
        %v3132 = vrot.slane %v2887, 1
        %v3133 = vrot.slane %v2890, 1
        %v3134 = vrot.slane %v2894, 1
        %v3135 = vrot.slane %v2896, 1
        %v3136 = vrot.slane %v2899, 1
        %v3137 = vrot.slane %v2903, 1
        %v3138 = vrot.slane %v2905, 1
        %v3139 = vrot.slane %v2908, 1
        %v3140 = vrot.slane %v2912, 1
        %v3141 = vrot.slane %v2914, 1
        %v3142 = vrot.slane %v2917, 1
        %v3143 = vrot.slane %v2921, 1
        %v3144 = vrot.slane %v2923, 1
        %v3145 = vrot.slane %v2926, 1
        %v3146 = vrot.slane %v2930, 1
        %v3147 = vrot.slane %v2932, 1
        %v3148 = vrot.slane %v2935, 1
        %v3149 = vrot.slane %v2939, 1
        %v3150 = vrot.slane %v2941, 1
        %v3151 = vrot.slane %v2944, 1
        %v3152 = vrot.slane %v2948, 1
        %v3153 = vrot.slane %v2950, 1
        %v3154 = vrot.slane %v2953, 1
        %v3155 = vrot.slane %v2957, 1
        %v3156 = vrot.slane %v2959, 1
        %v3157 = vrot.slane %v2962, 1
        %v3158 = vrot.slane %v2966, 1
        %v3159 = vrot.slane %v2968, 1
        %v3160 = vrot.slane %v2971, 1
        %v3161 = vrot.slane %v2975, 1
        %v3162 = vrot.slane %v2977, 1
        %v3163 = vrot.slane %v2980, 1
        %v3164 = vrot.slane %v2984, 1
        %v3165 = vrot.slane %v2986, 1
        %v3166 = vrot.slane %v2989, 1
        %v3167 = vrot.slane %v2993, 1
        %v3168 = vrot.slane %v2995, 1
        %v3169 = vrot.slane %v2998, 1
        %v3170 = vrot.slane %v3002, 1
        %v3171 = vrot.slane %v3004, 1
        %v3172 = vrot.slane %v3007, 1
        %vm3173 = vcmp.lt.s32.totalorder %v3059, 7
        %v3174 = vsel %vm3173, %v3171, %v3172
        %v3175 = vsel %vm3173, %v3170, %v3171
        %v3176 = vsel %vm3173, %v3168, %v3169
        %v3177 = vsel %vm3173, %v3167, %v3168
        %v3178 = vsel %vm3173, %v3165, %v3166
        %v3179 = vsel %vm3173, %v3164, %v3165
        %v3180 = vsel %vm3173, %v3162, %v3163
        %v3181 = vsel %vm3173, %v3161, %v3162
        %v3182 = vsel %vm3173, %v3159, %v3160
        %v3183 = vsel %vm3173, %v3158, %v3159
        %v3184 = vsel %vm3173, %v3156, %v3157
        %v3185 = vsel %vm3173, %v3155, %v3156
        %v3186 = vsel %vm3173, %v3153, %v3154
        %v3187 = vsel %vm3173, %v3152, %v3153
        %v3188 = vsel %vm3173, %v3150, %v3151
        %v3189 = vsel %vm3173, %v3149, %v3150
        %v3190 = vsel %vm3173, %v3147, %v3148
        %v3191 = vsel %vm3173, %v3146, %v3147
        %v3192 = vsel %vm3173, %v3144, %v3145
        %v3193 = vsel %vm3173, %v3143, %v3144
        %v3194 = vsel %vm3173, %v3141, %v3142
        %v3195 = vsel %vm3173, %v3140, %v3141
        %v3196 = vsel %vm3173, %v3138, %v3139
        %v3197 = vsel %vm3173, %v3137, %v3138
        %v3198 = vsel %vm3173, %v3135, %v3136
        %v3199 = vsel %vm3173, %v3134, %v3135
        %v3200 = vsel %vm3173, %v3132, %v3133
        %v3201 = vsel %vm3173, %v3131, %v3132
        %v3202 = vsel %vm3173, %v3129, %v3130
        %v3203 = vsel %vm3173, %v3128, %v3129
        %v3204 = vsel %vm3173, %v3126, %v3127
        %v3205 = vsel %vm3173, %v3125, %v3126
        %v3206 = vadd.f32 %v3093, %v3205
        %v3207 = vadd.f32 %v3094, %v3204
        %v3208 = vadd.f32 %v3095, %v3203
        %v3209 = vadd.f32 %v3096, %v3202
        %v3210 = vadd.f32 %v3097, %v3201
        %v3211 = vadd.f32 %v3098, %v3200
        %v3212 = vadd.f32 %v3099, %v3199
        %v3213 = vadd.f32 %v3100, %v3198
        %v3214 = vadd.f32 %v3101, %v3197
        %v3215 = vadd.f32 %v3102, %v3196
        %v3216 = vadd.f32 %v3103, %v3195
        %v3217 = vadd.f32 %v3104, %v3194
        %v3218 = vadd.f32 %v3105, %v3193
        %v3219 = vadd.f32 %v3106, %v3192
        %v3220 = vadd.f32 %v3107, %v3191
        %v3221 = vadd.f32 %v3108, %v3190
        %v3222 = vadd.f32 %v3109, %v3189
        %v3223 = vadd.f32 %v3110, %v3188
        %v3224 = vadd.f32 %v3111, %v3187
        %v3225 = vadd.f32 %v3112, %v3186
        %v3226 = vadd.f32 %v3113, %v3185
        %v3227 = vadd.f32 %v3114, %v3184
        %v3228 = vadd.f32 %v3115, %v3183
        %v3229 = vadd.f32 %v3116, %v3182
        %v3230 = vadd.f32 %v3117, %v3181
        %v3231 = vadd.f32 %v3118, %v3180
        %v3232 = vadd.f32 %v3119, %v3179
        %v3233 = vadd.f32 %v3120, %v3178
        %v3234 = vadd.f32 %v3121, %v3177
        %v3235 = vadd.f32 %v3122, %v3176
        %v3236 = vadd.f32 %v3123, %v3175
        %v3237 = vadd.f32 %v3124, %v3174
        %v3238 = vadd.f32 %v3206, %v3207
        %v3239 = vadd.f32 %v3238, %v3208
        %v3240 = vadd.f32 %v3239, %v3209
        %v3241 = vadd.f32 %v3240, %v3210
        %v3242 = vadd.f32 %v3241, %v3211
        %v3243 = vadd.f32 %v3242, %v3212
        %v3244 = vadd.f32 %v3243, %v3213
        %v3245 = vadd.f32 %v3244, %v3214
        %v3246 = vadd.f32 %v3245, %v3215
        %v3247 = vadd.f32 %v3246, %v3216
        %v3248 = vadd.f32 %v3247, %v3217
        %v3249 = vadd.f32 %v3248, %v3218
        %v3250 = vadd.f32 %v3249, %v3219
        %v3251 = vadd.f32 %v3250, %v3220
        %v3252 = vadd.f32 %v3251, %v3221
        %v3253 = vadd.f32 %v3252, %v3222
        %v3254 = vadd.f32 %v3253, %v3223
        %v3255 = vadd.f32 %v3254, %v3224
        %v3256 = vadd.f32 %v3255, %v3225
        %v3257 = vadd.f32 %v3256, %v3226
        %v3258 = vadd.f32 %v3257, %v3227
        %v3259 = vadd.f32 %v3258, %v3228
        %v3260 = vadd.f32 %v3259, %v3229
        %v3261 = vadd.f32 %v3260, %v3230
        %v3262 = vadd.f32 %v3261, %v3231
        %v3263 = vadd.f32 %v3262, %v3232
        %v3264 = vadd.f32 %v3263, %v3233
        %v3265 = vadd.f32 %v3264, %v3234
        %v3266 = vadd.f32 %v3265, %v3235
        %v3267 = vadd.f32 %v3266, %v3236
        %v3268 = vadd.f32 %v3267, %v3237
        %v3269 = vrot.slane %v3268, 4
        %v3270 = vadd.f32 %v3268, %v3269
        %v3271 = vrot.slane %v3270, 2
        %v3272 = vadd.f32 %v3270, %v3271
        %v3273 = vrot.slane %v3272, 1
        %v3274 = vadd.f32 %v3272, %v3273
        %v3275 = vmul.f32 %v3274, 0.00390625
        %v3276 = vsub.f32 %v3206, %v3275
        %v3277 = vsub.f32 %v3207, %v3275
        %v3278 = vsub.f32 %v3208, %v3275
        %v3279 = vsub.f32 %v3209, %v3275
        %v3280 = vsub.f32 %v3210, %v3275
        %v3281 = vsub.f32 %v3211, %v3275
        %v3282 = vsub.f32 %v3212, %v3275
        %v3283 = vsub.f32 %v3213, %v3275
        %v3284 = vsub.f32 %v3214, %v3275
        %v3285 = vsub.f32 %v3215, %v3275
        %v3286 = vsub.f32 %v3216, %v3275
        %v3287 = vsub.f32 %v3217, %v3275
        %v3288 = vsub.f32 %v3218, %v3275
        %v3289 = vsub.f32 %v3219, %v3275
        %v3290 = vsub.f32 %v3220, %v3275
        %v3291 = vsub.f32 %v3221, %v3275
        %v3292 = vsub.f32 %v3222, %v3275
        %v3293 = vsub.f32 %v3223, %v3275
        %v3294 = vsub.f32 %v3224, %v3275
        %v3295 = vsub.f32 %v3225, %v3275
        %v3296 = vsub.f32 %v3226, %v3275
        %v3297 = vsub.f32 %v3227, %v3275
        %v3298 = vsub.f32 %v3228, %v3275
        %v3299 = vsub.f32 %v3229, %v3275
        %v3300 = vsub.f32 %v3230, %v3275
        %v3301 = vsub.f32 %v3231, %v3275
        %v3302 = vsub.f32 %v3232, %v3275
        %v3303 = vsub.f32 %v3233, %v3275
        %v3304 = vsub.f32 %v3234, %v3275
        %v3305 = vsub.f32 %v3235, %v3275
        %v3306 = vsub.f32 %v3236, %v3275
        %v3307 = vsub.f32 %v3237, %v3275
        %v3308 = vmul.f32 %v3276, %v3276
        %v3309 = vmul.f32 %v3277, %v3277
        %v3310 = vmul.f32 %v3278, %v3278
        %v3311 = vmul.f32 %v3279, %v3279
        %v3312 = vmul.f32 %v3280, %v3280
        %v3313 = vmul.f32 %v3281, %v3281
        %v3314 = vmul.f32 %v3282, %v3282
        %v3315 = vmul.f32 %v3283, %v3283
        %v3316 = vmul.f32 %v3284, %v3284
        %v3317 = vmul.f32 %v3285, %v3285
        %v3318 = vmul.f32 %v3286, %v3286
        %v3319 = vmul.f32 %v3287, %v3287
        %v3320 = vmul.f32 %v3288, %v3288
        %v3321 = vmul.f32 %v3289, %v3289
        %v3322 = vmul.f32 %v3290, %v3290
        %v3323 = vmul.f32 %v3291, %v3291
        %v3324 = vmul.f32 %v3292, %v3292
        %v3325 = vmul.f32 %v3293, %v3293
        %v3326 = vmul.f32 %v3294, %v3294
        %v3327 = vmul.f32 %v3295, %v3295
        %v3328 = vmul.f32 %v3296, %v3296
        %v3329 = vmul.f32 %v3297, %v3297
        %v3330 = vmul.f32 %v3298, %v3298
        %v3331 = vmul.f32 %v3299, %v3299
        %v3332 = vmul.f32 %v3300, %v3300
        %v3333 = vmul.f32 %v3301, %v3301
        %v3334 = vmul.f32 %v3302, %v3302
        %v3335 = vmul.f32 %v3303, %v3303
        %v3336 = vmul.f32 %v3304, %v3304
        %v3337 = vmul.f32 %v3305, %v3305
        %v3338 = vmul.f32 %v3306, %v3306
        %v3339 = vmul.f32 %v3307, %v3307
        %v3340 = vadd.f32 %v3308, %v3309
        %v3341 = vadd.f32 %v3340, %v3310
        %v3342 = vadd.f32 %v3341, %v3311
        %v3343 = vadd.f32 %v3342, %v3312
        %v3344 = vadd.f32 %v3343, %v3313
        %v3345 = vadd.f32 %v3344, %v3314
        %v3346 = vadd.f32 %v3345, %v3315
        %v3347 = vadd.f32 %v3346, %v3316
        %v3348 = vadd.f32 %v3347, %v3317
        %v3349 = vadd.f32 %v3348, %v3318
        %v3350 = vadd.f32 %v3349, %v3319
        %v3351 = vadd.f32 %v3350, %v3320
        %v3352 = vadd.f32 %v3351, %v3321
        %v3353 = vadd.f32 %v3352, %v3322
        %v3354 = vadd.f32 %v3353, %v3323
        %v3355 = vadd.f32 %v3354, %v3324
        %v3356 = vadd.f32 %v3355, %v3325
        %v3357 = vadd.f32 %v3356, %v3326
        %v3358 = vadd.f32 %v3357, %v3327
        %v3359 = vadd.f32 %v3358, %v3328
        %v3360 = vadd.f32 %v3359, %v3329
        %v3361 = vadd.f32 %v3360, %v3330
        %v3362 = vadd.f32 %v3361, %v3331
        %v3363 = vadd.f32 %v3362, %v3332
        %v3364 = vadd.f32 %v3363, %v3333
        %v3365 = vadd.f32 %v3364, %v3334
        %v3366 = vadd.f32 %v3365, %v3335
        %v3367 = vadd.f32 %v3366, %v3336
        %v3368 = vadd.f32 %v3367, %v3337
        %v3369 = vadd.f32 %v3368, %v3338
        %v3370 = vadd.f32 %v3369, %v3339
        %v3371 = vrot.slane %v3370, 4
        %v3372 = vadd.f32 %v3370, %v3371
        %v3373 = vrot.slane %v3372, 2
        %v3374 = vadd.f32 %v3372, %v3373
        %v3375 = vrot.slane %v3374, 1
        %v3376 = vadd.f32 %v3374, %v3375
        %v3377 = vmul.f32 %v3376, 0.00390625
        %v3378 = vadd.f32 %v3377, 1e-05
        %v3379 = vrsqrt.pop %v3378
        %v3380 = vmul.f32 %v3379, %v3378
        %v3381 = vmul.f32 %v3380, %v3379
        %v3382 = vmul.f32 0.5, %v3381
        %v3383 = vsub.f32 1.5, %v3382
        %v3384 = vmul.f32 %v3379, %v3383
        %vm3385 = vweird.f32 %v3378
        %vm3386 = vweird.f32 %v3379
        %vm3387 = vmor %vm3385, %vm3386
        %v3388 = vsel %vm3387, %v3379, %v3384
        %v3389 = vmul.f32 %v3276, %v3388
        %v3390 = vmul.f32 %v3277, %v3388
        %v3391 = vmul.f32 %v3278, %v3388
        %v3392 = vmul.f32 %v3279, %v3388
        %v3393 = vmul.f32 %v3280, %v3388
        %v3394 = vmul.f32 %v3281, %v3388
        %v3395 = vmul.f32 %v3282, %v3388
        %v3396 = vmul.f32 %v3283, %v3388
        %v3397 = vmul.f32 %v3284, %v3388
        %v3398 = vmul.f32 %v3285, %v3388
        %v3399 = vmul.f32 %v3286, %v3388
        %v3400 = vmul.f32 %v3287, %v3388
        %v3401 = vmul.f32 %v3288, %v3388
        %v3402 = vmul.f32 %v3289, %v3388
        %v3403 = vmul.f32 %v3290, %v3388
        %v3404 = vmul.f32 %v3291, %v3388
        %v3405 = vmul.f32 %v3292, %v3388
        %v3406 = vmul.f32 %v3293, %v3388
        %v3407 = vmul.f32 %v3294, %v3388
        %v3408 = vmul.f32 %v3295, %v3388
        %v3409 = vmul.f32 %v3296, %v3388
        %v3410 = vmul.f32 %v3297, %v3388
        %v3411 = vmul.f32 %v3298, %v3388
        %v3412 = vmul.f32 %v3299, %v3388
        %v3413 = vmul.f32 %v3300, %v3388
        %v3414 = vmul.f32 %v3301, %v3388
        %v3415 = vmul.f32 %v3302, %v3388
        %v3416 = vmul.f32 %v3303, %v3388
        %v3417 = vmul.f32 %v3304, %v3388
        %v3418 = vmul.f32 %v3305, %v3388
        %v3419 = vmul.f32 %v3306, %v3388
        %v3420 = vmul.f32 %v3307, %v3388
        %v3421 = vmax.f32 %v3389, 0.0
        %v3422 = vmax.f32 %v3390, 0.0
        %v3423 = vmax.f32 %v3391, 0.0
        %v3424 = vmax.f32 %v3392, 0.0
        %v3425 = vmax.f32 %v3393, 0.0
        %v3426 = vmax.f32 %v3394, 0.0
        %v3427 = vmax.f32 %v3395, 0.0
        %v3428 = vmax.f32 %v3396, 0.0
        %v3429 = vmax.f32 %v3397, 0.0
        %v3430 = vmax.f32 %v3398, 0.0
        %v3431 = vmax.f32 %v3399, 0.0
        %v3432 = vmax.f32 %v3400, 0.0
        %v3433 = vmax.f32 %v3401, 0.0
        %v3434 = vmax.f32 %v3402, 0.0
        %v3435 = vmax.f32 %v3403, 0.0
        %v3436 = vmax.f32 %v3404, 0.0
        %v3437 = vmax.f32 %v3405, 0.0
        %v3438 = vmax.f32 %v3406, 0.0
        %v3439 = vmax.f32 %v3407, 0.0
        %v3440 = vmax.f32 %v3408, 0.0
        %v3441 = vmax.f32 %v3409, 0.0
        %v3442 = vmax.f32 %v3410, 0.0
        %v3443 = vmax.f32 %v3411, 0.0
        %v3444 = vmax.f32 %v3412, 0.0
        %v3445 = vmax.f32 %v3413, 0.0
        %v3446 = vmax.f32 %v3414, 0.0
        %v3447 = vmax.f32 %v3415, 0.0
        %v3448 = vmax.f32 %v3416, 0.0
        %v3449 = vmax.f32 %v3417, 0.0
        %v3450 = vmax.f32 %v3418, 0.0
        %v3451 = vmax.f32 %v3419, 0.0
        %v3452 = vmax.f32 %v3420, 0.0
        %v3453 = vpack.c.bf16 %v3421, %v3421
        %v3454 = vpack.c.bf16 %v3422, %v3422
        %v3455 = vpack.c.bf16 %v3423, %v3423
        %v3456 = vpack.c.bf16 %v3424, %v3424
        %v3457 = vpack.c.bf16 %v3425, %v3425
        %v3458 = vpack.c.bf16 %v3426, %v3426
        %v3459 = vpack.c.bf16 %v3427, %v3427
        %v3460 = vpack.c.bf16 %v3428, %v3428
        %v3461 = vpack.c.bf16 %v3429, %v3429
        %v3462 = vpack.c.bf16 %v3430, %v3430
        %v3463 = vpack.c.bf16 %v3431, %v3431
        %v3464 = vpack.c.bf16 %v3432, %v3432
        %v3465 = vpack.c.bf16 %v3433, %v3433
        %v3466 = vpack.c.bf16 %v3434, %v3434
        %v3467 = vpack.c.bf16 %v3435, %v3435
        %v3468 = vpack.c.bf16 %v3436, %v3436
        %v3469 = vpack.c.bf16 %v3437, %v3437
        %v3470 = vpack.c.bf16 %v3438, %v3438
        %v3471 = vpack.c.bf16 %v3439, %v3439
        %v3472 = vpack.c.bf16 %v3440, %v3440
        %v3473 = vpack.c.bf16 %v3441, %v3441
        %v3474 = vpack.c.bf16 %v3442, %v3442
        %v3475 = vpack.c.bf16 %v3443, %v3443
        %v3476 = vpack.c.bf16 %v3444, %v3444
        %v3477 = vpack.c.bf16 %v3445, %v3445
        %v3478 = vpack.c.bf16 %v3446, %v3446
        %v3479 = vpack.c.bf16 %v3447, %v3447
        %v3480 = vpack.c.bf16 %v3448, %v3448
        %v3481 = vpack.c.bf16 %v3449, %v3449
        %v3482 = vpack.c.bf16 %v3450, %v3450
        %v3483 = vpack.c.bf16 %v3451, %v3451
        %v3484 = vpack.c.bf16 %v3452, %v3452
        %3485 = vst [vmem:[%s399] sm:$0xf] %v3453
        %3486 = vst [vmem:[%s399 + $0x4] sm:$0xf] %v3454
        %3487 = vst [vmem:[%s399 + $0x10] sm:$0xf] %v3455
        %3488 = vst [vmem:[%s399 + $0x14] sm:$0xf] %v3456
        %3489 = vst [vmem:[%s399 + $0x20] sm:$0xf] %v3457
        %3490 = vst [vmem:[%s399 + $0x24] sm:$0xf] %v3458
        %3491 = vst [vmem:[%s399 + $0x30] sm:$0xf] %v3459
        %3492 = vst [vmem:[%s399 + $0x34] sm:$0xf] %v3460
        %3493 = vst [vmem:[%s399 + $0x40] sm:$0xf] %v3461
        %3494 = vst [vmem:[%s399 + $0x44] sm:$0xf] %v3462
        %3495 = vst [vmem:[%s399 + $0x50] sm:$0xf] %v3463
        %3496 = vst [vmem:[%s399 + $0x54] sm:$0xf] %v3464
        %3497 = vst [vmem:[%s399 + $0x60] sm:$0xf] %v3465
        %3498 = vst [vmem:[%s399 + $0x64] sm:$0xf] %v3466
        %3499 = vst [vmem:[%s399 + $0x70] sm:$0xf] %v3467
        %3500 = vst [vmem:[%s399 + $0x74] sm:$0xf] %v3468
        %3501 = vst [vmem:[%s399 + $0x80] sm:$0xf] %v3469
        %3502 = vst [vmem:[%s399 + $0x84] sm:$0xf] %v3470
        %3503 = vst [vmem:[%s399 + $0x90] sm:$0xf] %v3471
        %3504 = vst [vmem:[%s399 + $0x94] sm:$0xf] %v3472
        %3505 = vst [vmem:[%s399 + $0xa0] sm:$0xf] %v3473
        %3506 = vst [vmem:[%s399 + $0xa4] sm:$0xf] %v3474
        %3507 = vst [vmem:[%s399 + $0xb0] sm:$0xf] %v3475
        %3508 = vst [vmem:[%s399 + $0xb4] sm:$0xf] %v3476
        %3509 = vst [vmem:[%s399 + $0xc0] sm:$0xf] %v3477
        %3510 = vst [vmem:[%s399 + $0xc4] sm:$0xf] %v3478
        %3511 = vst [vmem:[%s399 + $0xd0] sm:$0xf] %v3479
        %3512 = vst [vmem:[%s399 + $0xd4] sm:$0xf] %v3480
        %3513 = vst [vmem:[%s399 + $0xe0] sm:$0xf] %v3481
        %3514 = vst [vmem:[%s399 + $0xe4] sm:$0xf] %v3482
        %3515 = vst [vmem:[%s399 + $0xf0] sm:$0xf] %v3483
        %3516 = vst [vmem:[%s399 + $0xf4] sm:$0xf] %v3484
        %v3517 = vld [vmem:[#allocation2] sm:$0xf]
        %v3518 = vld [vmem:[#allocation2 + $0x4] sm:$0xf]
        %v3519 = vld [vmem:[#allocation2 + $0x8] sm:$0xf]
        %v3520 = vld [vmem:[#allocation2 + $0xc] sm:$0xf]
        %v3521 = vld [vmem:[#allocation2 + $0x10] sm:$0xf]
        %v3522 = vld [vmem:[#allocation2 + $0x14] sm:$0xf]
        %v3523 = vld [vmem:[#allocation2 + $0x18] sm:$0xf]
        %v3524 = vld [vmem:[#allocation2 + $0x1c] sm:$0xf]
        %v3525 = vld [vmem:[#allocation2 + $0x20] sm:$0xf]
        %v3526 = vld [vmem:[#allocation2 + $0x24] sm:$0xf]
        %v3527 = vld [vmem:[#allocation2 + $0x28] sm:$0xf]
        %v3528 = vld [vmem:[#allocation2 + $0x2c] sm:$0xf]
        %v3529 = vld [vmem:[#allocation2 + $0x30] sm:$0xf]
        %v3530 = vld [vmem:[#allocation2 + $0x34] sm:$0xf]
        %v3531 = vld [vmem:[#allocation2 + $0x38] sm:$0xf]
        %v3532 = vld [vmem:[#allocation2 + $0x3c] sm:$0xf]
        %v3533 = vld [vmem:[#allocation2 + $0x40] sm:$0xf]
        %v3534 = vld [vmem:[#allocation2 + $0x44] sm:$0xf]
        %v3535 = vld [vmem:[#allocation2 + $0x48] sm:$0xf]
        %v3536 = vld [vmem:[#allocation2 + $0x4c] sm:$0xf]
        %v3537 = vld [vmem:[#allocation2 + $0x50] sm:$0xf]
        %v3538 = vld [vmem:[#allocation2 + $0x54] sm:$0xf]
        %v3539 = vld [vmem:[#allocation2 + $0x58] sm:$0xf]
        %v3540 = vld [vmem:[#allocation2 + $0x5c] sm:$0xf]
        %v3541 = vld [vmem:[#allocation2 + $0x60] sm:$0xf]
        %v3542 = vld [vmem:[#allocation2 + $0x64] sm:$0xf]
        %v3543 = vld [vmem:[#allocation2 + $0x68] sm:$0xf]
        %v3544 = vld [vmem:[#allocation2 + $0x6c] sm:$0xf]
        %v3545 = vld [vmem:[#allocation2 + $0x70] sm:$0xf]
        %v3546 = vld [vmem:[#allocation2 + $0x74] sm:$0xf]
        %v3547 = vld [vmem:[#allocation2 + $0x78] sm:$0xf]
        %v3548 = vld [vmem:[#allocation2 + $0x7c] sm:$0xf]
        %v3549 = vld [vmem:[#allocation2 + $0x80] sm:$0xf]
        %v3550 = vld [vmem:[#allocation2 + $0x84] sm:$0xf]
        %v3551 = vld [vmem:[#allocation2 + $0x88] sm:$0xf]
        %v3552 = vld [vmem:[#allocation2 + $0x8c] sm:$0xf]
        %v3553 = vld [vmem:[#allocation2 + $0x90] sm:$0xf]
        %v3554 = vld [vmem:[#allocation2 + $0x94] sm:$0xf]
        %v3555 = vld [vmem:[#allocation2 + $0x98] sm:$0xf]
        %v3556 = vld [vmem:[#allocation2 + $0x9c] sm:$0xf]
        %v3557 = vld [vmem:[#allocation2 + $0xa0] sm:$0xf]
        %v3558 = vld [vmem:[#allocation2 + $0xa4] sm:$0xf]
        %v3559 = vld [vmem:[#allocation2 + $0xa8] sm:$0xf]
        %v3560 = vld [vmem:[#allocation2 + $0xac] sm:$0xf]
        %v3561 = vld [vmem:[#allocation2 + $0xb0] sm:$0xf]
        %v3562 = vld [vmem:[#allocation2 + $0xb4] sm:$0xf]
        %v3563 = vld [vmem:[#allocation2 + $0xb8] sm:$0xf]
        %v3564 = vld [vmem:[#allocation2 + $0xbc] sm:$0xf]
        %v3565 = vld [vmem:[#allocation2 + $0xc0] sm:$0xf]
        %v3566 = vld [vmem:[#allocation2 + $0xc4] sm:$0xf]
        %v3567 = vld [vmem:[#allocation2 + $0xc8] sm:$0xf]
        %v3568 = vld [vmem:[#allocation2 + $0xcc] sm:$0xf]
        %v3569 = vld [vmem:[#allocation2 + $0xd0] sm:$0xf]
        %v3570 = vld [vmem:[#allocation2 + $0xd4] sm:$0xf]
        %v3571 = vld [vmem:[#allocation2 + $0xd8] sm:$0xf]
        %v3572 = vld [vmem:[#allocation2 + $0xdc] sm:$0xf]
        %v3573 = vld [vmem:[#allocation2 + $0xe0] sm:$0xf]
        %v3574 = vld [vmem:[#allocation2 + $0xe4] sm:$0xf]
        %v3575 = vld [vmem:[#allocation2 + $0xe8] sm:$0xf]
        %v3576 = vld [vmem:[#allocation2 + $0xec] sm:$0xf]
        %v3577 = vld [vmem:[#allocation2 + $0xf0] sm:$0xf]
        %v3578 = vld [vmem:[#allocation2 + $0xf4] sm:$0xf]
        %v3579 = vld [vmem:[#allocation2 + $0xf8] sm:$0xf]
        %v3580 = vld [vmem:[#allocation2 + $0xfc] sm:$0xf]
        %v3581 = vld [vmem:[%s399] sm:$0xf]
        %v3582 = vld [vmem:[%s399 + $0x4] sm:$0xf]
        %v3583 = vld [vmem:[%s399 + $0x8] sm:$0xf]
        %v3584 = vld [vmem:[%s399 + $0xc] sm:$0xf]
        %v3585 = vld [vmem:[%s399 + $0x10] sm:$0xf]
        %v3586 = vld [vmem:[%s399 + $0x14] sm:$0xf]
        %v3587 = vld [vmem:[%s399 + $0x18] sm:$0xf]
        %v3588 = vld [vmem:[%s399 + $0x1c] sm:$0xf]
        %v3589 = vld [vmem:[%s399 + $0x20] sm:$0xf]
        %v3590 = vld [vmem:[%s399 + $0x24] sm:$0xf]
        %v3591 = vld [vmem:[%s399 + $0x28] sm:$0xf]
        %v3592 = vld [vmem:[%s399 + $0x2c] sm:$0xf]
        %v3593 = vld [vmem:[%s399 + $0x30] sm:$0xf]
        %v3594 = vld [vmem:[%s399 + $0x34] sm:$0xf]
        %v3595 = vld [vmem:[%s399 + $0x38] sm:$0xf]
        %v3596 = vld [vmem:[%s399 + $0x3c] sm:$0xf]
        %v3597 = vld [vmem:[%s399 + $0x40] sm:$0xf]
        %v3598 = vld [vmem:[%s399 + $0x44] sm:$0xf]
        %v3599 = vld [vmem:[%s399 + $0x48] sm:$0xf]
        %v3600 = vld [vmem:[%s399 + $0x4c] sm:$0xf]
        %v3601 = vld [vmem:[%s399 + $0x50] sm:$0xf]
        %v3602 = vld [vmem:[%s399 + $0x54] sm:$0xf]
        %v3603 = vld [vmem:[%s399 + $0x58] sm:$0xf]
        %v3604 = vld [vmem:[%s399 + $0x5c] sm:$0xf]
        %v3605 = vld [vmem:[%s399 + $0x60] sm:$0xf]
        %v3606 = vld [vmem:[%s399 + $0x64] sm:$0xf]
        %v3607 = vld [vmem:[%s399 + $0x68] sm:$0xf]
        %v3608 = vld [vmem:[%s399 + $0x6c] sm:$0xf]
        %v3609 = vld [vmem:[%s399 + $0x70] sm:$0xf]
        %v3610 = vld [vmem:[%s399 + $0x74] sm:$0xf]
        %v3611 = vld [vmem:[%s399 + $0x78] sm:$0xf]
        %v3612 = vld [vmem:[%s399 + $0x7c] sm:$0xf]
        %v3613 = vld [vmem:[%s399 + $0x80] sm:$0xf]
        %v3614 = vld [vmem:[%s399 + $0x84] sm:$0xf]
        %v3615 = vld [vmem:[%s399 + $0x88] sm:$0xf]
        %v3616 = vld [vmem:[%s399 + $0x8c] sm:$0xf]
        %v3617 = vld [vmem:[%s399 + $0x90] sm:$0xf]
        %v3618 = vld [vmem:[%s399 + $0x94] sm:$0xf]
        %v3619 = vld [vmem:[%s399 + $0x98] sm:$0xf]
        %v3620 = vld [vmem:[%s399 + $0x9c] sm:$0xf]
        %v3621 = vld [vmem:[%s399 + $0xa0] sm:$0xf]
        %v3622 = vld [vmem:[%s399 + $0xa4] sm:$0xf]
        %v3623 = vld [vmem:[%s399 + $0xa8] sm:$0xf]
        %v3624 = vld [vmem:[%s399 + $0xac] sm:$0xf]
        %v3625 = vld [vmem:[%s399 + $0xb0] sm:$0xf]
        %v3626 = vld [vmem:[%s399 + $0xb4] sm:$0xf]
        %v3627 = vld [vmem:[%s399 + $0xb8] sm:$0xf]
        %v3628 = vld [vmem:[%s399 + $0xbc] sm:$0xf]
        %v3629 = vld [vmem:[%s399 + $0xc0] sm:$0xf]
        %v3630 = vld [vmem:[%s399 + $0xc4] sm:$0xf]
        %v3631 = vld [vmem:[%s399 + $0xc8] sm:$0xf]
        %v3632 = vld [vmem:[%s399 + $0xcc] sm:$0xf]
        %v3633 = vld [vmem:[%s399 + $0xd0] sm:$0xf]
        %v3634 = vld [vmem:[%s399 + $0xd4] sm:$0xf]
        %v3635 = vld [vmem:[%s399 + $0xd8] sm:$0xf]
        %v3636 = vld [vmem:[%s399 + $0xdc] sm:$0xf]
        %v3637 = vld [vmem:[%s399 + $0xe0] sm:$0xf]
        %v3638 = vld [vmem:[%s399 + $0xe4] sm:$0xf]
        %v3639 = vld [vmem:[%s399 + $0xe8] sm:$0xf]
        %v3640 = vld [vmem:[%s399 + $0xec] sm:$0xf]
        %v3641 = vld [vmem:[%s399 + $0xf0] sm:$0xf]
        %v3642 = vld [vmem:[%s399 + $0xf4] sm:$0xf]
        %v3643 = vld [vmem:[%s399 + $0xf8] sm:$0xf]
        %v3644 = vld [vmem:[%s399 + $0xfc] sm:$0xf]
        %v3645 = vld [vmem:[%s560] sm:$0xf]
        %v3646 = vld [vmem:[%s560 + $0x4] sm:$0xf]
        %v3647 = vld [vmem:[%s560 + $0x8] sm:$0xf]
        %v3648 = vld [vmem:[%s560 + $0xc] sm:$0xf]
        %v3649 = vld [vmem:[%s560 + $0x10] sm:$0xf]
        %v3650 = vld [vmem:[%s560 + $0x14] sm:$0xf]
        %v3651 = vld [vmem:[%s560 + $0x18] sm:$0xf]
        %v3652 = vld [vmem:[%s560 + $0x1c] sm:$0xf]
        %v3653 = vld [vmem:[%s560 + $0x20] sm:$0xf]
        %v3654 = vld [vmem:[%s560 + $0x24] sm:$0xf]
        %v3655 = vld [vmem:[%s560 + $0x28] sm:$0xf]
        %v3656 = vld [vmem:[%s560 + $0x2c] sm:$0xf]
        %v3657 = vld [vmem:[%s560 + $0x30] sm:$0xf]
        %v3658 = vld [vmem:[%s560 + $0x34] sm:$0xf]
        %v3659 = vld [vmem:[%s560 + $0x38] sm:$0xf]
        %v3660 = vld [vmem:[%s560 + $0x3c] sm:$0xf]
        %v3661 = vld [vmem:[%s560 + $0x40] sm:$0xf]
        %v3662 = vld [vmem:[%s560 + $0x44] sm:$0xf]
        %v3663 = vld [vmem:[%s560 + $0x48] sm:$0xf]
        %v3664 = vld [vmem:[%s560 + $0x4c] sm:$0xf]
        %v3665 = vld [vmem:[%s560 + $0x50] sm:$0xf]
        %v3666 = vld [vmem:[%s560 + $0x54] sm:$0xf]
        %v3667 = vld [vmem:[%s560 + $0x58] sm:$0xf]
        %v3668 = vld [vmem:[%s560 + $0x5c] sm:$0xf]
        %v3669 = vld [vmem:[%s560 + $0x60] sm:$0xf]
        %v3670 = vld [vmem:[%s560 + $0x64] sm:$0xf]
        %v3671 = vld [vmem:[%s560 + $0x68] sm:$0xf]
        %v3672 = vld [vmem:[%s560 + $0x6c] sm:$0xf]
        %v3673 = vld [vmem:[%s560 + $0x70] sm:$0xf]
        %v3674 = vld [vmem:[%s560 + $0x74] sm:$0xf]
        %v3675 = vld [vmem:[%s560 + $0x78] sm:$0xf]
        %v3676 = vld [vmem:[%s560 + $0x7c] sm:$0xf]
        %v3677 = vld [vmem:[%s560 + $0x80] sm:$0xf]
        %v3678 = vld [vmem:[%s560 + $0x84] sm:$0xf]
        %v3679 = vld [vmem:[%s560 + $0x88] sm:$0xf]
        %v3680 = vld [vmem:[%s560 + $0x8c] sm:$0xf]
        %v3681 = vld [vmem:[%s560 + $0x90] sm:$0xf]
        %v3682 = vld [vmem:[%s560 + $0x94] sm:$0xf]
        %v3683 = vld [vmem:[%s560 + $0x98] sm:$0xf]
        %v3684 = vld [vmem:[%s560 + $0x9c] sm:$0xf]
        %v3685 = vld [vmem:[%s560 + $0xa0] sm:$0xf]
        %v3686 = vld [vmem:[%s560 + $0xa4] sm:$0xf]
        %v3687 = vld [vmem:[%s560 + $0xa8] sm:$0xf]
        %v3688 = vld [vmem:[%s560 + $0xac] sm:$0xf]
        %v3689 = vld [vmem:[%s560 + $0xb0] sm:$0xf]
        %v3690 = vld [vmem:[%s560 + $0xb4] sm:$0xf]
        %v3691 = vld [vmem:[%s560 + $0xb8] sm:$0xf]
        %v3692 = vld [vmem:[%s560 + $0xbc] sm:$0xf]
        %v3693 = vld [vmem:[%s560 + $0xc0] sm:$0xf]
        %v3694 = vld [vmem:[%s560 + $0xc4] sm:$0xf]
        %v3695 = vld [vmem:[%s560 + $0xc8] sm:$0xf]
        %v3696 = vld [vmem:[%s560 + $0xcc] sm:$0xf]
        %v3697 = vld [vmem:[%s560 + $0xd0] sm:$0xf]
        %v3698 = vld [vmem:[%s560 + $0xd4] sm:$0xf]
        %v3699 = vld [vmem:[%s560 + $0xd8] sm:$0xf]
        %v3700 = vld [vmem:[%s560 + $0xdc] sm:$0xf]
        %v3701 = vld [vmem:[%s560 + $0xe0] sm:$0xf]
        %v3702 = vld [vmem:[%s560 + $0xe4] sm:$0xf]
        %v3703 = vld [vmem:[%s560 + $0xe8] sm:$0xf]
        %v3704 = vld [vmem:[%s560 + $0xec] sm:$0xf]
        %v3705 = vld [vmem:[%s560 + $0xf0] sm:$0xf]
        %v3706 = vld [vmem:[%s560 + $0xf4] sm:$0xf]
        %v3707 = vld [vmem:[%s560 + $0xf8] sm:$0xf]
        %v3708 = vld [vmem:[%s560 + $0xfc] sm:$0xf]
        %v3773 = vunpack.c.l.b16 %v3517
        %v3774 = vunpack.c.l.b16 %v3518
        %v3775 = vunpack.c.l.b16 %v3519
        %v3776 = vunpack.c.l.b16 %v3520
        %v3777 = vunpack.c.l.b16 %v3521
        %v3778 = vunpack.c.l.b16 %v3522
        %v3779 = vunpack.c.l.b16 %v3523
        %v3780 = vunpack.c.l.b16 %v3524
        %v3781 = vunpack.c.l.b16 %v3525
        %v3782 = vunpack.c.l.b16 %v3526
        %v3783 = vunpack.c.l.b16 %v3527
        %v3784 = vunpack.c.l.b16 %v3528
        %v3785 = vunpack.c.l.b16 %v3529
        %v3786 = vunpack.c.l.b16 %v3530
        %v3787 = vunpack.c.l.b16 %v3531
        %v3788 = vunpack.c.l.b16 %v3532
        %v3789 = vunpack.c.l.b16 %v3533
        %v3790 = vunpack.c.l.b16 %v3534
        %v3791 = vunpack.c.l.b16 %v3535
        %v3792 = vunpack.c.l.b16 %v3536
        %v3793 = vunpack.c.l.b16 %v3537
        %v3794 = vunpack.c.l.b16 %v3538
        %v3795 = vunpack.c.l.b16 %v3539
        %v3796 = vunpack.c.l.b16 %v3540
        %v3797 = vunpack.c.l.b16 %v3541
        %v3798 = vunpack.c.l.b16 %v3542
        %v3799 = vunpack.c.l.b16 %v3543
        %v3800 = vunpack.c.l.b16 %v3544
        %v3801 = vunpack.c.l.b16 %v3545
        %v3802 = vunpack.c.l.b16 %v3546
        %v3803 = vunpack.c.l.b16 %v3547
        %v3804 = vunpack.c.l.b16 %v3548
        %v3805 = vunpack.c.l.b16 %v3549
        %v3806 = vunpack.c.l.b16 %v3550
        %v3807 = vunpack.c.l.b16 %v3551
        %v3808 = vunpack.c.l.b16 %v3552
        %v3809 = vunpack.c.l.b16 %v3553
        %v3810 = vunpack.c.l.b16 %v3554
        %v3811 = vunpack.c.l.b16 %v3555
        %v3812 = vunpack.c.l.b16 %v3556
        %v3813 = vunpack.c.l.b16 %v3557
        %v3814 = vunpack.c.l.b16 %v3558
        %v3815 = vunpack.c.l.b16 %v3559
        %v3816 = vunpack.c.l.b16 %v3560
        %v3817 = vunpack.c.l.b16 %v3561
        %v3818 = vunpack.c.l.b16 %v3562
        %v3819 = vunpack.c.l.b16 %v3563
        %v3820 = vunpack.c.l.b16 %v3564
        %v3821 = vunpack.c.l.b16 %v3565
        %v3822 = vunpack.c.l.b16 %v3566
        %v3823 = vunpack.c.l.b16 %v3567
        %v3824 = vunpack.c.l.b16 %v3568
        %v3825 = vunpack.c.l.b16 %v3569
        %v3826 = vunpack.c.l.b16 %v3570
        %v3827 = vunpack.c.l.b16 %v3571
        %v3828 = vunpack.c.l.b16 %v3572
        %v3829 = vunpack.c.l.b16 %v3573
        %v3830 = vunpack.c.l.b16 %v3574
        %v3831 = vunpack.c.l.b16 %v3575
        %v3832 = vunpack.c.l.b16 %v3576
        %v3833 = vunpack.c.l.b16 %v3577
        %v3834 = vunpack.c.l.b16 %v3578
        %v3835 = vunpack.c.l.b16 %v3579
        %v3836 = vunpack.c.l.b16 %v3580
        %v3837 = vpack.c.b16 %v3774, %v3773
        %v3838 = vpack.c.b16 %v3776, %v3775
        %v3839 = vpack.c.b16 %v3778, %v3777
        %v3840 = vpack.c.b16 %v3780, %v3779
        %v3841 = vpack.c.b16 %v3782, %v3781
        %v3842 = vpack.c.b16 %v3784, %v3783
        %v3843 = vpack.c.b16 %v3786, %v3785
        %v3844 = vpack.c.b16 %v3788, %v3787
        %v3845 = vpack.c.b16 %v3790, %v3789
        %v3846 = vpack.c.b16 %v3792, %v3791
        %v3847 = vpack.c.b16 %v3794, %v3793
        %v3848 = vpack.c.b16 %v3796, %v3795
        %v3849 = vpack.c.b16 %v3798, %v3797
        %v3850 = vpack.c.b16 %v3800, %v3799
        %v3851 = vpack.c.b16 %v3802, %v3801
        %v3852 = vpack.c.b16 %v3804, %v3803
        %v3853 = vpack.c.b16 %v3806, %v3805
        %v3854 = vpack.c.b16 %v3808, %v3807
        %v3855 = vpack.c.b16 %v3810, %v3809
        %v3856 = vpack.c.b16 %v3812, %v3811
        %v3857 = vpack.c.b16 %v3814, %v3813
        %v3858 = vpack.c.b16 %v3816, %v3815
        %v3859 = vpack.c.b16 %v3818, %v3817
        %v3860 = vpack.c.b16 %v3820, %v3819
        %v3861 = vpack.c.b16 %v3822, %v3821
        %v3862 = vpack.c.b16 %v3824, %v3823
        %v3863 = vpack.c.b16 %v3826, %v3825
        %v3864 = vpack.c.b16 %v3828, %v3827
        %v3865 = vpack.c.b16 %v3830, %v3829
        %v3866 = vpack.c.b16 %v3832, %v3831
        %v3867 = vpack.c.b16 %v3834, %v3833
        %v3868 = vpack.c.b16 %v3836, %v3835
        %v3965 = vunpack.c.l.b16 %v3581
        %v3966 = vunpack.c.l.b16 %v3582
        %v3967 = vunpack.c.l.b16 %v3583
        %v3968 = vunpack.c.l.b16 %v3584
        %v3969 = vunpack.c.l.b16 %v3585
        %v3970 = vunpack.c.l.b16 %v3586
        %v3971 = vunpack.c.l.b16 %v3587
        %v3972 = vunpack.c.l.b16 %v3588
        %v3973 = vunpack.c.l.b16 %v3589
        %v3974 = vunpack.c.l.b16 %v3590
        %v3975 = vunpack.c.l.b16 %v3591
        %v3976 = vunpack.c.l.b16 %v3592
        %v3977 = vunpack.c.l.b16 %v3593
        %v3978 = vunpack.c.l.b16 %v3594
        %v3979 = vunpack.c.l.b16 %v3595
        %v3980 = vunpack.c.l.b16 %v3596
        %v3981 = vunpack.c.l.b16 %v3597
        %v3982 = vunpack.c.l.b16 %v3598
        %v3983 = vunpack.c.l.b16 %v3599
        %v3984 = vunpack.c.l.b16 %v3600
        %v3985 = vunpack.c.l.b16 %v3601
        %v3986 = vunpack.c.l.b16 %v3602
        %v3987 = vunpack.c.l.b16 %v3603
        %v3988 = vunpack.c.l.b16 %v3604
        %v3989 = vunpack.c.l.b16 %v3605
        %v3990 = vunpack.c.l.b16 %v3606
        %v3991 = vunpack.c.l.b16 %v3607
        %v3992 = vunpack.c.l.b16 %v3608
        %v3993 = vunpack.c.l.b16 %v3609
        %v3994 = vunpack.c.l.b16 %v3610
        %v3995 = vunpack.c.l.b16 %v3611
        %v3996 = vunpack.c.l.b16 %v3612
        %v3997 = vunpack.c.l.b16 %v3613
        %v3998 = vunpack.c.l.b16 %v3614
        %v3999 = vunpack.c.l.b16 %v3615
        %v4000 = vunpack.c.l.b16 %v3616
        %v4001 = vunpack.c.l.b16 %v3617
        %v4002 = vunpack.c.l.b16 %v3618
        %v4003 = vunpack.c.l.b16 %v3619
        %v4004 = vunpack.c.l.b16 %v3620
        %v4005 = vunpack.c.l.b16 %v3621
        %v4006 = vunpack.c.l.b16 %v3622
        %v4007 = vunpack.c.l.b16 %v3623
        %v4008 = vunpack.c.l.b16 %v3624
        %v4009 = vunpack.c.l.b16 %v3625
        %v4010 = vunpack.c.l.b16 %v3626
        %v4011 = vunpack.c.l.b16 %v3627
        %v4012 = vunpack.c.l.b16 %v3628
        %v4013 = vunpack.c.l.b16 %v3629
        %v4014 = vunpack.c.l.b16 %v3630
        %v4015 = vunpack.c.l.b16 %v3631
        %v4016 = vunpack.c.l.b16 %v3632
        %v4017 = vunpack.c.l.b16 %v3633
        %v4018 = vunpack.c.l.b16 %v3634
        %v4019 = vunpack.c.l.b16 %v3635
        %v4020 = vunpack.c.l.b16 %v3636
        %v4021 = vunpack.c.l.b16 %v3637
        %v4022 = vunpack.c.l.b16 %v3638
        %v4023 = vunpack.c.l.b16 %v3639
        %v4024 = vunpack.c.l.b16 %v3640
        %v4025 = vunpack.c.l.b16 %v3641
        %v4026 = vunpack.c.l.b16 %v3642
        %v4027 = vunpack.c.l.b16 %v3643
        %v4028 = vunpack.c.l.b16 %v3644
        %v4029 = vpack.c.b16 %v3966, %v3965
        %v4030 = vpack.c.b16 %v3968, %v3967
        %v4031 = vpack.c.b16 %v3970, %v3969
        %v4032 = vpack.c.b16 %v3972, %v3971
        %v4033 = vpack.c.b16 %v3974, %v3973
        %v4034 = vpack.c.b16 %v3976, %v3975
        %v4035 = vpack.c.b16 %v3978, %v3977
        %v4036 = vpack.c.b16 %v3980, %v3979
        %v4037 = vpack.c.b16 %v3982, %v3981
        %v4038 = vpack.c.b16 %v3984, %v3983
        %v4039 = vpack.c.b16 %v3986, %v3985
        %v4040 = vpack.c.b16 %v3988, %v3987
        %v4041 = vpack.c.b16 %v3990, %v3989
        %v4042 = vpack.c.b16 %v3992, %v3991
        %v4043 = vpack.c.b16 %v3994, %v3993
        %v4044 = vpack.c.b16 %v3996, %v3995
        %v4045 = vpack.c.b16 %v3998, %v3997
        %v4046 = vpack.c.b16 %v4000, %v3999
        %v4047 = vpack.c.b16 %v4002, %v4001
        %v4048 = vpack.c.b16 %v4004, %v4003
        %v4049 = vpack.c.b16 %v4006, %v4005
        %v4050 = vpack.c.b16 %v4008, %v4007
        %v4051 = vpack.c.b16 %v4010, %v4009
        %v4052 = vpack.c.b16 %v4012, %v4011
        %v4053 = vpack.c.b16 %v4014, %v4013
        %v4054 = vpack.c.b16 %v4016, %v4015
        %v4055 = vpack.c.b16 %v4018, %v4017
        %v4056 = vpack.c.b16 %v4020, %v4019
        %v4057 = vpack.c.b16 %v4022, %v4021
        %v4058 = vpack.c.b16 %v4024, %v4023
        %v4059 = vpack.c.b16 %v4026, %v4025
        %v4060 = vpack.c.b16 %v4028, %v4027
        %v4157 = vunpack.c.l.b16 %v3645
        %v4158 = vunpack.c.l.b16 %v3646
        %v4159 = vunpack.c.l.b16 %v3647
        %v4160 = vunpack.c.l.b16 %v3648
        %v4161 = vunpack.c.l.b16 %v3649
        %v4162 = vunpack.c.l.b16 %v3650
        %v4163 = vunpack.c.l.b16 %v3651
        %v4164 = vunpack.c.l.b16 %v3652
        %v4165 = vunpack.c.l.b16 %v3653
        %v4166 = vunpack.c.l.b16 %v3654
        %v4167 = vunpack.c.l.b16 %v3655
        %v4168 = vunpack.c.l.b16 %v3656
        %v4169 = vunpack.c.l.b16 %v3657
        %v4170 = vunpack.c.l.b16 %v3658
        %v4171 = vunpack.c.l.b16 %v3659
        %v4172 = vunpack.c.l.b16 %v3660
        %v4173 = vunpack.c.l.b16 %v3661
        %v4174 = vunpack.c.l.b16 %v3662
        %v4175 = vunpack.c.l.b16 %v3663
        %v4176 = vunpack.c.l.b16 %v3664
        %v4177 = vunpack.c.l.b16 %v3665
        %v4178 = vunpack.c.l.b16 %v3666
        %v4179 = vunpack.c.l.b16 %v3667
        %v4180 = vunpack.c.l.b16 %v3668
        %v4181 = vunpack.c.l.b16 %v3669
        %v4182 = vunpack.c.l.b16 %v3670
        %v4183 = vunpack.c.l.b16 %v3671
        %v4184 = vunpack.c.l.b16 %v3672
        %v4185 = vunpack.c.l.b16 %v3673
        %v4186 = vunpack.c.l.b16 %v3674
        %v4187 = vunpack.c.l.b16 %v3675
        %v4188 = vunpack.c.l.b16 %v3676
        %v4189 = vunpack.c.l.b16 %v3677
        %v4190 = vunpack.c.l.b16 %v3678
        %v4191 = vunpack.c.l.b16 %v3679
        %v4192 = vunpack.c.l.b16 %v3680
        %v4193 = vunpack.c.l.b16 %v3681
        %v4194 = vunpack.c.l.b16 %v3682
        %v4195 = vunpack.c.l.b16 %v3683
        %v4196 = vunpack.c.l.b16 %v3684
        %v4197 = vunpack.c.l.b16 %v3685
        %v4198 = vunpack.c.l.b16 %v3686
        %v4199 = vunpack.c.l.b16 %v3687
        %v4200 = vunpack.c.l.b16 %v3688
        %v4201 = vunpack.c.l.b16 %v3689
        %v4202 = vunpack.c.l.b16 %v3690
        %v4203 = vunpack.c.l.b16 %v3691
        %v4204 = vunpack.c.l.b16 %v3692
        %v4205 = vunpack.c.l.b16 %v3693
        %v4206 = vunpack.c.l.b16 %v3694
        %v4207 = vunpack.c.l.b16 %v3695
        %v4208 = vunpack.c.l.b16 %v3696
        %v4209 = vunpack.c.l.b16 %v3697
        %v4210 = vunpack.c.l.b16 %v3698
        %v4211 = vunpack.c.l.b16 %v3699
        %v4212 = vunpack.c.l.b16 %v3700
        %v4213 = vunpack.c.l.b16 %v3701
        %v4214 = vunpack.c.l.b16 %v3702
        %v4215 = vunpack.c.l.b16 %v3703
        %v4216 = vunpack.c.l.b16 %v3704
        %v4217 = vunpack.c.l.b16 %v3705
        %v4218 = vunpack.c.l.b16 %v3706
        %v4219 = vunpack.c.l.b16 %v3707
        %v4220 = vunpack.c.l.b16 %v3708
        %v4221 = vpack.c.b16 %v4158, %v4157
        %v4222 = vpack.c.b16 %v4160, %v4159
        %v4223 = vpack.c.b16 %v4162, %v4161
        %v4224 = vpack.c.b16 %v4164, %v4163
        %v4225 = vpack.c.b16 %v4166, %v4165
        %v4226 = vpack.c.b16 %v4168, %v4167
        %v4227 = vpack.c.b16 %v4170, %v4169
        %v4228 = vpack.c.b16 %v4172, %v4171
        %v4229 = vpack.c.b16 %v4174, %v4173
        %v4230 = vpack.c.b16 %v4176, %v4175
        %v4231 = vpack.c.b16 %v4178, %v4177
        %v4232 = vpack.c.b16 %v4180, %v4179
        %v4233 = vpack.c.b16 %v4182, %v4181
        %v4234 = vpack.c.b16 %v4184, %v4183
        %v4235 = vpack.c.b16 %v4186, %v4185
        %v4236 = vpack.c.b16 %v4188, %v4187
        %v4237 = vpack.c.b16 %v4190, %v4189
        %v4238 = vpack.c.b16 %v4192, %v4191
        %v4239 = vpack.c.b16 %v4194, %v4193
        %v4240 = vpack.c.b16 %v4196, %v4195
        %v4241 = vpack.c.b16 %v4198, %v4197
        %v4242 = vpack.c.b16 %v4200, %v4199
        %v4243 = vpack.c.b16 %v4202, %v4201
        %v4244 = vpack.c.b16 %v4204, %v4203
        %v4245 = vpack.c.b16 %v4206, %v4205
        %v4246 = vpack.c.b16 %v4208, %v4207
        %v4247 = vpack.c.b16 %v4210, %v4209
        %v4248 = vpack.c.b16 %v4212, %v4211
        %v4249 = vpack.c.b16 %v4214, %v4213
        %v4250 = vpack.c.b16 %v4216, %v4215
        %v4251 = vpack.c.b16 %v4218, %v4217
        %v4252 = vpack.c.b16 %v4220, %v4219
        %v4285 = vld [vmem:[%s220] sm:$0xff]
        %v4286 = vld [vmem:[%s220 + $0x8] sm:$0xf]
        %v4287 = vld [vmem:[%s220 + $0xc] sm:$0xff]
        %v4288 = vld [vmem:[%s220 + $0x14] sm:$0xf]
        %v4289 = vld [vmem:[%s220 + $0x18] sm:$0xff]
        %v4290 = vld [vmem:[%s220 + $0x20] sm:$0xf]
        %v4291 = vld [vmem:[%s220 + $0x24] sm:$0xff]
        %v4292 = vld [vmem:[%s220 + $0x2c] sm:$0xf]
        %v4293 = vld [vmem:[%s220 + $0x30] sm:$0xff]
        %v4294 = vld [vmem:[%s220 + $0x38] sm:$0xf]
        %v4295 = vld [vmem:[%s220 + $0x3c] sm:$0xff]
        %v4296 = vld [vmem:[%s220 + $0x44] sm:$0xf]
        %v4297 = vld [vmem:[%s220 + $0x48] sm:$0xff]
        %v4298 = vld [vmem:[%s220 + $0x50] sm:$0xf]
        %v4299 = vld [vmem:[%s220 + $0x54] sm:$0xff]
        %v4300 = vld [vmem:[%s220 + $0x5c] sm:$0xf]
        %v4301 = vld [vmem:[%s220 + $0x60] sm:$0xff]
        %v4302 = vld [vmem:[%s220 + $0x68] sm:$0xf]
        %v4303 = vld [vmem:[%s220 + $0x6c] sm:$0xff]
        %v4304 = vld [vmem:[%s220 + $0x74] sm:$0xf]
        %v4305 = vld [vmem:[%s220 + $0x78] sm:$0xff]
        %v4306 = vld [vmem:[%s220 + $0x80] sm:$0xf]
        %v4307 = vld [vmem:[%s220 + $0x84] sm:$0xff]
        %v4308 = vld [vmem:[%s220 + $0x8c] sm:$0xf]
        %v4309 = vld [vmem:[%s220 + $0x90] sm:$0xff]
        %v4310 = vld [vmem:[%s220 + $0x98] sm:$0xf]
        %v4311 = vld [vmem:[%s220 + $0x9c] sm:$0xff]
        %v4312 = vld [vmem:[%s220 + $0xa4] sm:$0xf]
        %v4313 = vld [vmem:[%s220 + $0xa8] sm:$0xff]
        %v4314 = vld [vmem:[%s220 + $0xb0] sm:$0xf]
        %v4315 = vld [vmem:[%s220 + $0xb4] sm:$0xff]
        %v4316 = vld [vmem:[%s220 + $0xbc] sm:$0xf]
        %v4317 = vld [vmem:[%s220 + $0xc0] sm:$0xff]
        %v4318 = vld [vmem:[%s220 + $0xc8] sm:$0xf]
        %v4319 = vld [vmem:[%s220 + $0xcc] sm:$0xff]
        %v4320 = vld [vmem:[%s220 + $0xd4] sm:$0xf]
        %v4321 = vld [vmem:[%s220 + $0xd8] sm:$0xff]
        %v4322 = vld [vmem:[%s220 + $0xe0] sm:$0xf]
        %v4323 = vld [vmem:[%s220 + $0xe4] sm:$0xff]
        %v4324 = vld [vmem:[%s220 + $0xec] sm:$0xf]
        %v4325 = vld [vmem:[%s220 + $0xf0] sm:$0xff]
        %v4326 = vld [vmem:[%s220 + $0xf8] sm:$0xf]
        %v4327 = vld [vmem:[%s220 + $0xfc] sm:$0xff]
        %v4328 = vld [vmem:[%s220 + $0x104] sm:$0xf]
        %v4329 = vld [vmem:[%s220 + $0x108] sm:$0xff]
        %v4330 = vld [vmem:[%s220 + $0x110] sm:$0xf]
        %v4331 = vld [vmem:[%s220 + $0x114] sm:$0xff]
        %v4332 = vld [vmem:[%s220 + $0x11c] sm:$0xf]
        %v4333 = vld [vmem:[%s220 + $0x120] sm:$0xff]
        %v4334 = vld [vmem:[%s220 + $0x128] sm:$0xf]
        %v4335 = vld [vmem:[%s220 + $0x12c] sm:$0xff]
        %v4336 = vld [vmem:[%s220 + $0x134] sm:$0xf]
        %v4337 = vld [vmem:[%s220 + $0x138] sm:$0xff]
        %v4338 = vld [vmem:[%s220 + $0x140] sm:$0xf]
        %v4339 = vld [vmem:[%s220 + $0x144] sm:$0xff]
        %v4340 = vld [vmem:[%s220 + $0x14c] sm:$0xf]
        %v4341 = vld [vmem:[%s220 + $0x150] sm:$0xff]
        %v4342 = vld [vmem:[%s220 + $0x158] sm:$0xf]
        %v4343 = vld [vmem:[%s220 + $0x15c] sm:$0xff]
        %v4344 = vld [vmem:[%s220 + $0x164] sm:$0xf]
        %v4345 = vld [vmem:[%s220 + $0x168] sm:$0xff]
        %v4346 = vld [vmem:[%s220 + $0x170] sm:$0xf]
        %v4347 = vld [vmem:[%s220 + $0x174] sm:$0xff]
        %v4348 = vld [vmem:[%s220 + $0x17c] sm:$0xf]
        %v4349 = vld [vmem:[%s220 + $0x180] sm:$0xff]
        %v4350 = vld [vmem:[%s220 + $0x188] sm:$0xf]
        %v4351 = vld [vmem:[%s220 + $0x18c] sm:$0xff]
        %v4352 = vld [vmem:[%s220 + $0x194] sm:$0xf]
        %v4353 = vld [vmem:[%s220 + $0x198] sm:$0xff]
        %v4354 = vld [vmem:[%s220 + $0x1a0] sm:$0xf]
        %v4355 = vld [vmem:[%s220 + $0x1a4] sm:$0xff]
        %v4356 = vld [vmem:[%s220 + $0x1ac] sm:$0xf]
        %v4357 = vld [vmem:[%s220 + $0x1b0] sm:$0xff]
        %v4358 = vld [vmem:[%s220 + $0x1b8] sm:$0xf]
        %v4359 = vld [vmem:[%s220 + $0x1bc] sm:$0xff]
        %v4360 = vld [vmem:[%s220 + $0x1c4] sm:$0xf]
        %v4361 = vld [vmem:[%s220 + $0x1c8] sm:$0xff]
        %v4362 = vld [vmem:[%s220 + $0x1d0] sm:$0xf]
        %v4363 = vld [vmem:[%s220 + $0x1d4] sm:$0xff]
        %v4364 = vld [vmem:[%s220 + $0x1dc] sm:$0xf]
        %v4365 = vld [vmem:[%s220 + $0x1e0] sm:$0xff]
        %v4366 = vld [vmem:[%s220 + $0x1e8] sm:$0xf]
        %v4367 = vld [vmem:[%s220 + $0x1ec] sm:$0xff]
        %v4368 = vld [vmem:[%s220 + $0x1f4] sm:$0xf]
        %v4369 = vld [vmem:[%s220 + $0x1f8] sm:$0xff]
        %v4370 = vld [vmem:[%s220 + $0x200] sm:$0xf]
        %v4371 = vld [vmem:[%s220 + $0x204] sm:$0xff]
        %v4372 = vld [vmem:[%s220 + $0x20c] sm:$0xf]
        %v4373 = vld [vmem:[%s220 + $0x210] sm:$0xff]
        %v4374 = vld [vmem:[%s220 + $0x218] sm:$0xf]
        %v4375 = vld [vmem:[%s220 + $0x21c] sm:$0xff]
        %v4376 = vld [vmem:[%s220 + $0x224] sm:$0xf]
        %v4377 = vld [vmem:[%s220 + $0x228] sm:$0xff]
        %v4378 = vld [vmem:[%s220 + $0x230] sm:$0xf]
        %v4379 = vld [vmem:[%s220 + $0x234] sm:$0xff]
        %v4380 = vld [vmem:[%s220 + $0x23c] sm:$0xf]
        %v4477 = vunpack.c.l.b16 %v4285
        %v4478 = vunpack.c.h.b16 %v4285
        %v4479 = vunpack.c.l.b16 %v4286
        %v4480 = vunpack.c.l.b16 %v4287
        %v4481 = vunpack.c.h.b16 %v4287
        %v4482 = vunpack.c.l.b16 %v4288
        %v4483 = vunpack.c.l.b16 %v4289
        %v4484 = vunpack.c.h.b16 %v4289
        %v4485 = vunpack.c.l.b16 %v4290
        %v4486 = vunpack.c.l.b16 %v4291
        %v4487 = vunpack.c.h.b16 %v4291
        %v4488 = vunpack.c.l.b16 %v4292
        %v4489 = vunpack.c.l.b16 %v4293
        %v4490 = vunpack.c.h.b16 %v4293
        %v4491 = vunpack.c.l.b16 %v4294
        %v4492 = vunpack.c.l.b16 %v4295
        %v4493 = vunpack.c.h.b16 %v4295
        %v4494 = vunpack.c.l.b16 %v4296
        %v4495 = vunpack.c.l.b16 %v4297
        %v4496 = vunpack.c.h.b16 %v4297
        %v4497 = vunpack.c.l.b16 %v4298
        %v4498 = vunpack.c.l.b16 %v4299
        %v4499 = vunpack.c.h.b16 %v4299
        %v4500 = vunpack.c.l.b16 %v4300
        %v4501 = vunpack.c.l.b16 %v4301
        %v4502 = vunpack.c.h.b16 %v4301
        %v4503 = vunpack.c.l.b16 %v4302
        %v4504 = vunpack.c.l.b16 %v4303
        %v4505 = vunpack.c.h.b16 %v4303
        %v4506 = vunpack.c.l.b16 %v4304
        %v4507 = vunpack.c.l.b16 %v4305
        %v4508 = vunpack.c.h.b16 %v4305
        %v4509 = vunpack.c.l.b16 %v4306
        %v4510 = vunpack.c.l.b16 %v4307
        %v4511 = vunpack.c.h.b16 %v4307
        %v4512 = vunpack.c.l.b16 %v4308
        %v4513 = vunpack.c.l.b16 %v4309
        %v4514 = vunpack.c.h.b16 %v4309
        %v4515 = vunpack.c.l.b16 %v4310
        %v4516 = vunpack.c.l.b16 %v4311
        %v4517 = vunpack.c.h.b16 %v4311
        %v4518 = vunpack.c.l.b16 %v4312
        %v4519 = vunpack.c.l.b16 %v4313
        %v4520 = vunpack.c.h.b16 %v4313
        %v4521 = vunpack.c.l.b16 %v4314
        %v4522 = vunpack.c.l.b16 %v4315
        %v4523 = vunpack.c.h.b16 %v4315
        %v4524 = vunpack.c.l.b16 %v4316
        %v4525 = vunpack.c.l.b16 %v4317
        %v4526 = vunpack.c.h.b16 %v4317
        %v4527 = vunpack.c.l.b16 %v4318
        %v4528 = vunpack.c.l.b16 %v4319
        %v4529 = vunpack.c.h.b16 %v4319
        %v4530 = vunpack.c.l.b16 %v4320
        %v4531 = vunpack.c.l.b16 %v4321
        %v4532 = vunpack.c.h.b16 %v4321
        %v4533 = vunpack.c.l.b16 %v4322
        %v4534 = vunpack.c.l.b16 %v4323
        %v4535 = vunpack.c.h.b16 %v4323
        %v4536 = vunpack.c.l.b16 %v4324
        %v4537 = vunpack.c.l.b16 %v4325
        %v4538 = vunpack.c.h.b16 %v4325
        %v4539 = vunpack.c.l.b16 %v4326
        %v4540 = vunpack.c.l.b16 %v4327
        %v4541 = vunpack.c.h.b16 %v4327
        %v4542 = vunpack.c.l.b16 %v4328
        %v4543 = vunpack.c.l.b16 %v4329
        %v4544 = vunpack.c.h.b16 %v4329
        %v4545 = vunpack.c.l.b16 %v4330
        %v4546 = vunpack.c.l.b16 %v4331
        %v4547 = vunpack.c.h.b16 %v4331
        %v4548 = vunpack.c.l.b16 %v4332
        %v4549 = vunpack.c.l.b16 %v4333
        %v4550 = vunpack.c.h.b16 %v4333
        %v4551 = vunpack.c.l.b16 %v4334
        %v4552 = vunpack.c.l.b16 %v4335
        %v4553 = vunpack.c.h.b16 %v4335
        %v4554 = vunpack.c.l.b16 %v4336
        %v4555 = vunpack.c.l.b16 %v4337
        %v4556 = vunpack.c.h.b16 %v4337
        %v4557 = vunpack.c.l.b16 %v4338
        %v4558 = vunpack.c.l.b16 %v4339
        %v4559 = vunpack.c.h.b16 %v4339
        %v4560 = vunpack.c.l.b16 %v4340
        %v4561 = vunpack.c.l.b16 %v4341
        %v4562 = vunpack.c.h.b16 %v4341
        %v4563 = vunpack.c.l.b16 %v4342
        %v4564 = vunpack.c.l.b16 %v4343
        %v4565 = vunpack.c.h.b16 %v4343
        %v4566 = vunpack.c.l.b16 %v4344
        %v4567 = vunpack.c.l.b16 %v4345
        %v4568 = vunpack.c.h.b16 %v4345
        %v4569 = vunpack.c.l.b16 %v4346
        %v4570 = vunpack.c.l.b16 %v4347
        %v4571 = vunpack.c.h.b16 %v4347
        %v4572 = vunpack.c.l.b16 %v4348
        %v4573 = vunpack.c.l.b16 %v4349
        %v4574 = vunpack.c.h.b16 %v4349
        %v4575 = vunpack.c.l.b16 %v4350
        %v4576 = vunpack.c.l.b16 %v4351
        %v4577 = vunpack.c.h.b16 %v4351
        %v4578 = vunpack.c.l.b16 %v4352
        %v4579 = vunpack.c.l.b16 %v4353
        %v4580 = vunpack.c.h.b16 %v4353
        %v4581 = vunpack.c.l.b16 %v4354
        %v4582 = vunpack.c.l.b16 %v4355
        %v4583 = vunpack.c.h.b16 %v4355
        %v4584 = vunpack.c.l.b16 %v4356
        %v4585 = vunpack.c.l.b16 %v4357
        %v4586 = vunpack.c.h.b16 %v4357
        %v4587 = vunpack.c.l.b16 %v4358
        %v4588 = vunpack.c.l.b16 %v4359
        %v4589 = vunpack.c.h.b16 %v4359
        %v4590 = vunpack.c.l.b16 %v4360
        %v4591 = vunpack.c.l.b16 %v4361
        %v4592 = vunpack.c.h.b16 %v4361
        %v4593 = vunpack.c.l.b16 %v4362
        %v4594 = vunpack.c.l.b16 %v4363
        %v4595 = vunpack.c.h.b16 %v4363
        %v4596 = vunpack.c.l.b16 %v4364
        %v4597 = vunpack.c.l.b16 %v4365
        %v4598 = vunpack.c.h.b16 %v4365
        %v4599 = vunpack.c.l.b16 %v4366
        %v4600 = vunpack.c.l.b16 %v4367
        %v4601 = vunpack.c.h.b16 %v4367
        %v4602 = vunpack.c.l.b16 %v4368
        %v4603 = vunpack.c.l.b16 %v4369
        %v4604 = vunpack.c.h.b16 %v4369
        %v4605 = vunpack.c.l.b16 %v4370
        %v4606 = vunpack.c.l.b16 %v4371
        %v4607 = vunpack.c.h.b16 %v4371
        %v4608 = vunpack.c.l.b16 %v4372
        %v4609 = vunpack.c.l.b16 %v4373
        %v4610 = vunpack.c.h.b16 %v4373
        %v4611 = vunpack.c.l.b16 %v4374
        %v4612 = vunpack.c.l.b16 %v4375
        %v4613 = vunpack.c.h.b16 %v4375
        %v4614 = vunpack.c.l.b16 %v4376
        %v4615 = vunpack.c.l.b16 %v4377
        %v4616 = vunpack.c.h.b16 %v4377
        %v4617 = vunpack.c.l.b16 %v4378
        %v4618 = vunpack.c.l.b16 %v4379
        %v4619 = vunpack.c.h.b16 %v4379
        %v4620 = vunpack.c.l.b16 %v4380
        %v4621 = vpack.c.b16 %v4480, %v4477
        %v4622 = vpack.c.b16 %v4481, %v4478
        %v4623 = vpack.c.b16 %v4482, %v4479
        %v4624 = vpack.c.b16 %v4486, %v4483
        %v4625 = vpack.c.b16 %v4487, %v4484
        %v4626 = vpack.c.b16 %v4488, %v4485
        %v4627 = vpack.c.b16 %v4492, %v4489
        %v4628 = vpack.c.b16 %v4493, %v4490
        %v4629 = vpack.c.b16 %v4494, %v4491
        %v4630 = vpack.c.b16 %v4498, %v4495
        %v4631 = vpack.c.b16 %v4499, %v4496
        %v4632 = vpack.c.b16 %v4500, %v4497
        %v4633 = vpack.c.b16 %v4504, %v4501
        %v4634 = vpack.c.b16 %v4505, %v4502
        %v4635 = vpack.c.b16 %v4506, %v4503
        %v4636 = vpack.c.b16 %v4510, %v4507
        %v4637 = vpack.c.b16 %v4511, %v4508
        %v4638 = vpack.c.b16 %v4512, %v4509
        %v4639 = vpack.c.b16 %v4516, %v4513
        %v4640 = vpack.c.b16 %v4517, %v4514
        %v4641 = vpack.c.b16 %v4518, %v4515
        %v4642 = vpack.c.b16 %v4522, %v4519
        %v4643 = vpack.c.b16 %v4523, %v4520
        %v4644 = vpack.c.b16 %v4524, %v4521
        %v4645 = vpack.c.b16 %v4528, %v4525
        %v4646 = vpack.c.b16 %v4529, %v4526
        %v4647 = vpack.c.b16 %v4530, %v4527
        %v4648 = vpack.c.b16 %v4534, %v4531
        %v4649 = vpack.c.b16 %v4535, %v4532
        %v4650 = vpack.c.b16 %v4536, %v4533
        %v4651 = vpack.c.b16 %v4540, %v4537
        %v4652 = vpack.c.b16 %v4541, %v4538
        %v4653 = vpack.c.b16 %v4542, %v4539
        %v4654 = vpack.c.b16 %v4546, %v4543
        %v4655 = vpack.c.b16 %v4547, %v4544
        %v4656 = vpack.c.b16 %v4548, %v4545
        %v4657 = vpack.c.b16 %v4552, %v4549
        %v4658 = vpack.c.b16 %v4553, %v4550
        %v4659 = vpack.c.b16 %v4554, %v4551
        %v4660 = vpack.c.b16 %v4558, %v4555
        %v4661 = vpack.c.b16 %v4559, %v4556
        %v4662 = vpack.c.b16 %v4560, %v4557
        %v4663 = vpack.c.b16 %v4564, %v4561
        %v4664 = vpack.c.b16 %v4565, %v4562
        %v4665 = vpack.c.b16 %v4566, %v4563
        %v4666 = vpack.c.b16 %v4570, %v4567
        %v4667 = vpack.c.b16 %v4571, %v4568
        %v4668 = vpack.c.b16 %v4572, %v4569
        %v4669 = vpack.c.b16 %v4576, %v4573
        %v4670 = vpack.c.b16 %v4577, %v4574
        %v4671 = vpack.c.b16 %v4578, %v4575
        %v4672 = vpack.c.b16 %v4582, %v4579
        %v4673 = vpack.c.b16 %v4583, %v4580
        %v4674 = vpack.c.b16 %v4584, %v4581
        %v4675 = vpack.c.b16 %v4588, %v4585
        %v4676 = vpack.c.b16 %v4589, %v4586
        %v4677 = vpack.c.b16 %v4590, %v4587
        %v4678 = vpack.c.b16 %v4594, %v4591
        %v4679 = vpack.c.b16 %v4595, %v4592
        %v4680 = vpack.c.b16 %v4596, %v4593
        %v4681 = vpack.c.b16 %v4600, %v4597
        %v4682 = vpack.c.b16 %v4601, %v4598
        %v4683 = vpack.c.b16 %v4602, %v4599
        %v4684 = vpack.c.b16 %v4606, %v4603
        %v4685 = vpack.c.b16 %v4607, %v4604
        %v4686 = vpack.c.b16 %v4608, %v4605
        %v4687 = vpack.c.b16 %v4612, %v4609
        %v4688 = vpack.c.b16 %v4613, %v4610
        %v4689 = vpack.c.b16 %v4614, %v4611
        %v4690 = vpack.c.b16 %v4618, %v4615
        %v4691 = vpack.c.b16 %v4619, %v4616
        %v4692 = vpack.c.b16 %v4620, %v4617
        %4765 = vmatpush.bf16.msra.mxu0 %v4642
        %4766 = vmatpush.bf16.msra.mxu0 %v4639
        %4767 = vmatpush.bf16.msra.mxu0 %v4636
        %4768 = vmatpush.bf16.msra.mxu0 %v4633
        %4769 = vmatpush.bf16.msra.mxu0 %v4630
        %4770 = vmatpush.bf16.msra.mxu0 %v4627
        %4771 = vmatpush.bf16.msra.mxu0 %v4624
        %4772 = vmatpush.bf16.msra.mxu0 %v4621
        %4773 = vmatmul.bf16.gmra.mxu0 %v3837
        %v4774 = vpop.f32.mrf.mxu0
        %v4775 = vadd.f32 0.0, %v4774
        %v4776 = vpop.f32.mrf.mxu0
        %v4777 = vadd.f32 0.0, %v4776
        %4778 = vmatmul.bf16.gmra.mxu0 %v3838
        %v4779 = vpop.f32.mrf.mxu0
        %v4780 = vpop.f32.mrf.mxu0
        %v4781 = vadd.f32 0.0, %v4780
        %4782 = vmatmul.bf16.gmra.mxu0 %v3839
        %v4783 = vpop.f32.mrf.mxu0
        %v4784 = vadd.f32 0.0, %v4783
        %v4785 = vpop.f32.mrf.mxu0
        %v4786 = vadd.f32 0.0, %v4785
        %4787 = vmatmul.bf16.gmra.mxu0 %v3840
        %v4788 = vpop.f32.mrf.mxu0
        %v4789 = vpop.f32.mrf.mxu0
        %v4790 = vadd.f32 0.0, %v4789
        %4791 = vmatmul.bf16.gmra.mxu0 %v3841
        %v4792 = vpop.f32.mrf.mxu0
        %v4793 = vadd.f32 0.0, %v4792
        %v4794 = vpop.f32.mrf.mxu0
        %v4795 = vadd.f32 0.0, %v4794
        %4796 = vmatmul.bf16.gmra.mxu0 %v3842
        %v4797 = vpop.f32.mrf.mxu0
        %v4798 = vpop.f32.mrf.mxu0
        %v4799 = vadd.f32 0.0, %v4798
        %4800 = vmatmul.bf16.gmra.mxu0 %v3843
        %v4801 = vpop.f32.mrf.mxu0
        %v4802 = vadd.f32 0.0, %v4801
        %v4803 = vpop.f32.mrf.mxu0
        %v4804 = vadd.f32 0.0, %v4803
        %4805 = vmatmul.bf16.gmra.mxu0 %v3844
        %v4806 = vpop.f32.mrf.mxu0
        %v4807 = vpop.f32.mrf.mxu0
        %v4808 = vadd.f32 0.0, %v4807
        %4809 = vmatmul.bf16.gmra.mxu0 %v3845
        %v4810 = vpop.f32.mrf.mxu0
        %v4811 = vadd.f32 0.0, %v4810
        %v4812 = vpop.f32.mrf.mxu0
        %v4813 = vadd.f32 0.0, %v4812
        %4814 = vmatmul.bf16.gmra.mxu0 %v3846
        %v4815 = vpop.f32.mrf.mxu0
        %v4816 = vpop.f32.mrf.mxu0
        %v4817 = vadd.f32 0.0, %v4816
        %4818 = vmatmul.bf16.gmra.mxu0 %v3847
        %v4819 = vpop.f32.mrf.mxu0
        %v4820 = vadd.f32 0.0, %v4819
        %v4821 = vpop.f32.mrf.mxu0
        %v4822 = vadd.f32 0.0, %v4821
        %4823 = vmatmul.bf16.gmra.mxu0 %v3848
        %v4824 = vpop.f32.mrf.mxu0
        %v4825 = vpop.f32.mrf.mxu0
        %v4826 = vadd.f32 0.0, %v4825
        %4827 = vmatmul.bf16.gmra.mxu0 %v3849
        %v4828 = vpop.f32.mrf.mxu0
        %v4829 = vadd.f32 0.0, %v4828
        %v4830 = vpop.f32.mrf.mxu0
        %v4831 = vadd.f32 0.0, %v4830
        %4832 = vmatmul.bf16.gmra.mxu0 %v3850
        %v4833 = vpop.f32.mrf.mxu0
        %v4834 = vpop.f32.mrf.mxu0
        %v4835 = vadd.f32 0.0, %v4834
        %4836 = vmatmul.bf16.gmra.mxu0 %v3851
        %v4837 = vpop.f32.mrf.mxu0
        %v4838 = vadd.f32 0.0, %v4837
        %v4839 = vpop.f32.mrf.mxu0
        %v4840 = vadd.f32 0.0, %v4839
        %4841 = vmatmul.bf16.gmra.mxu0 %v3852
        %v4842 = vpop.f32.mrf.mxu0
        %v4843 = vpop.f32.mrf.mxu0
        %v4844 = vadd.f32 0.0, %v4843
        %4845 = vmatmul.bf16.gmra.mxu0 %v3853
        %v4846 = vpop.f32.mrf.mxu0
        %v4847 = vadd.f32 0.0, %v4846
        %v4848 = vpop.f32.mrf.mxu0
        %v4849 = vadd.f32 0.0, %v4848
        %4850 = vmatmul.bf16.gmra.mxu0 %v3854
        %v4851 = vpop.f32.mrf.mxu0
        %v4852 = vpop.f32.mrf.mxu0
        %v4853 = vadd.f32 0.0, %v4852
        %4854 = vmatmul.bf16.gmra.mxu0 %v3855
        %v4855 = vpop.f32.mrf.mxu0
        %v4856 = vadd.f32 0.0, %v4855
        %v4857 = vpop.f32.mrf.mxu0
        %v4858 = vadd.f32 0.0, %v4857
        %4859 = vmatmul.bf16.gmra.mxu0 %v3856
        %v4860 = vpop.f32.mrf.mxu0
        %v4861 = vpop.f32.mrf.mxu0
        %v4862 = vadd.f32 0.0, %v4861
        %4863 = vmatmul.bf16.gmra.mxu0 %v3857
        %v4864 = vpop.f32.mrf.mxu0
        %v4865 = vadd.f32 0.0, %v4864
        %v4866 = vpop.f32.mrf.mxu0
        %v4867 = vadd.f32 0.0, %v4866
        %4868 = vmatmul.bf16.gmra.mxu0 %v3858
        %v4869 = vpop.f32.mrf.mxu0
        %v4870 = vpop.f32.mrf.mxu0
        %v4871 = vadd.f32 0.0, %v4870
        %4872 = vmatmul.bf16.gmra.mxu0 %v3859
        %v4873 = vpop.f32.mrf.mxu0
        %v4874 = vadd.f32 0.0, %v4873
        %v4875 = vpop.f32.mrf.mxu0
        %v4876 = vadd.f32 0.0, %v4875
        %4877 = vmatmul.bf16.gmra.mxu0 %v3860
        %v4878 = vpop.f32.mrf.mxu0
        %v4879 = vpop.f32.mrf.mxu0
        %v4880 = vadd.f32 0.0, %v4879
        %4881 = vmatmul.bf16.gmra.mxu0 %v3861
        %v4882 = vpop.f32.mrf.mxu0
        %v4883 = vadd.f32 0.0, %v4882
        %v4884 = vpop.f32.mrf.mxu0
        %v4885 = vadd.f32 0.0, %v4884
        %4886 = vmatmul.bf16.gmra.mxu0 %v3862
        %v4887 = vpop.f32.mrf.mxu0
        %v4888 = vpop.f32.mrf.mxu0
        %v4889 = vadd.f32 0.0, %v4888
        %4890 = vmatmul.bf16.gmra.mxu0 %v3863
        %v4891 = vpop.f32.mrf.mxu0
        %v4892 = vadd.f32 0.0, %v4891
        %v4893 = vpop.f32.mrf.mxu0
        %v4894 = vadd.f32 0.0, %v4893
        %4895 = vmatmul.bf16.gmra.mxu0 %v3864
        %v4896 = vpop.f32.mrf.mxu0
        %v4897 = vpop.f32.mrf.mxu0
        %v4898 = vadd.f32 0.0, %v4897
        %4899 = vmatmul.bf16.gmra.mxu0 %v3865
        %v4900 = vpop.f32.mrf.mxu0
        %v4901 = vadd.f32 0.0, %v4900
        %v4902 = vpop.f32.mrf.mxu0
        %v4903 = vadd.f32 0.0, %v4902
        %4904 = vmatmul.bf16.gmra.mxu0 %v3866
        %v4905 = vpop.f32.mrf.mxu0
        %v4906 = vpop.f32.mrf.mxu0
        %v4907 = vadd.f32 0.0, %v4906
        %4908 = vmatmul.bf16.gmra.mxu0 %v3867
        %v4909 = vpop.f32.mrf.mxu0
        %v4910 = vadd.f32 0.0, %v4909
        %v4911 = vpop.f32.mrf.mxu0
        %v4912 = vadd.f32 0.0, %v4911
        %4913 = vmatmul.bf16.gmra.mxu0 %v3868
        %v4914 = vpop.f32.mrf.mxu0
        %v4915 = vpop.f32.mrf.mxu0
        %v4916 = vadd.f32 0.0, %v4915
        %4917 = vdwg.mxu0
        %4918 = vmatpush.bf16.msra.mxu0 %v4666
        %4919 = vmatpush.bf16.msra.mxu0 %v4663
        %4920 = vmatpush.bf16.msra.mxu0 %v4660
        %4921 = vmatpush.bf16.msra.mxu0 %v4657
        %4922 = vmatpush.bf16.msra.mxu0 %v4654
        %4923 = vmatpush.bf16.msra.mxu0 %v4651
        %4924 = vmatpush.bf16.msra.mxu0 %v4648
        %4925 = vmatpush.bf16.msra.mxu0 %v4645
        %4926 = vmatmul.bf16.gmra.mxu0 %v4029
        %v4927 = vpop.f32.mrf.mxu0
        %v4928 = vadd.f32 %v4775, %v4927
        %v4929 = vpop.f32.mrf.mxu0
        %v4930 = vadd.f32 %v4777, %v4929
        %4931 = vmatmul.bf16.gmra.mxu0 %v4030
        %v4932 = vpop.f32.mrf.mxu0
        %v4933 = vpop.f32.mrf.mxu0
        %v4934 = vadd.f32 %v4781, %v4933
        %4935 = vmatmul.bf16.gmra.mxu0 %v4031
        %v4936 = vpop.f32.mrf.mxu0
        %v4937 = vadd.f32 %v4784, %v4936
        %v4938 = vpop.f32.mrf.mxu0
        %v4939 = vadd.f32 %v4786, %v4938
        %4940 = vmatmul.bf16.gmra.mxu0 %v4032
        %v4941 = vpop.f32.mrf.mxu0
        %v4942 = vpop.f32.mrf.mxu0
        %v4943 = vadd.f32 %v4790, %v4942
        %4944 = vmatmul.bf16.gmra.mxu0 %v4033
        %v4945 = vpop.f32.mrf.mxu0
        %v4946 = vadd.f32 %v4793, %v4945
        %v4947 = vpop.f32.mrf.mxu0
        %v4948 = vadd.f32 %v4795, %v4947
        %4949 = vmatmul.bf16.gmra.mxu0 %v4034
        %v4950 = vpop.f32.mrf.mxu0
        %v4951 = vpop.f32.mrf.mxu0
        %v4952 = vadd.f32 %v4799, %v4951
        %4953 = vmatmul.bf16.gmra.mxu0 %v4035
        %v4954 = vpop.f32.mrf.mxu0
        %v4955 = vadd.f32 %v4802, %v4954
        %v4956 = vpop.f32.mrf.mxu0
        %v4957 = vadd.f32 %v4804, %v4956
        %4958 = vmatmul.bf16.gmra.mxu0 %v4036
        %v4959 = vpop.f32.mrf.mxu0
        %v4960 = vpop.f32.mrf.mxu0
        %v4961 = vadd.f32 %v4808, %v4960
        %4962 = vmatmul.bf16.gmra.mxu0 %v4037
        %v4963 = vpop.f32.mrf.mxu0
        %v4964 = vadd.f32 %v4811, %v4963
        %v4965 = vpop.f32.mrf.mxu0
        %v4966 = vadd.f32 %v4813, %v4965
        %4967 = vmatmul.bf16.gmra.mxu0 %v4038
        %v4968 = vpop.f32.mrf.mxu0
        %v4969 = vpop.f32.mrf.mxu0
        %v4970 = vadd.f32 %v4817, %v4969
        %4971 = vmatmul.bf16.gmra.mxu0 %v4039
        %v4972 = vpop.f32.mrf.mxu0
        %v4973 = vadd.f32 %v4820, %v4972
        %v4974 = vpop.f32.mrf.mxu0
        %v4975 = vadd.f32 %v4822, %v4974
        %4976 = vmatmul.bf16.gmra.mxu0 %v4040
        %v4977 = vpop.f32.mrf.mxu0
        %v4978 = vpop.f32.mrf.mxu0
        %v4979 = vadd.f32 %v4826, %v4978
        %4980 = vmatmul.bf16.gmra.mxu0 %v4041
        %v4981 = vpop.f32.mrf.mxu0
        %v4982 = vadd.f32 %v4829, %v4981
        %v4983 = vpop.f32.mrf.mxu0
        %v4984 = vadd.f32 %v4831, %v4983
        %4985 = vmatmul.bf16.gmra.mxu0 %v4042
        %v4986 = vpop.f32.mrf.mxu0
        %v4987 = vpop.f32.mrf.mxu0
        %v4988 = vadd.f32 %v4835, %v4987
        %4989 = vmatmul.bf16.gmra.mxu0 %v4043
        %v4990 = vpop.f32.mrf.mxu0
        %v4991 = vadd.f32 %v4838, %v4990
        %v4992 = vpop.f32.mrf.mxu0
        %v4993 = vadd.f32 %v4840, %v4992
        %4994 = vmatmul.bf16.gmra.mxu0 %v4044
        %v4995 = vpop.f32.mrf.mxu0
        %v4996 = vpop.f32.mrf.mxu0
        %v4997 = vadd.f32 %v4844, %v4996
        %4998 = vmatmul.bf16.gmra.mxu0 %v4045
        %v4999 = vpop.f32.mrf.mxu0
        %v5000 = vadd.f32 %v4847, %v4999
        %v5001 = vpop.f32.mrf.mxu0
        %v5002 = vadd.f32 %v4849, %v5001
        %5003 = vmatmul.bf16.gmra.mxu0 %v4046
        %v5004 = vpop.f32.mrf.mxu0
        %v5005 = vpop.f32.mrf.mxu0
        %v5006 = vadd.f32 %v4853, %v5005
        %5007 = vmatmul.bf16.gmra.mxu0 %v4047
        %v5008 = vpop.f32.mrf.mxu0
        %v5009 = vadd.f32 %v4856, %v5008
        %v5010 = vpop.f32.mrf.mxu0
        %v5011 = vadd.f32 %v4858, %v5010
        %5012 = vmatmul.bf16.gmra.mxu0 %v4048
        %v5013 = vpop.f32.mrf.mxu0
        %v5014 = vpop.f32.mrf.mxu0
        %v5015 = vadd.f32 %v4862, %v5014
        %5016 = vmatmul.bf16.gmra.mxu0 %v4049
        %v5017 = vpop.f32.mrf.mxu0
        %v5018 = vadd.f32 %v4865, %v5017
        %v5019 = vpop.f32.mrf.mxu0
        %v5020 = vadd.f32 %v4867, %v5019
        %5021 = vmatmul.bf16.gmra.mxu0 %v4050
        %v5022 = vpop.f32.mrf.mxu0
        %v5023 = vpop.f32.mrf.mxu0
        %v5024 = vadd.f32 %v4871, %v5023
        %5025 = vmatmul.bf16.gmra.mxu0 %v4051
        %v5026 = vpop.f32.mrf.mxu0
        %v5027 = vadd.f32 %v4874, %v5026
        %v5028 = vpop.f32.mrf.mxu0
        %v5029 = vadd.f32 %v4876, %v5028
        %5030 = vmatmul.bf16.gmra.mxu0 %v4052
        %v5031 = vpop.f32.mrf.mxu0
        %v5032 = vpop.f32.mrf.mxu0
        %v5033 = vadd.f32 %v4880, %v5032
        %5034 = vmatmul.bf16.gmra.mxu0 %v4053
        %v5035 = vpop.f32.mrf.mxu0
        %v5036 = vadd.f32 %v4883, %v5035
        %v5037 = vpop.f32.mrf.mxu0
        %v5038 = vadd.f32 %v4885, %v5037
        %5039 = vmatmul.bf16.gmra.mxu0 %v4054
        %v5040 = vpop.f32.mrf.mxu0
        %v5041 = vpop.f32.mrf.mxu0
        %v5042 = vadd.f32 %v4889, %v5041
        %5043 = vmatmul.bf16.gmra.mxu0 %v4055
        %v5044 = vpop.f32.mrf.mxu0
        %v5045 = vadd.f32 %v4892, %v5044
        %v5046 = vpop.f32.mrf.mxu0
        %v5047 = vadd.f32 %v4894, %v5046
        %5048 = vmatmul.bf16.gmra.mxu0 %v4056
        %v5049 = vpop.f32.mrf.mxu0
        %v5050 = vpop.f32.mrf.mxu0
        %v5051 = vadd.f32 %v4898, %v5050
        %5052 = vmatmul.bf16.gmra.mxu0 %v4057
        %v5053 = vpop.f32.mrf.mxu0
        %v5054 = vadd.f32 %v4901, %v5053
        %v5055 = vpop.f32.mrf.mxu0
        %v5056 = vadd.f32 %v4903, %v5055
        %5057 = vmatmul.bf16.gmra.mxu0 %v4058
        %v5058 = vpop.f32.mrf.mxu0
        %v5059 = vpop.f32.mrf.mxu0
        %v5060 = vadd.f32 %v4907, %v5059
        %5061 = vmatmul.bf16.gmra.mxu0 %v4059
        %v5062 = vpop.f32.mrf.mxu0
        %v5063 = vadd.f32 %v4910, %v5062
        %v5064 = vpop.f32.mrf.mxu0
        %v5065 = vadd.f32 %v4912, %v5064
        %5066 = vmatmul.bf16.gmra.mxu0 %v4060
        %v5067 = vpop.f32.mrf.mxu0
        %v5068 = vpop.f32.mrf.mxu0
        %v5069 = vadd.f32 %v4916, %v5068
        %5070 = vdwg.mxu0
        %5071 = vmatpush.bf16.msra.mxu0 %v4690
        %5072 = vmatpush.bf16.msra.mxu0 %v4687
        %5073 = vmatpush.bf16.msra.mxu0 %v4684
        %5074 = vmatpush.bf16.msra.mxu0 %v4681
        %5075 = vmatpush.bf16.msra.mxu0 %v4678
        %5076 = vmatpush.bf16.msra.mxu0 %v4675
        %5077 = vmatpush.bf16.msra.mxu0 %v4672
        %5078 = vmatpush.bf16.msra.mxu0 %v4669
        %5079 = vmatmul.bf16.gmra.mxu0 %v4221
        %v5080 = vpop.f32.mrf.mxu0
        %v5081 = vadd.f32 %v4928, %v5080
        %v5082 = vpop.f32.mrf.mxu0
        %v5083 = vadd.f32 %v4930, %v5082
        %5084 = vmatmul.bf16.gmra.mxu0 %v4222
        %v5085 = vpop.f32.mrf.mxu0
        %v5086 = vpop.f32.mrf.mxu0
        %v5087 = vadd.f32 %v4934, %v5086
        %5088 = vmatmul.bf16.gmra.mxu0 %v4223
        %v5089 = vpop.f32.mrf.mxu0
        %v5090 = vadd.f32 %v4937, %v5089
        %v5091 = vpop.f32.mrf.mxu0
        %v5092 = vadd.f32 %v4939, %v5091
        %5093 = vmatmul.bf16.gmra.mxu0 %v4224
        %v5094 = vpop.f32.mrf.mxu0
        %v5095 = vpop.f32.mrf.mxu0
        %v5096 = vadd.f32 %v4943, %v5095
        %5097 = vmatmul.bf16.gmra.mxu0 %v4225
        %v5098 = vpop.f32.mrf.mxu0
        %v5099 = vadd.f32 %v4946, %v5098
        %v5100 = vpop.f32.mrf.mxu0
        %v5101 = vadd.f32 %v4948, %v5100
        %5102 = vmatmul.bf16.gmra.mxu0 %v4226
        %v5103 = vpop.f32.mrf.mxu0
        %v5104 = vpop.f32.mrf.mxu0
        %v5105 = vadd.f32 %v4952, %v5104
        %5106 = vmatmul.bf16.gmra.mxu0 %v4227
        %v5107 = vpop.f32.mrf.mxu0
        %v5108 = vadd.f32 %v4955, %v5107
        %v5109 = vpop.f32.mrf.mxu0
        %v5110 = vadd.f32 %v4957, %v5109
        %5111 = vmatmul.bf16.gmra.mxu0 %v4228
        %v5112 = vpop.f32.mrf.mxu0
        %v5113 = vpop.f32.mrf.mxu0
        %v5114 = vadd.f32 %v4961, %v5113
        %5115 = vmatmul.bf16.gmra.mxu0 %v4229
        %v5116 = vpop.f32.mrf.mxu0
        %v5117 = vadd.f32 %v4964, %v5116
        %v5118 = vpop.f32.mrf.mxu0
        %v5119 = vadd.f32 %v4966, %v5118
        %5120 = vmatmul.bf16.gmra.mxu0 %v4230
        %v5121 = vpop.f32.mrf.mxu0
        %v5122 = vpop.f32.mrf.mxu0
        %v5123 = vadd.f32 %v4970, %v5122
        %5124 = vmatmul.bf16.gmra.mxu0 %v4231
        %v5125 = vpop.f32.mrf.mxu0
        %v5126 = vadd.f32 %v4973, %v5125
        %v5127 = vpop.f32.mrf.mxu0
        %v5128 = vadd.f32 %v4975, %v5127
        %5129 = vmatmul.bf16.gmra.mxu0 %v4232
        %v5130 = vpop.f32.mrf.mxu0
        %v5131 = vpop.f32.mrf.mxu0
        %v5132 = vadd.f32 %v4979, %v5131
        %5133 = vmatmul.bf16.gmra.mxu0 %v4233
        %v5134 = vpop.f32.mrf.mxu0
        %v5135 = vadd.f32 %v4982, %v5134
        %v5136 = vpop.f32.mrf.mxu0
        %v5137 = vadd.f32 %v4984, %v5136
        %5138 = vmatmul.bf16.gmra.mxu0 %v4234
        %v5139 = vpop.f32.mrf.mxu0
        %v5140 = vpop.f32.mrf.mxu0
        %v5141 = vadd.f32 %v4988, %v5140
        %5142 = vmatmul.bf16.gmra.mxu0 %v4235
        %v5143 = vpop.f32.mrf.mxu0
        %v5144 = vadd.f32 %v4991, %v5143
        %v5145 = vpop.f32.mrf.mxu0
        %v5146 = vadd.f32 %v4993, %v5145
        %5147 = vmatmul.bf16.gmra.mxu0 %v4236
        %v5148 = vpop.f32.mrf.mxu0
        %v5149 = vpop.f32.mrf.mxu0
        %v5150 = vadd.f32 %v4997, %v5149
        %5151 = vmatmul.bf16.gmra.mxu0 %v4237
        %v5152 = vpop.f32.mrf.mxu0
        %v5153 = vadd.f32 %v5000, %v5152
        %v5154 = vpop.f32.mrf.mxu0
        %v5155 = vadd.f32 %v5002, %v5154
        %5156 = vmatmul.bf16.gmra.mxu0 %v4238
        %v5157 = vpop.f32.mrf.mxu0
        %v5158 = vpop.f32.mrf.mxu0
        %v5159 = vadd.f32 %v5006, %v5158
        %5160 = vmatmul.bf16.gmra.mxu0 %v4239
        %v5161 = vpop.f32.mrf.mxu0
        %v5162 = vadd.f32 %v5009, %v5161
        %v5163 = vpop.f32.mrf.mxu0
        %v5164 = vadd.f32 %v5011, %v5163
        %5165 = vmatmul.bf16.gmra.mxu0 %v4240
        %v5166 = vpop.f32.mrf.mxu0
        %v5167 = vpop.f32.mrf.mxu0
        %v5168 = vadd.f32 %v5015, %v5167
        %5169 = vmatmul.bf16.gmra.mxu0 %v4241
        %v5170 = vpop.f32.mrf.mxu0
        %v5171 = vadd.f32 %v5018, %v5170
        %v5172 = vpop.f32.mrf.mxu0
        %v5173 = vadd.f32 %v5020, %v5172
        %5174 = vmatmul.bf16.gmra.mxu0 %v4242
        %v5175 = vpop.f32.mrf.mxu0
        %v5176 = vpop.f32.mrf.mxu0
        %v5177 = vadd.f32 %v5024, %v5176
        %5178 = vmatmul.bf16.gmra.mxu0 %v4243
        %v5179 = vpop.f32.mrf.mxu0
        %v5180 = vadd.f32 %v5027, %v5179
        %v5181 = vpop.f32.mrf.mxu0
        %v5182 = vadd.f32 %v5029, %v5181
        %5183 = vmatmul.bf16.gmra.mxu0 %v4244
        %v5184 = vpop.f32.mrf.mxu0
        %v5185 = vpop.f32.mrf.mxu0
        %v5186 = vadd.f32 %v5033, %v5185
        %5187 = vmatmul.bf16.gmra.mxu0 %v4245
        %v5188 = vpop.f32.mrf.mxu0
        %v5189 = vadd.f32 %v5036, %v5188
        %v5190 = vpop.f32.mrf.mxu0
        %v5191 = vadd.f32 %v5038, %v5190
        %5192 = vmatmul.bf16.gmra.mxu0 %v4246
        %v5193 = vpop.f32.mrf.mxu0
        %v5194 = vpop.f32.mrf.mxu0
        %v5195 = vadd.f32 %v5042, %v5194
        %5196 = vmatmul.bf16.gmra.mxu0 %v4247
        %v5197 = vpop.f32.mrf.mxu0
        %v5198 = vadd.f32 %v5045, %v5197
        %v5199 = vpop.f32.mrf.mxu0
        %v5200 = vadd.f32 %v5047, %v5199
        %5201 = vmatmul.bf16.gmra.mxu0 %v4248
        %v5202 = vpop.f32.mrf.mxu0
        %v5203 = vpop.f32.mrf.mxu0
        %v5204 = vadd.f32 %v5051, %v5203
        %5205 = vmatmul.bf16.gmra.mxu0 %v4249
        %v5206 = vpop.f32.mrf.mxu0
        %v5207 = vadd.f32 %v5054, %v5206
        %v5208 = vpop.f32.mrf.mxu0
        %v5209 = vadd.f32 %v5056, %v5208
        %5210 = vmatmul.bf16.gmra.mxu0 %v4250
        %v5211 = vpop.f32.mrf.mxu0
        %v5212 = vpop.f32.mrf.mxu0
        %v5213 = vadd.f32 %v5060, %v5212
        %5214 = vmatmul.bf16.gmra.mxu0 %v4251
        %v5215 = vpop.f32.mrf.mxu0
        %v5216 = vadd.f32 %v5063, %v5215
        %v5217 = vpop.f32.mrf.mxu0
        %v5218 = vadd.f32 %v5065, %v5217
        %5219 = vmatmul.bf16.gmra.mxu0 %v4252
        %v5220 = vpop.f32.mrf.mxu0
        %v5221 = vpop.f32.mrf.mxu0
        %v5222 = vadd.f32 %v5069, %v5221
        %5223 = vdwg.mxu0
        %5224 = vmatpush.bf16.msra.mxu0 %v4643
        %5225 = vmatpush.bf16.msra.mxu0 %v4640
        %5226 = vmatpush.bf16.msra.mxu0 %v4637
        %5227 = vmatpush.bf16.msra.mxu0 %v4634
        %5228 = vmatpush.bf16.msra.mxu0 %v4631
        %5229 = vmatpush.bf16.msra.mxu0 %v4628
        %5230 = vmatpush.bf16.msra.mxu0 %v4625
        %5231 = vmatpush.bf16.msra.mxu0 %v4622
        %5232 = vmatmul.bf16.gmra.mxu0 %v3837
        %v5233 = vpop.f32.mrf.mxu0
        %v5234 = vadd.f32 0.0, %v5233
        %v5235 = vpop.f32.mrf.mxu0
        %v5236 = vadd.f32 0.0, %v5235
        %5237 = vmatmul.bf16.gmra.mxu0 %v3838
        %v5238 = vpop.f32.mrf.mxu0
        %v5239 = vpop.f32.mrf.mxu0
        %5240 = vmatmul.bf16.gmra.mxu0 %v3839
        %v5241 = vpop.f32.mrf.mxu0
        %v5242 = vadd.f32 0.0, %v5241
        %v5243 = vpop.f32.mrf.mxu0
        %v5244 = vadd.f32 0.0, %v5243
        %5245 = vmatmul.bf16.gmra.mxu0 %v3840
        %v5246 = vpop.f32.mrf.mxu0
        %v5247 = vpop.f32.mrf.mxu0
        %5248 = vmatmul.bf16.gmra.mxu0 %v3841
        %v5249 = vpop.f32.mrf.mxu0
        %v5250 = vadd.f32 0.0, %v5249
        %v5251 = vpop.f32.mrf.mxu0
        %v5252 = vadd.f32 0.0, %v5251
        %5253 = vmatmul.bf16.gmra.mxu0 %v3842
        %v5254 = vpop.f32.mrf.mxu0
        %v5255 = vpop.f32.mrf.mxu0
        %5256 = vmatmul.bf16.gmra.mxu0 %v3843
        %v5257 = vpop.f32.mrf.mxu0
        %v5258 = vadd.f32 0.0, %v5257
        %v5259 = vpop.f32.mrf.mxu0
        %v5260 = vadd.f32 0.0, %v5259
        %5261 = vmatmul.bf16.gmra.mxu0 %v3844
        %v5262 = vpop.f32.mrf.mxu0
        %v5263 = vpop.f32.mrf.mxu0
        %5264 = vmatmul.bf16.gmra.mxu0 %v3845
        %v5265 = vpop.f32.mrf.mxu0
        %v5266 = vadd.f32 0.0, %v5265
        %v5267 = vpop.f32.mrf.mxu0
        %v5268 = vadd.f32 0.0, %v5267
        %5269 = vmatmul.bf16.gmra.mxu0 %v3846
        %v5270 = vpop.f32.mrf.mxu0
        %v5271 = vpop.f32.mrf.mxu0
        %5272 = vmatmul.bf16.gmra.mxu0 %v3847
        %v5273 = vpop.f32.mrf.mxu0
        %v5274 = vadd.f32 0.0, %v5273
        %v5275 = vpop.f32.mrf.mxu0
        %v5276 = vadd.f32 0.0, %v5275
        %5277 = vmatmul.bf16.gmra.mxu0 %v3848
        %v5278 = vpop.f32.mrf.mxu0
        %v5279 = vpop.f32.mrf.mxu0
        %5280 = vmatmul.bf16.gmra.mxu0 %v3849
        %v5281 = vpop.f32.mrf.mxu0
        %v5282 = vadd.f32 0.0, %v5281
        %v5283 = vpop.f32.mrf.mxu0
        %v5284 = vadd.f32 0.0, %v5283
        %5285 = vmatmul.bf16.gmra.mxu0 %v3850
        %v5286 = vpop.f32.mrf.mxu0
        %v5287 = vpop.f32.mrf.mxu0
        %5288 = vmatmul.bf16.gmra.mxu0 %v3851
        %v5289 = vpop.f32.mrf.mxu0
        %v5290 = vadd.f32 0.0, %v5289
        %v5291 = vpop.f32.mrf.mxu0
        %v5292 = vadd.f32 0.0, %v5291
        %5293 = vmatmul.bf16.gmra.mxu0 %v3852
        %v5294 = vpop.f32.mrf.mxu0
        %v5295 = vpop.f32.mrf.mxu0
        %5296 = vmatmul.bf16.gmra.mxu0 %v3853
        %v5297 = vpop.f32.mrf.mxu0
        %v5298 = vadd.f32 0.0, %v5297
        %v5299 = vpop.f32.mrf.mxu0
        %v5300 = vadd.f32 0.0, %v5299
        %5301 = vmatmul.bf16.gmra.mxu0 %v3854
        %v5302 = vpop.f32.mrf.mxu0
        %v5303 = vpop.f32.mrf.mxu0
        %5304 = vmatmul.bf16.gmra.mxu0 %v3855
        %v5305 = vpop.f32.mrf.mxu0
        %v5306 = vadd.f32 0.0, %v5305
        %v5307 = vpop.f32.mrf.mxu0
        %v5308 = vadd.f32 0.0, %v5307
        %5309 = vmatmul.bf16.gmra.mxu0 %v3856
        %v5310 = vpop.f32.mrf.mxu0
        %v5311 = vpop.f32.mrf.mxu0
        %5312 = vmatmul.bf16.gmra.mxu0 %v3857
        %v5313 = vpop.f32.mrf.mxu0
        %v5314 = vadd.f32 0.0, %v5313
        %v5315 = vpop.f32.mrf.mxu0
        %v5316 = vadd.f32 0.0, %v5315
        %5317 = vmatmul.bf16.gmra.mxu0 %v3858
        %v5318 = vpop.f32.mrf.mxu0
        %v5319 = vpop.f32.mrf.mxu0
        %5320 = vmatmul.bf16.gmra.mxu0 %v3859
        %v5321 = vpop.f32.mrf.mxu0
        %v5322 = vadd.f32 0.0, %v5321
        %v5323 = vpop.f32.mrf.mxu0
        %v5324 = vadd.f32 0.0, %v5323
        %5325 = vmatmul.bf16.gmra.mxu0 %v3860
        %v5326 = vpop.f32.mrf.mxu0
        %v5327 = vpop.f32.mrf.mxu0
        %5328 = vmatmul.bf16.gmra.mxu0 %v3861
        %v5329 = vpop.f32.mrf.mxu0
        %v5330 = vadd.f32 0.0, %v5329
        %v5331 = vpop.f32.mrf.mxu0
        %v5332 = vadd.f32 0.0, %v5331
        %5333 = vmatmul.bf16.gmra.mxu0 %v3862
        %v5334 = vpop.f32.mrf.mxu0
        %v5335 = vpop.f32.mrf.mxu0
        %5336 = vmatmul.bf16.gmra.mxu0 %v3863
        %v5337 = vpop.f32.mrf.mxu0
        %v5338 = vadd.f32 0.0, %v5337
        %v5339 = vpop.f32.mrf.mxu0
        %v5340 = vadd.f32 0.0, %v5339
        %5341 = vmatmul.bf16.gmra.mxu0 %v3864
        %v5342 = vpop.f32.mrf.mxu0
        %v5343 = vpop.f32.mrf.mxu0
        %5344 = vmatmul.bf16.gmra.mxu0 %v3865
        %v5345 = vpop.f32.mrf.mxu0
        %v5346 = vadd.f32 0.0, %v5345
        %v5347 = vpop.f32.mrf.mxu0
        %v5348 = vadd.f32 0.0, %v5347
        %5349 = vmatmul.bf16.gmra.mxu0 %v3866
        %v5350 = vpop.f32.mrf.mxu0
        %v5351 = vpop.f32.mrf.mxu0
        %5352 = vmatmul.bf16.gmra.mxu0 %v3867
        %v5353 = vpop.f32.mrf.mxu0
        %v5354 = vadd.f32 0.0, %v5353
        %v5355 = vpop.f32.mrf.mxu0
        %v5356 = vadd.f32 0.0, %v5355
        %5357 = vmatmul.bf16.gmra.mxu0 %v3868
        %v5358 = vpop.f32.mrf.mxu0
        %v5359 = vpop.f32.mrf.mxu0
        %5360 = vdwg.mxu0
        %5361 = vmatpush.bf16.msra.mxu0 %v4667
        %5362 = vmatpush.bf16.msra.mxu0 %v4664
        %5363 = vmatpush.bf16.msra.mxu0 %v4661
        %5364 = vmatpush.bf16.msra.mxu0 %v4658
        %5365 = vmatpush.bf16.msra.mxu0 %v4655
        %5366 = vmatpush.bf16.msra.mxu0 %v4652
        %5367 = vmatpush.bf16.msra.mxu0 %v4649
        %5368 = vmatpush.bf16.msra.mxu0 %v4646
        %5369 = vmatmul.bf16.gmra.mxu0 %v4029
        %v5370 = vpop.f32.mrf.mxu0
        %v5371 = vadd.f32 %v5234, %v5370
        %v5372 = vpop.f32.mrf.mxu0
        %v5373 = vadd.f32 %v5236, %v5372
        %5374 = vmatmul.bf16.gmra.mxu0 %v4030
        %v5375 = vpop.f32.mrf.mxu0
        %v5376 = vpop.f32.mrf.mxu0
        %5377 = vmatmul.bf16.gmra.mxu0 %v4031
        %v5378 = vpop.f32.mrf.mxu0
        %v5379 = vadd.f32 %v5242, %v5378
        %v5380 = vpop.f32.mrf.mxu0
        %v5381 = vadd.f32 %v5244, %v5380
        %5382 = vmatmul.bf16.gmra.mxu0 %v4032
        %v5383 = vpop.f32.mrf.mxu0
        %v5384 = vpop.f32.mrf.mxu0
        %5385 = vmatmul.bf16.gmra.mxu0 %v4033
        %v5386 = vpop.f32.mrf.mxu0
        %v5387 = vadd.f32 %v5250, %v5386
        %v5388 = vpop.f32.mrf.mxu0
        %v5389 = vadd.f32 %v5252, %v5388
        %5390 = vmatmul.bf16.gmra.mxu0 %v4034
        %v5391 = vpop.f32.mrf.mxu0
        %v5392 = vpop.f32.mrf.mxu0
        %5393 = vmatmul.bf16.gmra.mxu0 %v4035
        %v5394 = vpop.f32.mrf.mxu0
        %v5395 = vadd.f32 %v5258, %v5394
        %v5396 = vpop.f32.mrf.mxu0
        %v5397 = vadd.f32 %v5260, %v5396
        %5398 = vmatmul.bf16.gmra.mxu0 %v4036
        %v5399 = vpop.f32.mrf.mxu0
        %v5400 = vpop.f32.mrf.mxu0
        %5401 = vmatmul.bf16.gmra.mxu0 %v4037
        %v5402 = vpop.f32.mrf.mxu0
        %v5403 = vadd.f32 %v5266, %v5402
        %v5404 = vpop.f32.mrf.mxu0
        %v5405 = vadd.f32 %v5268, %v5404
        %5406 = vmatmul.bf16.gmra.mxu0 %v4038
        %v5407 = vpop.f32.mrf.mxu0
        %v5408 = vpop.f32.mrf.mxu0
        %5409 = vmatmul.bf16.gmra.mxu0 %v4039
        %v5410 = vpop.f32.mrf.mxu0
        %v5411 = vadd.f32 %v5274, %v5410
        %v5412 = vpop.f32.mrf.mxu0
        %v5413 = vadd.f32 %v5276, %v5412
        %5414 = vmatmul.bf16.gmra.mxu0 %v4040
        %v5415 = vpop.f32.mrf.mxu0
        %v5416 = vpop.f32.mrf.mxu0
        %5417 = vmatmul.bf16.gmra.mxu0 %v4041
        %v5418 = vpop.f32.mrf.mxu0
        %v5419 = vadd.f32 %v5282, %v5418
        %v5420 = vpop.f32.mrf.mxu0
        %v5421 = vadd.f32 %v5284, %v5420
        %5422 = vmatmul.bf16.gmra.mxu0 %v4042
        %v5423 = vpop.f32.mrf.mxu0
        %v5424 = vpop.f32.mrf.mxu0
        %5425 = vmatmul.bf16.gmra.mxu0 %v4043
        %v5426 = vpop.f32.mrf.mxu0
        %v5427 = vadd.f32 %v5290, %v5426
        %v5428 = vpop.f32.mrf.mxu0
        %v5429 = vadd.f32 %v5292, %v5428
        %5430 = vmatmul.bf16.gmra.mxu0 %v4044
        %v5431 = vpop.f32.mrf.mxu0
        %v5432 = vpop.f32.mrf.mxu0
        %5433 = vmatmul.bf16.gmra.mxu0 %v4045
        %v5434 = vpop.f32.mrf.mxu0
        %v5435 = vadd.f32 %v5298, %v5434
        %v5436 = vpop.f32.mrf.mxu0
        %v5437 = vadd.f32 %v5300, %v5436
        %5438 = vmatmul.bf16.gmra.mxu0 %v4046
        %v5439 = vpop.f32.mrf.mxu0
        %v5440 = vpop.f32.mrf.mxu0
        %5441 = vmatmul.bf16.gmra.mxu0 %v4047
        %v5442 = vpop.f32.mrf.mxu0
        %v5443 = vadd.f32 %v5306, %v5442
        %v5444 = vpop.f32.mrf.mxu0
        %v5445 = vadd.f32 %v5308, %v5444
        %5446 = vmatmul.bf16.gmra.mxu0 %v4048
        %v5447 = vpop.f32.mrf.mxu0
        %v5448 = vpop.f32.mrf.mxu0
        %5449 = vmatmul.bf16.gmra.mxu0 %v4049
        %v5450 = vpop.f32.mrf.mxu0
        %v5451 = vadd.f32 %v5314, %v5450
        %v5452 = vpop.f32.mrf.mxu0
        %v5453 = vadd.f32 %v5316, %v5452
        %5454 = vmatmul.bf16.gmra.mxu0 %v4050
        %v5455 = vpop.f32.mrf.mxu0
        %v5456 = vpop.f32.mrf.mxu0
        %5457 = vmatmul.bf16.gmra.mxu0 %v4051
        %v5458 = vpop.f32.mrf.mxu0
        %v5459 = vadd.f32 %v5322, %v5458
        %v5460 = vpop.f32.mrf.mxu0
        %v5461 = vadd.f32 %v5324, %v5460
        %5462 = vmatmul.bf16.gmra.mxu0 %v4052
        %v5463 = vpop.f32.mrf.mxu0
        %v5464 = vpop.f32.mrf.mxu0
        %5465 = vmatmul.bf16.gmra.mxu0 %v4053
        %v5466 = vpop.f32.mrf.mxu0
        %v5467 = vadd.f32 %v5330, %v5466
        %v5468 = vpop.f32.mrf.mxu0
        %v5469 = vadd.f32 %v5332, %v5468
        %5470 = vmatmul.bf16.gmra.mxu0 %v4054
        %v5471 = vpop.f32.mrf.mxu0
        %v5472 = vpop.f32.mrf.mxu0
        %5473 = vmatmul.bf16.gmra.mxu0 %v4055
        %v5474 = vpop.f32.mrf.mxu0
        %v5475 = vadd.f32 %v5338, %v5474
        %v5476 = vpop.f32.mrf.mxu0
        %v5477 = vadd.f32 %v5340, %v5476
        %5478 = vmatmul.bf16.gmra.mxu0 %v4056
        %v5479 = vpop.f32.mrf.mxu0
        %v5480 = vpop.f32.mrf.mxu0
        %5481 = vmatmul.bf16.gmra.mxu0 %v4057
        %v5482 = vpop.f32.mrf.mxu0
        %v5483 = vadd.f32 %v5346, %v5482
        %v5484 = vpop.f32.mrf.mxu0
        %v5485 = vadd.f32 %v5348, %v5484
        %5486 = vmatmul.bf16.gmra.mxu0 %v4058
        %v5487 = vpop.f32.mrf.mxu0
        %v5488 = vpop.f32.mrf.mxu0
        %5489 = vmatmul.bf16.gmra.mxu0 %v4059
        %v5490 = vpop.f32.mrf.mxu0
        %v5491 = vadd.f32 %v5354, %v5490
        %v5492 = vpop.f32.mrf.mxu0
        %v5493 = vadd.f32 %v5356, %v5492
        %5494 = vmatmul.bf16.gmra.mxu0 %v4060
        %v5495 = vpop.f32.mrf.mxu0
        %v5496 = vpop.f32.mrf.mxu0
        %5497 = vdwg.mxu0
        %5498 = vmatpush.bf16.msra.mxu0 %v4691
        %5499 = vmatpush.bf16.msra.mxu0 %v4688
        %5500 = vmatpush.bf16.msra.mxu0 %v4685
        %5501 = vmatpush.bf16.msra.mxu0 %v4682
        %5502 = vmatpush.bf16.msra.mxu0 %v4679
        %5503 = vmatpush.bf16.msra.mxu0 %v4676
        %5504 = vmatpush.bf16.msra.mxu0 %v4673
        %5505 = vmatpush.bf16.msra.mxu0 %v4670
        %5506 = vmatmul.bf16.gmra.mxu0 %v4221
        %v5507 = vpop.f32.mrf.mxu0
        %v5508 = vadd.f32 %v5371, %v5507
        %v5509 = vpop.f32.mrf.mxu0
        %v5510 = vadd.f32 %v5373, %v5509
        %5511 = vmatmul.bf16.gmra.mxu0 %v4222
        %v5512 = vpop.f32.mrf.mxu0
        %v5513 = vpop.f32.mrf.mxu0
        %5514 = vmatmul.bf16.gmra.mxu0 %v4223
        %v5515 = vpop.f32.mrf.mxu0
        %v5516 = vadd.f32 %v5379, %v5515
        %v5517 = vpop.f32.mrf.mxu0
        %v5518 = vadd.f32 %v5381, %v5517
        %5519 = vmatmul.bf16.gmra.mxu0 %v4224
        %v5520 = vpop.f32.mrf.mxu0
        %v5521 = vpop.f32.mrf.mxu0
        %5522 = vmatmul.bf16.gmra.mxu0 %v4225
        %v5523 = vpop.f32.mrf.mxu0
        %v5524 = vadd.f32 %v5387, %v5523
        %v5525 = vpop.f32.mrf.mxu0
        %v5526 = vadd.f32 %v5389, %v5525
        %5527 = vmatmul.bf16.gmra.mxu0 %v4226
        %v5528 = vpop.f32.mrf.mxu0
        %v5529 = vpop.f32.mrf.mxu0
        %5530 = vmatmul.bf16.gmra.mxu0 %v4227
        %v5531 = vpop.f32.mrf.mxu0
        %v5532 = vadd.f32 %v5395, %v5531
        %v5533 = vpop.f32.mrf.mxu0
        %v5534 = vadd.f32 %v5397, %v5533
        %5535 = vmatmul.bf16.gmra.mxu0 %v4228
        %v5536 = vpop.f32.mrf.mxu0
        %v5537 = vpop.f32.mrf.mxu0
        %5538 = vmatmul.bf16.gmra.mxu0 %v4229
        %v5539 = vpop.f32.mrf.mxu0
        %v5540 = vadd.f32 %v5403, %v5539
        %v5541 = vpop.f32.mrf.mxu0
        %v5542 = vadd.f32 %v5405, %v5541
        %5543 = vmatmul.bf16.gmra.mxu0 %v4230
        %v5544 = vpop.f32.mrf.mxu0
        %v5545 = vpop.f32.mrf.mxu0
        %5546 = vmatmul.bf16.gmra.mxu0 %v4231
        %v5547 = vpop.f32.mrf.mxu0
        %v5548 = vadd.f32 %v5411, %v5547
        %v5549 = vpop.f32.mrf.mxu0
        %v5550 = vadd.f32 %v5413, %v5549
        %5551 = vmatmul.bf16.gmra.mxu0 %v4232
        %v5552 = vpop.f32.mrf.mxu0
        %v5553 = vpop.f32.mrf.mxu0
        %5554 = vmatmul.bf16.gmra.mxu0 %v4233
        %v5555 = vpop.f32.mrf.mxu0
        %v5556 = vadd.f32 %v5419, %v5555
        %v5557 = vpop.f32.mrf.mxu0
        %v5558 = vadd.f32 %v5421, %v5557
        %5559 = vmatmul.bf16.gmra.mxu0 %v4234
        %v5560 = vpop.f32.mrf.mxu0
        %v5561 = vpop.f32.mrf.mxu0
        %5562 = vmatmul.bf16.gmra.mxu0 %v4235
        %v5563 = vpop.f32.mrf.mxu0
        %v5564 = vadd.f32 %v5427, %v5563
        %v5565 = vpop.f32.mrf.mxu0
        %v5566 = vadd.f32 %v5429, %v5565
        %5567 = vmatmul.bf16.gmra.mxu0 %v4236
        %v5568 = vpop.f32.mrf.mxu0
        %v5569 = vpop.f32.mrf.mxu0
        %5570 = vmatmul.bf16.gmra.mxu0 %v4237
        %v5571 = vpop.f32.mrf.mxu0
        %v5572 = vadd.f32 %v5435, %v5571
        %v5573 = vpop.f32.mrf.mxu0
        %v5574 = vadd.f32 %v5437, %v5573
        %5575 = vmatmul.bf16.gmra.mxu0 %v4238
        %v5576 = vpop.f32.mrf.mxu0
        %v5577 = vpop.f32.mrf.mxu0
        %5578 = vmatmul.bf16.gmra.mxu0 %v4239
        %v5579 = vpop.f32.mrf.mxu0
        %v5580 = vadd.f32 %v5443, %v5579
        %v5581 = vpop.f32.mrf.mxu0
        %v5582 = vadd.f32 %v5445, %v5581
        %5583 = vmatmul.bf16.gmra.mxu0 %v4240
        %v5584 = vpop.f32.mrf.mxu0
        %v5585 = vpop.f32.mrf.mxu0
        %5586 = vmatmul.bf16.gmra.mxu0 %v4241
        %v5587 = vpop.f32.mrf.mxu0
        %v5588 = vadd.f32 %v5451, %v5587
        %v5589 = vpop.f32.mrf.mxu0
        %v5590 = vadd.f32 %v5453, %v5589
        %5591 = vmatmul.bf16.gmra.mxu0 %v4242
        %v5592 = vpop.f32.mrf.mxu0
        %v5593 = vpop.f32.mrf.mxu0
        %5594 = vmatmul.bf16.gmra.mxu0 %v4243
        %v5595 = vpop.f32.mrf.mxu0
        %v5596 = vadd.f32 %v5459, %v5595
        %v5597 = vpop.f32.mrf.mxu0
        %v5598 = vadd.f32 %v5461, %v5597
        %5599 = vmatmul.bf16.gmra.mxu0 %v4244
        %v5600 = vpop.f32.mrf.mxu0
        %v5601 = vpop.f32.mrf.mxu0
        %5602 = vmatmul.bf16.gmra.mxu0 %v4245
        %v5603 = vpop.f32.mrf.mxu0
        %v5604 = vadd.f32 %v5467, %v5603
        %v5605 = vpop.f32.mrf.mxu0
        %v5606 = vadd.f32 %v5469, %v5605
        %5607 = vmatmul.bf16.gmra.mxu0 %v4246
        %v5608 = vpop.f32.mrf.mxu0
        %v5609 = vpop.f32.mrf.mxu0
        %5610 = vmatmul.bf16.gmra.mxu0 %v4247
        %v5611 = vpop.f32.mrf.mxu0
        %v5612 = vadd.f32 %v5475, %v5611
        %v5613 = vpop.f32.mrf.mxu0
        %v5614 = vadd.f32 %v5477, %v5613
        %5615 = vmatmul.bf16.gmra.mxu0 %v4248
        %v5616 = vpop.f32.mrf.mxu0
        %v5617 = vpop.f32.mrf.mxu0
        %5618 = vmatmul.bf16.gmra.mxu0 %v4249
        %v5619 = vpop.f32.mrf.mxu0
        %v5620 = vadd.f32 %v5483, %v5619
        %v5621 = vpop.f32.mrf.mxu0
        %v5622 = vadd.f32 %v5485, %v5621
        %5623 = vmatmul.bf16.gmra.mxu0 %v4250
        %v5624 = vpop.f32.mrf.mxu0
        %v5625 = vpop.f32.mrf.mxu0
        %5626 = vmatmul.bf16.gmra.mxu0 %v4251
        %v5627 = vpop.f32.mrf.mxu0
        %v5628 = vadd.f32 %v5491, %v5627
        %v5629 = vpop.f32.mrf.mxu0
        %v5630 = vadd.f32 %v5493, %v5629
        %5631 = vmatmul.bf16.gmra.mxu0 %v4252
        %v5632 = vpop.f32.mrf.mxu0
        %v5633 = vpop.f32.mrf.mxu0
        %5634 = vdwg.mxu0
        %5635 = vmatpush.bf16.msra.mxu0 %v4644
        %5636 = vmatpush.bf16.msra.mxu0 %v4641
        %5637 = vmatpush.bf16.msra.mxu0 %v4638
        %5638 = vmatpush.bf16.msra.mxu0 %v4635
        %5639 = vmatpush.bf16.msra.mxu0 %v4632
        %5640 = vmatpush.bf16.msra.mxu0 %v4629
        %5641 = vmatpush.bf16.msra.mxu0 %v4626
        %5642 = vmatpush.bf16.msra.mxu0 %v4623
        %5643 = vmatmul.bf16.gmra.mxu0 %v3837
        %v5644 = vpop.f32.mrf.mxu0
        %v5645 = vadd.f32 0.0, %v5644
        %v5646 = vpop.f32.mrf.mxu0
        %v5647 = vadd.f32 0.0, %v5646
        %5648 = vmatmul.bf16.gmra.mxu0 %v3838
        %v5649 = vpop.f32.mrf.mxu0
        %v5650 = vadd.f32 0.0, %v5649
        %v5651 = vpop.f32.mrf.mxu0
        %5652 = vmatmul.bf16.gmra.mxu0 %v3839
        %v5653 = vpop.f32.mrf.mxu0
        %v5654 = vadd.f32 0.0, %v5653
        %v5655 = vpop.f32.mrf.mxu0
        %v5656 = vadd.f32 0.0, %v5655
        %5657 = vmatmul.bf16.gmra.mxu0 %v3840
        %v5658 = vpop.f32.mrf.mxu0
        %v5659 = vadd.f32 0.0, %v5658
        %v5660 = vpop.f32.mrf.mxu0
        %5661 = vmatmul.bf16.gmra.mxu0 %v3841
        %v5662 = vpop.f32.mrf.mxu0
        %v5663 = vadd.f32 0.0, %v5662
        %v5664 = vpop.f32.mrf.mxu0
        %v5665 = vadd.f32 0.0, %v5664
        %5666 = vmatmul.bf16.gmra.mxu0 %v3842
        %v5667 = vpop.f32.mrf.mxu0
        %v5668 = vadd.f32 0.0, %v5667
        %v5669 = vpop.f32.mrf.mxu0
        %5670 = vmatmul.bf16.gmra.mxu0 %v3843
        %v5671 = vpop.f32.mrf.mxu0
        %v5672 = vadd.f32 0.0, %v5671
        %v5673 = vpop.f32.mrf.mxu0
        %v5674 = vadd.f32 0.0, %v5673
        %5675 = vmatmul.bf16.gmra.mxu0 %v3844
        %v5676 = vpop.f32.mrf.mxu0
        %v5677 = vadd.f32 0.0, %v5676
        %v5678 = vpop.f32.mrf.mxu0
        %5679 = vmatmul.bf16.gmra.mxu0 %v3845
        %v5680 = vpop.f32.mrf.mxu0
        %v5681 = vadd.f32 0.0, %v5680
        %v5682 = vpop.f32.mrf.mxu0
        %v5683 = vadd.f32 0.0, %v5682
        %5684 = vmatmul.bf16.gmra.mxu0 %v3846
        %v5685 = vpop.f32.mrf.mxu0
        %v5686 = vadd.f32 0.0, %v5685
        %v5687 = vpop.f32.mrf.mxu0
        %5688 = vmatmul.bf16.gmra.mxu0 %v3847
        %v5689 = vpop.f32.mrf.mxu0
        %v5690 = vadd.f32 0.0, %v5689
        %v5691 = vpop.f32.mrf.mxu0
        %v5692 = vadd.f32 0.0, %v5691
        %5693 = vmatmul.bf16.gmra.mxu0 %v3848
        %v5694 = vpop.f32.mrf.mxu0
        %v5695 = vadd.f32 0.0, %v5694
        %v5696 = vpop.f32.mrf.mxu0
        %5697 = vmatmul.bf16.gmra.mxu0 %v3849
        %v5698 = vpop.f32.mrf.mxu0
        %v5699 = vadd.f32 0.0, %v5698
        %v5700 = vpop.f32.mrf.mxu0
        %v5701 = vadd.f32 0.0, %v5700
        %5702 = vmatmul.bf16.gmra.mxu0 %v3850
        %v5703 = vpop.f32.mrf.mxu0
        %v5704 = vadd.f32 0.0, %v5703
        %v5705 = vpop.f32.mrf.mxu0
        %5706 = vmatmul.bf16.gmra.mxu0 %v3851
        %v5707 = vpop.f32.mrf.mxu0
        %v5708 = vadd.f32 0.0, %v5707
        %v5709 = vpop.f32.mrf.mxu0
        %v5710 = vadd.f32 0.0, %v5709
        %5711 = vmatmul.bf16.gmra.mxu0 %v3852
        %v5712 = vpop.f32.mrf.mxu0
        %v5713 = vadd.f32 0.0, %v5712
        %v5714 = vpop.f32.mrf.mxu0
        %5715 = vmatmul.bf16.gmra.mxu0 %v3853
        %v5716 = vpop.f32.mrf.mxu0
        %v5717 = vadd.f32 0.0, %v5716
        %v5718 = vpop.f32.mrf.mxu0
        %v5719 = vadd.f32 0.0, %v5718
        %5720 = vmatmul.bf16.gmra.mxu0 %v3854
        %v5721 = vpop.f32.mrf.mxu0
        %v5722 = vadd.f32 0.0, %v5721
        %v5723 = vpop.f32.mrf.mxu0
        %5724 = vmatmul.bf16.gmra.mxu0 %v3855
        %v5725 = vpop.f32.mrf.mxu0
        %v5726 = vadd.f32 0.0, %v5725
        %v5727 = vpop.f32.mrf.mxu0
        %v5728 = vadd.f32 0.0, %v5727
        %5729 = vmatmul.bf16.gmra.mxu0 %v3856
        %v5730 = vpop.f32.mrf.mxu0
        %v5731 = vadd.f32 0.0, %v5730
        %v5732 = vpop.f32.mrf.mxu0
        %5733 = vmatmul.bf16.gmra.mxu0 %v3857
        %v5734 = vpop.f32.mrf.mxu0
        %v5735 = vadd.f32 0.0, %v5734
        %v5736 = vpop.f32.mrf.mxu0
        %v5737 = vadd.f32 0.0, %v5736
        %5738 = vmatmul.bf16.gmra.mxu0 %v3858
        %v5739 = vpop.f32.mrf.mxu0
        %v5740 = vadd.f32 0.0, %v5739
        %v5741 = vpop.f32.mrf.mxu0
        %5742 = vmatmul.bf16.gmra.mxu0 %v3859
        %v5743 = vpop.f32.mrf.mxu0
        %v5744 = vadd.f32 0.0, %v5743
        %v5745 = vpop.f32.mrf.mxu0
        %v5746 = vadd.f32 0.0, %v5745
        %5747 = vmatmul.bf16.gmra.mxu0 %v3860
        %v5748 = vpop.f32.mrf.mxu0
        %v5749 = vadd.f32 0.0, %v5748
        %v5750 = vpop.f32.mrf.mxu0
        %5751 = vmatmul.bf16.gmra.mxu0 %v3861
        %v5752 = vpop.f32.mrf.mxu0
        %v5753 = vadd.f32 0.0, %v5752
        %v5754 = vpop.f32.mrf.mxu0
        %v5755 = vadd.f32 0.0, %v5754
        %5756 = vmatmul.bf16.gmra.mxu0 %v3862
        %v5757 = vpop.f32.mrf.mxu0
        %v5758 = vadd.f32 0.0, %v5757
        %v5759 = vpop.f32.mrf.mxu0
        %5760 = vmatmul.bf16.gmra.mxu0 %v3863
        %v5761 = vpop.f32.mrf.mxu0
        %v5762 = vadd.f32 0.0, %v5761
        %v5763 = vpop.f32.mrf.mxu0
        %v5764 = vadd.f32 0.0, %v5763
        %5765 = vmatmul.bf16.gmra.mxu0 %v3864
        %v5766 = vpop.f32.mrf.mxu0
        %v5767 = vadd.f32 0.0, %v5766
        %v5768 = vpop.f32.mrf.mxu0
        %5769 = vmatmul.bf16.gmra.mxu0 %v3865
        %v5770 = vpop.f32.mrf.mxu0
        %v5771 = vadd.f32 0.0, %v5770
        %v5772 = vpop.f32.mrf.mxu0
        %v5773 = vadd.f32 0.0, %v5772
        %5774 = vmatmul.bf16.gmra.mxu0 %v3866
        %v5775 = vpop.f32.mrf.mxu0
        %v5776 = vadd.f32 0.0, %v5775
        %v5777 = vpop.f32.mrf.mxu0
        %5778 = vmatmul.bf16.gmra.mxu0 %v3867
        %v5779 = vpop.f32.mrf.mxu0
        %v5780 = vadd.f32 0.0, %v5779
        %v5781 = vpop.f32.mrf.mxu0
        %v5782 = vadd.f32 0.0, %v5781
        %5783 = vmatmul.bf16.gmra.mxu0 %v3868
        %v5784 = vpop.f32.mrf.mxu0
        %v5785 = vadd.f32 0.0, %v5784
        %v5786 = vpop.f32.mrf.mxu0
        %5787 = vdwg.mxu0
        %5788 = vmatpush.bf16.msra.mxu0 %v4668
        %5789 = vmatpush.bf16.msra.mxu0 %v4665
        %5790 = vmatpush.bf16.msra.mxu0 %v4662
        %5791 = vmatpush.bf16.msra.mxu0 %v4659
        %5792 = vmatpush.bf16.msra.mxu0 %v4656
        %5793 = vmatpush.bf16.msra.mxu0 %v4653
        %5794 = vmatpush.bf16.msra.mxu0 %v4650
        %5795 = vmatpush.bf16.msra.mxu0 %v4647
        %5796 = vmatmul.bf16.gmra.mxu0 %v4029
        %v5797 = vpop.f32.mrf.mxu0
        %v5798 = vadd.f32 %v5645, %v5797
        %v5799 = vpop.f32.mrf.mxu0
        %v5800 = vadd.f32 %v5647, %v5799
        %5801 = vmatmul.bf16.gmra.mxu0 %v4030
        %v5802 = vpop.f32.mrf.mxu0
        %v5803 = vadd.f32 %v5650, %v5802
        %v5804 = vpop.f32.mrf.mxu0
        %5805 = vmatmul.bf16.gmra.mxu0 %v4031
        %v5806 = vpop.f32.mrf.mxu0
        %v5807 = vadd.f32 %v5654, %v5806
        %v5808 = vpop.f32.mrf.mxu0
        %v5809 = vadd.f32 %v5656, %v5808
        %5810 = vmatmul.bf16.gmra.mxu0 %v4032
        %v5811 = vpop.f32.mrf.mxu0
        %v5812 = vadd.f32 %v5659, %v5811
        %v5813 = vpop.f32.mrf.mxu0
        %5814 = vmatmul.bf16.gmra.mxu0 %v4033
        %v5815 = vpop.f32.mrf.mxu0
        %v5816 = vadd.f32 %v5663, %v5815
        %v5817 = vpop.f32.mrf.mxu0
        %v5818 = vadd.f32 %v5665, %v5817
        %5819 = vmatmul.bf16.gmra.mxu0 %v4034
        %v5820 = vpop.f32.mrf.mxu0
        %v5821 = vadd.f32 %v5668, %v5820
        %v5822 = vpop.f32.mrf.mxu0
        %5823 = vmatmul.bf16.gmra.mxu0 %v4035
        %v5824 = vpop.f32.mrf.mxu0
        %v5825 = vadd.f32 %v5672, %v5824
        %v5826 = vpop.f32.mrf.mxu0
        %v5827 = vadd.f32 %v5674, %v5826
        %5828 = vmatmul.bf16.gmra.mxu0 %v4036
        %v5829 = vpop.f32.mrf.mxu0
        %v5830 = vadd.f32 %v5677, %v5829
        %v5831 = vpop.f32.mrf.mxu0
        %5832 = vmatmul.bf16.gmra.mxu0 %v4037
        %v5833 = vpop.f32.mrf.mxu0
        %v5834 = vadd.f32 %v5681, %v5833
        %v5835 = vpop.f32.mrf.mxu0
        %v5836 = vadd.f32 %v5683, %v5835
        %5837 = vmatmul.bf16.gmra.mxu0 %v4038
        %v5838 = vpop.f32.mrf.mxu0
        %v5839 = vadd.f32 %v5686, %v5838
        %v5840 = vpop.f32.mrf.mxu0
        %5841 = vmatmul.bf16.gmra.mxu0 %v4039
        %v5842 = vpop.f32.mrf.mxu0
        %v5843 = vadd.f32 %v5690, %v5842
        %v5844 = vpop.f32.mrf.mxu0
        %v5845 = vadd.f32 %v5692, %v5844
        %5846 = vmatmul.bf16.gmra.mxu0 %v4040
        %v5847 = vpop.f32.mrf.mxu0
        %v5848 = vadd.f32 %v5695, %v5847
        %v5849 = vpop.f32.mrf.mxu0
        %5850 = vmatmul.bf16.gmra.mxu0 %v4041
        %v5851 = vpop.f32.mrf.mxu0
        %v5852 = vadd.f32 %v5699, %v5851
        %v5853 = vpop.f32.mrf.mxu0
        %v5854 = vadd.f32 %v5701, %v5853
        %5855 = vmatmul.bf16.gmra.mxu0 %v4042
        %v5856 = vpop.f32.mrf.mxu0
        %v5857 = vadd.f32 %v5704, %v5856
        %v5858 = vpop.f32.mrf.mxu0
        %5859 = vmatmul.bf16.gmra.mxu0 %v4043
        %v5860 = vpop.f32.mrf.mxu0
        %v5861 = vadd.f32 %v5708, %v5860
        %v5862 = vpop.f32.mrf.mxu0
        %v5863 = vadd.f32 %v5710, %v5862
        %5864 = vmatmul.bf16.gmra.mxu0 %v4044
        %v5865 = vpop.f32.mrf.mxu0
        %v5866 = vadd.f32 %v5713, %v5865
        %v5867 = vpop.f32.mrf.mxu0
        %5868 = vmatmul.bf16.gmra.mxu0 %v4045
        %v5869 = vpop.f32.mrf.mxu0
        %v5870 = vadd.f32 %v5717, %v5869
        %v5871 = vpop.f32.mrf.mxu0
        %v5872 = vadd.f32 %v5719, %v5871
        %5873 = vmatmul.bf16.gmra.mxu0 %v4046
        %v5874 = vpop.f32.mrf.mxu0
        %v5875 = vadd.f32 %v5722, %v5874
        %v5876 = vpop.f32.mrf.mxu0
        %5877 = vmatmul.bf16.gmra.mxu0 %v4047
        %v5878 = vpop.f32.mrf.mxu0
        %v5879 = vadd.f32 %v5726, %v5878
        %v5880 = vpop.f32.mrf.mxu0
        %v5881 = vadd.f32 %v5728, %v5880
        %5882 = vmatmul.bf16.gmra.mxu0 %v4048
        %v5883 = vpop.f32.mrf.mxu0
        %v5884 = vadd.f32 %v5731, %v5883
        %v5885 = vpop.f32.mrf.mxu0
        %5886 = vmatmul.bf16.gmra.mxu0 %v4049
        %v5887 = vpop.f32.mrf.mxu0
        %v5888 = vadd.f32 %v5735, %v5887
        %v5889 = vpop.f32.mrf.mxu0
        %v5890 = vadd.f32 %v5737, %v5889
        %5891 = vmatmul.bf16.gmra.mxu0 %v4050
        %v5892 = vpop.f32.mrf.mxu0
        %v5893 = vadd.f32 %v5740, %v5892
        %v5894 = vpop.f32.mrf.mxu0
        %5895 = vmatmul.bf16.gmra.mxu0 %v4051
        %v5896 = vpop.f32.mrf.mxu0
        %v5897 = vadd.f32 %v5744, %v5896
        %v5898 = vpop.f32.mrf.mxu0
        %v5899 = vadd.f32 %v5746, %v5898
        %5900 = vmatmul.bf16.gmra.mxu0 %v4052
        %v5901 = vpop.f32.mrf.mxu0
        %v5902 = vadd.f32 %v5749, %v5901
        %v5903 = vpop.f32.mrf.mxu0
        %5904 = vmatmul.bf16.gmra.mxu0 %v4053
        %v5905 = vpop.f32.mrf.mxu0
        %v5906 = vadd.f32 %v5753, %v5905
        %v5907 = vpop.f32.mrf.mxu0
        %v5908 = vadd.f32 %v5755, %v5907
        %5909 = vmatmul.bf16.gmra.mxu0 %v4054
        %v5910 = vpop.f32.mrf.mxu0
        %v5911 = vadd.f32 %v5758, %v5910
        %v5912 = vpop.f32.mrf.mxu0
        %5913 = vmatmul.bf16.gmra.mxu0 %v4055
        %v5914 = vpop.f32.mrf.mxu0
        %v5915 = vadd.f32 %v5762, %v5914
        %v5916 = vpop.f32.mrf.mxu0
        %v5917 = vadd.f32 %v5764, %v5916
        %5918 = vmatmul.bf16.gmra.mxu0 %v4056
        %v5919 = vpop.f32.mrf.mxu0
        %v5920 = vadd.f32 %v5767, %v5919
        %v5921 = vpop.f32.mrf.mxu0
        %5922 = vmatmul.bf16.gmra.mxu0 %v4057
        %v5923 = vpop.f32.mrf.mxu0
        %v5924 = vadd.f32 %v5771, %v5923
        %v5925 = vpop.f32.mrf.mxu0
        %v5926 = vadd.f32 %v5773, %v5925
        %5927 = vmatmul.bf16.gmra.mxu0 %v4058
        %v5928 = vpop.f32.mrf.mxu0
        %v5929 = vadd.f32 %v5776, %v5928
        %v5930 = vpop.f32.mrf.mxu0
        %5931 = vmatmul.bf16.gmra.mxu0 %v4059
        %v5932 = vpop.f32.mrf.mxu0
        %v5933 = vadd.f32 %v5780, %v5932
        %v5934 = vpop.f32.mrf.mxu0
        %v5935 = vadd.f32 %v5782, %v5934
        %5936 = vmatmul.bf16.gmra.mxu0 %v4060
        %v5937 = vpop.f32.mrf.mxu0
        %v5938 = vadd.f32 %v5785, %v5937
        %v5939 = vpop.f32.mrf.mxu0
        %5940 = vdwg.mxu0
        %5941 = vmatpush.bf16.msra.mxu0 %v4692
        %5942 = vmatpush.bf16.msra.mxu0 %v4689
        %5943 = vmatpush.bf16.msra.mxu0 %v4686
        %5944 = vmatpush.bf16.msra.mxu0 %v4683
        %5945 = vmatpush.bf16.msra.mxu0 %v4680
        %5946 = vmatpush.bf16.msra.mxu0 %v4677
        %5947 = vmatpush.bf16.msra.mxu0 %v4674
        %5948 = vmatpush.bf16.msra.mxu0 %v4671
        %5949 = vmatmul.bf16.gmra.mxu0 %v4221
        %v5950 = vpop.f32.mrf.mxu0
        %v5951 = vadd.f32 %v5798, %v5950
        %v5952 = vpop.f32.mrf.mxu0
        %v5953 = vadd.f32 %v5800, %v5952
        %5954 = vmatmul.bf16.gmra.mxu0 %v4222
        %v5955 = vpop.f32.mrf.mxu0
        %v5956 = vadd.f32 %v5803, %v5955
        %v5957 = vpop.f32.mrf.mxu0
        %5958 = vmatmul.bf16.gmra.mxu0 %v4223
        %v5959 = vpop.f32.mrf.mxu0
        %v5960 = vadd.f32 %v5807, %v5959
        %v5961 = vpop.f32.mrf.mxu0
        %v5962 = vadd.f32 %v5809, %v5961
        %5963 = vmatmul.bf16.gmra.mxu0 %v4224
        %v5964 = vpop.f32.mrf.mxu0
        %v5965 = vadd.f32 %v5812, %v5964
        %v5966 = vpop.f32.mrf.mxu0
        %5967 = vmatmul.bf16.gmra.mxu0 %v4225
        %v5968 = vpop.f32.mrf.mxu0
        %v5969 = vadd.f32 %v5816, %v5968
        %v5970 = vpop.f32.mrf.mxu0
        %v5971 = vadd.f32 %v5818, %v5970
        %5972 = vmatmul.bf16.gmra.mxu0 %v4226
        %v5973 = vpop.f32.mrf.mxu0
        %v5974 = vadd.f32 %v5821, %v5973
        %v5975 = vpop.f32.mrf.mxu0
        %5976 = vmatmul.bf16.gmra.mxu0 %v4227
        %v5977 = vpop.f32.mrf.mxu0
        %v5978 = vadd.f32 %v5825, %v5977
        %v5979 = vpop.f32.mrf.mxu0
        %v5980 = vadd.f32 %v5827, %v5979
        %5981 = vmatmul.bf16.gmra.mxu0 %v4228
        %v5982 = vpop.f32.mrf.mxu0
        %v5983 = vadd.f32 %v5830, %v5982
        %v5984 = vpop.f32.mrf.mxu0
        %5985 = vmatmul.bf16.gmra.mxu0 %v4229
        %v5986 = vpop.f32.mrf.mxu0
        %v5987 = vadd.f32 %v5834, %v5986
        %v5988 = vpop.f32.mrf.mxu0
        %v5989 = vadd.f32 %v5836, %v5988
        %5990 = vmatmul.bf16.gmra.mxu0 %v4230
        %v5991 = vpop.f32.mrf.mxu0
        %v5992 = vadd.f32 %v5839, %v5991
        %v5993 = vpop.f32.mrf.mxu0
        %5994 = vmatmul.bf16.gmra.mxu0 %v4231
        %v5995 = vpop.f32.mrf.mxu0
        %v5996 = vadd.f32 %v5843, %v5995
        %v5997 = vpop.f32.mrf.mxu0
        %v5998 = vadd.f32 %v5845, %v5997
        %5999 = vmatmul.bf16.gmra.mxu0 %v4232
        %v6000 = vpop.f32.mrf.mxu0
        %v6001 = vadd.f32 %v5848, %v6000
        %v6002 = vpop.f32.mrf.mxu0
        %6003 = vmatmul.bf16.gmra.mxu0 %v4233
        %v6004 = vpop.f32.mrf.mxu0
        %v6005 = vadd.f32 %v5852, %v6004
        %v6006 = vpop.f32.mrf.mxu0
        %v6007 = vadd.f32 %v5854, %v6006
        %6008 = vmatmul.bf16.gmra.mxu0 %v4234
        %v6009 = vpop.f32.mrf.mxu0
        %v6010 = vadd.f32 %v5857, %v6009
        %v6011 = vpop.f32.mrf.mxu0
        %6012 = vmatmul.bf16.gmra.mxu0 %v4235
        %v6013 = vpop.f32.mrf.mxu0
        %v6014 = vadd.f32 %v5861, %v6013
        %v6015 = vpop.f32.mrf.mxu0
        %v6016 = vadd.f32 %v5863, %v6015
        %6017 = vmatmul.bf16.gmra.mxu0 %v4236
        %v6018 = vpop.f32.mrf.mxu0
        %v6019 = vadd.f32 %v5866, %v6018
        %v6020 = vpop.f32.mrf.mxu0
        %6021 = vmatmul.bf16.gmra.mxu0 %v4237
        %v6022 = vpop.f32.mrf.mxu0
        %v6023 = vadd.f32 %v5870, %v6022
        %v6024 = vpop.f32.mrf.mxu0
        %v6025 = vadd.f32 %v5872, %v6024
        %6026 = vmatmul.bf16.gmra.mxu0 %v4238
        %v6027 = vpop.f32.mrf.mxu0
        %v6028 = vadd.f32 %v5875, %v6027
        %v6029 = vpop.f32.mrf.mxu0
        %6030 = vmatmul.bf16.gmra.mxu0 %v4239
        %v6031 = vpop.f32.mrf.mxu0
        %v6032 = vadd.f32 %v5879, %v6031
        %v6033 = vpop.f32.mrf.mxu0
        %v6034 = vadd.f32 %v5881, %v6033
        %6035 = vmatmul.bf16.gmra.mxu0 %v4240
        %v6036 = vpop.f32.mrf.mxu0
        %v6037 = vadd.f32 %v5884, %v6036
        %v6038 = vpop.f32.mrf.mxu0
        %6039 = vmatmul.bf16.gmra.mxu0 %v4241
        %v6040 = vpop.f32.mrf.mxu0
        %v6041 = vadd.f32 %v5888, %v6040
        %v6042 = vpop.f32.mrf.mxu0
        %v6043 = vadd.f32 %v5890, %v6042
        %6044 = vmatmul.bf16.gmra.mxu0 %v4242
        %v6045 = vpop.f32.mrf.mxu0
        %v6046 = vadd.f32 %v5893, %v6045
        %v6047 = vpop.f32.mrf.mxu0
        %6048 = vmatmul.bf16.gmra.mxu0 %v4243
        %v6049 = vpop.f32.mrf.mxu0
        %v6050 = vadd.f32 %v5897, %v6049
        %v6051 = vpop.f32.mrf.mxu0
        %v6052 = vadd.f32 %v5899, %v6051
        %6053 = vmatmul.bf16.gmra.mxu0 %v4244
        %v6054 = vpop.f32.mrf.mxu0
        %v6055 = vadd.f32 %v5902, %v6054
        %v6056 = vpop.f32.mrf.mxu0
        %6057 = vmatmul.bf16.gmra.mxu0 %v4245
        %v6058 = vpop.f32.mrf.mxu0
        %v6059 = vadd.f32 %v5906, %v6058
        %v6060 = vpop.f32.mrf.mxu0
        %v6061 = vadd.f32 %v5908, %v6060
        %6062 = vmatmul.bf16.gmra.mxu0 %v4246
        %v6063 = vpop.f32.mrf.mxu0
        %v6064 = vadd.f32 %v5911, %v6063
        %v6065 = vpop.f32.mrf.mxu0
        %6066 = vmatmul.bf16.gmra.mxu0 %v4247
        %v6067 = vpop.f32.mrf.mxu0
        %v6068 = vadd.f32 %v5915, %v6067
        %v6069 = vpop.f32.mrf.mxu0
        %v6070 = vadd.f32 %v5917, %v6069
        %6071 = vmatmul.bf16.gmra.mxu0 %v4248
        %v6072 = vpop.f32.mrf.mxu0
        %v6073 = vadd.f32 %v5920, %v6072
        %v6074 = vpop.f32.mrf.mxu0
        %6075 = vmatmul.bf16.gmra.mxu0 %v4249
        %v6076 = vpop.f32.mrf.mxu0
        %v6077 = vadd.f32 %v5924, %v6076
        %v6078 = vpop.f32.mrf.mxu0
        %v6079 = vadd.f32 %v5926, %v6078
        %6080 = vmatmul.bf16.gmra.mxu0 %v4250
        %v6081 = vpop.f32.mrf.mxu0
        %v6082 = vadd.f32 %v5929, %v6081
        %v6083 = vpop.f32.mrf.mxu0
        %6084 = vmatmul.bf16.gmra.mxu0 %v4251
        %v6085 = vpop.f32.mrf.mxu0
        %v6086 = vadd.f32 %v5933, %v6085
        %v6087 = vpop.f32.mrf.mxu0
        %v6088 = vadd.f32 %v5935, %v6087
        %6089 = vmatmul.bf16.gmra.mxu0 %v4252
        %v6090 = vpop.f32.mrf.mxu0
        %v6091 = vadd.f32 %v5938, %v6090
        %v6092 = vpop.f32.mrf.mxu0
        %6093 = vdwg.mxu0
        %v6094 = vrot.slane %v5081, 7
        %v6095 = vrot.slane %v5083, 7
        %v6096 = vrot.slane %v5087, 7
        %v6097 = vrot.slane %v5090, 7
        %v6098 = vrot.slane %v5092, 7
        %v6099 = vrot.slane %v5096, 7
        %v6100 = vrot.slane %v5099, 7
        %v6101 = vrot.slane %v5101, 7
        %v6102 = vrot.slane %v5105, 7
        %v6103 = vrot.slane %v5108, 7
        %v6104 = vrot.slane %v5110, 7
        %v6105 = vrot.slane %v5114, 7
        %v6106 = vrot.slane %v5117, 7
        %v6107 = vrot.slane %v5119, 7
        %v6108 = vrot.slane %v5123, 7
        %v6109 = vrot.slane %v5126, 7
        %v6110 = vrot.slane %v5128, 7
        %v6111 = vrot.slane %v5132, 7
        %v6112 = vrot.slane %v5135, 7
        %v6113 = vrot.slane %v5137, 7
        %v6114 = vrot.slane %v5141, 7
        %v6115 = vrot.slane %v5144, 7
        %v6116 = vrot.slane %v5146, 7
        %v6117 = vrot.slane %v5150, 7
        %v6118 = vrot.slane %v5153, 7
        %v6119 = vrot.slane %v5155, 7
        %v6120 = vrot.slane %v5159, 7
        %v6121 = vrot.slane %v5162, 7
        %v6122 = vrot.slane %v5164, 7
        %v6123 = vrot.slane %v5168, 7
        %v6124 = vrot.slane %v5171, 7
        %v6125 = vrot.slane %v5173, 7
        %v6126 = vrot.slane %v5177, 7
        %v6127 = vrot.slane %v5180, 7
        %v6128 = vrot.slane %v5182, 7
        %v6129 = vrot.slane %v5186, 7
        %v6130 = vrot.slane %v5189, 7
        %v6131 = vrot.slane %v5191, 7
        %v6132 = vrot.slane %v5195, 7
        %v6133 = vrot.slane %v5198, 7
        %v6134 = vrot.slane %v5200, 7
        %v6135 = vrot.slane %v5204, 7
        %v6136 = vrot.slane %v5207, 7
        %v6137 = vrot.slane %v5209, 7
        %v6138 = vrot.slane %v5213, 7
        %v6139 = vrot.slane %v5216, 7
        %v6140 = vrot.slane %v5218, 7
        %v6141 = vrot.slane %v5222, 7
        %v6142 = vsel %vm3060, %v6139, %v6140
        %v6143 = vsel %vm3060, %v6138, %v6139
        %v6144 = vsel %vm3060, %v6136, %v6137
        %v6145 = vsel %vm3060, %v6135, %v6136
        %v6146 = vsel %vm3060, %v6133, %v6134
        %v6147 = vsel %vm3060, %v6132, %v6133
        %v6148 = vsel %vm3060, %v6130, %v6131
        %v6149 = vsel %vm3060, %v6129, %v6130
        %v6150 = vsel %vm3060, %v6127, %v6128
        %v6151 = vsel %vm3060, %v6126, %v6127
        %v6152 = vsel %vm3060, %v6124, %v6125
        %v6153 = vsel %vm3060, %v6123, %v6124
        %v6154 = vsel %vm3060, %v6121, %v6122
        %v6155 = vsel %vm3060, %v6120, %v6121
        %v6156 = vsel %vm3060, %v6118, %v6119
        %v6157 = vsel %vm3060, %v6117, %v6118
        %v6158 = vsel %vm3060, %v6115, %v6116
        %v6159 = vsel %vm3060, %v6114, %v6115
        %v6160 = vsel %vm3060, %v6112, %v6113
        %v6161 = vsel %vm3060, %v6111, %v6112
        %v6162 = vsel %vm3060, %v6109, %v6110
        %v6163 = vsel %vm3060, %v6108, %v6109
        %v6164 = vsel %vm3060, %v6106, %v6107
        %v6165 = vsel %vm3060, %v6105, %v6106
        %v6166 = vsel %vm3060, %v6103, %v6104
        %v6167 = vsel %vm3060, %v6102, %v6103
        %v6168 = vsel %vm3060, %v6100, %v6101
        %v6169 = vsel %vm3060, %v6099, %v6100
        %v6170 = vsel %vm3060, %v6097, %v6098
        %v6171 = vsel %vm3060, %v6096, %v6097
        %v6172 = vsel %vm3060, %v6094, %v6095
        %v6173 = vsel %vm3060, %v6141, %v6094
        %v6174 = vadd.f32 %v5508, %v6173
        %v6175 = vadd.f32 %v5510, %v6172
        %v6176 = vadd.f32 %v5516, %v6171
        %v6177 = vadd.f32 %v5518, %v6170
        %v6178 = vadd.f32 %v5524, %v6169
        %v6179 = vadd.f32 %v5526, %v6168
        %v6180 = vadd.f32 %v5532, %v6167
        %v6181 = vadd.f32 %v5534, %v6166
        %v6182 = vadd.f32 %v5540, %v6165
        %v6183 = vadd.f32 %v5542, %v6164
        %v6184 = vadd.f32 %v5548, %v6163
        %v6185 = vadd.f32 %v5550, %v6162
        %v6186 = vadd.f32 %v5556, %v6161
        %v6187 = vadd.f32 %v5558, %v6160
        %v6188 = vadd.f32 %v5564, %v6159
        %v6189 = vadd.f32 %v5566, %v6158
        %v6190 = vadd.f32 %v5572, %v6157
        %v6191 = vadd.f32 %v5574, %v6156
        %v6192 = vadd.f32 %v5580, %v6155
        %v6193 = vadd.f32 %v5582, %v6154
        %v6194 = vadd.f32 %v5588, %v6153
        %v6195 = vadd.f32 %v5590, %v6152
        %v6196 = vadd.f32 %v5596, %v6151
        %v6197 = vadd.f32 %v5598, %v6150
        %v6198 = vadd.f32 %v5604, %v6149
        %v6199 = vadd.f32 %v5606, %v6148
        %v6200 = vadd.f32 %v5612, %v6147
        %v6201 = vadd.f32 %v5614, %v6146
        %v6202 = vadd.f32 %v5620, %v6145
        %v6203 = vadd.f32 %v5622, %v6144
        %v6204 = vadd.f32 %v5628, %v6143
        %v6205 = vadd.f32 %v5630, %v6142
        %v6206 = vrot.slane %v5951, 1
        %v6207 = vrot.slane %v5953, 1
        %v6208 = vrot.slane %v5956, 1
        %v6209 = vrot.slane %v5960, 1
        %v6210 = vrot.slane %v5962, 1
        %v6211 = vrot.slane %v5965, 1
        %v6212 = vrot.slane %v5969, 1
        %v6213 = vrot.slane %v5971, 1
        %v6214 = vrot.slane %v5974, 1
        %v6215 = vrot.slane %v5978, 1
        %v6216 = vrot.slane %v5980, 1
        %v6217 = vrot.slane %v5983, 1
        %v6218 = vrot.slane %v5987, 1
        %v6219 = vrot.slane %v5989, 1
        %v6220 = vrot.slane %v5992, 1
        %v6221 = vrot.slane %v5996, 1
        %v6222 = vrot.slane %v5998, 1
        %v6223 = vrot.slane %v6001, 1
        %v6224 = vrot.slane %v6005, 1
        %v6225 = vrot.slane %v6007, 1
        %v6226 = vrot.slane %v6010, 1
        %v6227 = vrot.slane %v6014, 1
        %v6228 = vrot.slane %v6016, 1
        %v6229 = vrot.slane %v6019, 1
        %v6230 = vrot.slane %v6023, 1
        %v6231 = vrot.slane %v6025, 1
        %v6232 = vrot.slane %v6028, 1
        %v6233 = vrot.slane %v6032, 1
        %v6234 = vrot.slane %v6034, 1
        %v6235 = vrot.slane %v6037, 1
        %v6236 = vrot.slane %v6041, 1
        %v6237 = vrot.slane %v6043, 1
        %v6238 = vrot.slane %v6046, 1
        %v6239 = vrot.slane %v6050, 1
        %v6240 = vrot.slane %v6052, 1
        %v6241 = vrot.slane %v6055, 1
        %v6242 = vrot.slane %v6059, 1
        %v6243 = vrot.slane %v6061, 1
        %v6244 = vrot.slane %v6064, 1
        %v6245 = vrot.slane %v6068, 1
        %v6246 = vrot.slane %v6070, 1
        %v6247 = vrot.slane %v6073, 1
        %v6248 = vrot.slane %v6077, 1
        %v6249 = vrot.slane %v6079, 1
        %v6250 = vrot.slane %v6082, 1
        %v6251 = vrot.slane %v6086, 1
        %v6252 = vrot.slane %v6088, 1
        %v6253 = vrot.slane %v6091, 1
        %v6254 = vsel %vm3173, %v6252, %v6253
        %v6255 = vsel %vm3173, %v6251, %v6252
        %v6256 = vsel %vm3173, %v6249, %v6250
        %v6257 = vsel %vm3173, %v6248, %v6249
        %v6258 = vsel %vm3173, %v6246, %v6247
        %v6259 = vsel %vm3173, %v6245, %v6246
        %v6260 = vsel %vm3173, %v6243, %v6244
        %v6261 = vsel %vm3173, %v6242, %v6243
        %v6262 = vsel %vm3173, %v6240, %v6241
        %v6263 = vsel %vm3173, %v6239, %v6240
        %v6264 = vsel %vm3173, %v6237, %v6238
        %v6265 = vsel %vm3173, %v6236, %v6237
        %v6266 = vsel %vm3173, %v6234, %v6235
        %v6267 = vsel %vm3173, %v6233, %v6234
        %v6268 = vsel %vm3173, %v6231, %v6232
        %v6269 = vsel %vm3173, %v6230, %v6231
        %v6270 = vsel %vm3173, %v6228, %v6229
        %v6271 = vsel %vm3173, %v6227, %v6228
        %v6272 = vsel %vm3173, %v6225, %v6226
        %v6273 = vsel %vm3173, %v6224, %v6225
        %v6274 = vsel %vm3173, %v6222, %v6223
        %v6275 = vsel %vm3173, %v6221, %v6222
        %v6276 = vsel %vm3173, %v6219, %v6220
        %v6277 = vsel %vm3173, %v6218, %v6219
        %v6278 = vsel %vm3173, %v6216, %v6217
        %v6279 = vsel %vm3173, %v6215, %v6216
        %v6280 = vsel %vm3173, %v6213, %v6214
        %v6281 = vsel %vm3173, %v6212, %v6213
        %v6282 = vsel %vm3173, %v6210, %v6211
        %v6283 = vsel %vm3173, %v6209, %v6210
        %v6284 = vsel %vm3173, %v6207, %v6208
        %v6285 = vsel %vm3173, %v6206, %v6207
        %v6286 = vadd.f32 %v6174, %v6285
        %v6287 = vadd.f32 %v6175, %v6284
        %v6288 = vadd.f32 %v6176, %v6283
        %v6289 = vadd.f32 %v6177, %v6282
        %v6290 = vadd.f32 %v6178, %v6281
        %v6291 = vadd.f32 %v6179, %v6280
        %v6292 = vadd.f32 %v6180, %v6279
        %v6293 = vadd.f32 %v6181, %v6278
        %v6294 = vadd.f32 %v6182, %v6277
        %v6295 = vadd.f32 %v6183, %v6276
        %v6296 = vadd.f32 %v6184, %v6275
        %v6297 = vadd.f32 %v6185, %v6274
        %v6298 = vadd.f32 %v6186, %v6273
        %v6299 = vadd.f32 %v6187, %v6272
        %v6300 = vadd.f32 %v6188, %v6271
        %v6301 = vadd.f32 %v6189, %v6270
        %v6302 = vadd.f32 %v6190, %v6269
        %v6303 = vadd.f32 %v6191, %v6268
        %v6304 = vadd.f32 %v6192, %v6267
        %v6305 = vadd.f32 %v6193, %v6266
        %v6306 = vadd.f32 %v6194, %v6265
        %v6307 = vadd.f32 %v6195, %v6264
        %v6308 = vadd.f32 %v6196, %v6263
        %v6309 = vadd.f32 %v6197, %v6262
        %v6310 = vadd.f32 %v6198, %v6261
        %v6311 = vadd.f32 %v6199, %v6260
        %v6312 = vadd.f32 %v6200, %v6259
        %v6313 = vadd.f32 %v6201, %v6258
        %v6314 = vadd.f32 %v6202, %v6257
        %v6315 = vadd.f32 %v6203, %v6256
        %v6316 = vadd.f32 %v6204, %v6255
        %v6317 = vadd.f32 %v6205, %v6254
        %v6318 = vadd.f32 %v6286, %v6287
        %v6319 = vadd.f32 %v6318, %v6288
        %v6320 = vadd.f32 %v6319, %v6289
        %v6321 = vadd.f32 %v6320, %v6290
        %v6322 = vadd.f32 %v6321, %v6291
        %v6323 = vadd.f32 %v6322, %v6292
        %v6324 = vadd.f32 %v6323, %v6293
        %v6325 = vadd.f32 %v6324, %v6294
        %v6326 = vadd.f32 %v6325, %v6295
        %v6327 = vadd.f32 %v6326, %v6296
        %v6328 = vadd.f32 %v6327, %v6297
        %v6329 = vadd.f32 %v6328, %v6298
        %v6330 = vadd.f32 %v6329, %v6299
        %v6331 = vadd.f32 %v6330, %v6300
        %v6332 = vadd.f32 %v6331, %v6301
        %v6333 = vadd.f32 %v6332, %v6302
        %v6334 = vadd.f32 %v6333, %v6303
        %v6335 = vadd.f32 %v6334, %v6304
        %v6336 = vadd.f32 %v6335, %v6305
        %v6337 = vadd.f32 %v6336, %v6306
        %v6338 = vadd.f32 %v6337, %v6307
        %v6339 = vadd.f32 %v6338, %v6308
        %v6340 = vadd.f32 %v6339, %v6309
        %v6341 = vadd.f32 %v6340, %v6310
        %v6342 = vadd.f32 %v6341, %v6311
        %v6343 = vadd.f32 %v6342, %v6312
        %v6344 = vadd.f32 %v6343, %v6313
        %v6345 = vadd.f32 %v6344, %v6314
        %v6346 = vadd.f32 %v6345, %v6315
        %v6347 = vadd.f32 %v6346, %v6316
        %v6348 = vadd.f32 %v6347, %v6317
        %v6349 = vrot.slane %v6348, 4
        %v6350 = vadd.f32 %v6348, %v6349
        %v6351 = vrot.slane %v6350, 2
        %v6352 = vadd.f32 %v6350, %v6351
        %v6353 = vrot.slane %v6352, 1
        %v6354 = vadd.f32 %v6352, %v6353
        %v6355 = vmul.f32 %v6354, 0.00390625
        %v6356 = vsub.f32 %v6286, %v6355
        %v6357 = vsub.f32 %v6287, %v6355
        %v6358 = vsub.f32 %v6288, %v6355
        %v6359 = vsub.f32 %v6289, %v6355
        %v6360 = vsub.f32 %v6290, %v6355
        %v6361 = vsub.f32 %v6291, %v6355
        %v6362 = vsub.f32 %v6292, %v6355
        %v6363 = vsub.f32 %v6293, %v6355
        %v6364 = vsub.f32 %v6294, %v6355
        %v6365 = vsub.f32 %v6295, %v6355
        %v6366 = vsub.f32 %v6296, %v6355
        %v6367 = vsub.f32 %v6297, %v6355
        %v6368 = vsub.f32 %v6298, %v6355
        %v6369 = vsub.f32 %v6299, %v6355
        %v6370 = vsub.f32 %v6300, %v6355
        %v6371 = vsub.f32 %v6301, %v6355
        %v6372 = vsub.f32 %v6302, %v6355
        %v6373 = vsub.f32 %v6303, %v6355
        %v6374 = vsub.f32 %v6304, %v6355
        %v6375 = vsub.f32 %v6305, %v6355
        %v6376 = vsub.f32 %v6306, %v6355
        %v6377 = vsub.f32 %v6307, %v6355
        %v6378 = vsub.f32 %v6308, %v6355
        %v6379 = vsub.f32 %v6309, %v6355
        %v6380 = vsub.f32 %v6310, %v6355
        %v6381 = vsub.f32 %v6311, %v6355
        %v6382 = vsub.f32 %v6312, %v6355
        %v6383 = vsub.f32 %v6313, %v6355
        %v6384 = vsub.f32 %v6314, %v6355
        %v6385 = vsub.f32 %v6315, %v6355
        %v6386 = vsub.f32 %v6316, %v6355
        %v6387 = vsub.f32 %v6317, %v6355
        %v6388 = vmul.f32 %v6356, %v6356
        %v6389 = vmul.f32 %v6357, %v6357
        %v6390 = vmul.f32 %v6358, %v6358
        %v6391 = vmul.f32 %v6359, %v6359
        %v6392 = vmul.f32 %v6360, %v6360
        %v6393 = vmul.f32 %v6361, %v6361
        %v6394 = vmul.f32 %v6362, %v6362
        %v6395 = vmul.f32 %v6363, %v6363
        %v6396 = vmul.f32 %v6364, %v6364
        %v6397 = vmul.f32 %v6365, %v6365
        %v6398 = vmul.f32 %v6366, %v6366
        %v6399 = vmul.f32 %v6367, %v6367
        %v6400 = vmul.f32 %v6368, %v6368
        %v6401 = vmul.f32 %v6369, %v6369
        %v6402 = vmul.f32 %v6370, %v6370
        %v6403 = vmul.f32 %v6371, %v6371
        %v6404 = vmul.f32 %v6372, %v6372
        %v6405 = vmul.f32 %v6373, %v6373
        %v6406 = vmul.f32 %v6374, %v6374
        %v6407 = vmul.f32 %v6375, %v6375
        %v6408 = vmul.f32 %v6376, %v6376
        %v6409 = vmul.f32 %v6377, %v6377
        %v6410 = vmul.f32 %v6378, %v6378
        %v6411 = vmul.f32 %v6379, %v6379
        %v6412 = vmul.f32 %v6380, %v6380
        %v6413 = vmul.f32 %v6381, %v6381
        %v6414 = vmul.f32 %v6382, %v6382
        %v6415 = vmul.f32 %v6383, %v6383
        %v6416 = vmul.f32 %v6384, %v6384
        %v6417 = vmul.f32 %v6385, %v6385
        %v6418 = vmul.f32 %v6386, %v6386
        %v6419 = vmul.f32 %v6387, %v6387
        %v6420 = vadd.f32 %v6388, %v6389
        %v6421 = vadd.f32 %v6420, %v6390
        %v6422 = vadd.f32 %v6421, %v6391
        %v6423 = vadd.f32 %v6422, %v6392
        %v6424 = vadd.f32 %v6423, %v6393
        %v6425 = vadd.f32 %v6424, %v6394
        %v6426 = vadd.f32 %v6425, %v6395
        %v6427 = vadd.f32 %v6426, %v6396
        %v6428 = vadd.f32 %v6427, %v6397
        %v6429 = vadd.f32 %v6428, %v6398
        %v6430 = vadd.f32 %v6429, %v6399
        %v6431 = vadd.f32 %v6430, %v6400
        %v6432 = vadd.f32 %v6431, %v6401
        %v6433 = vadd.f32 %v6432, %v6402
        %v6434 = vadd.f32 %v6433, %v6403
        %v6435 = vadd.f32 %v6434, %v6404
        %v6436 = vadd.f32 %v6435, %v6405
        %v6437 = vadd.f32 %v6436, %v6406
        %v6438 = vadd.f32 %v6437, %v6407
        %v6439 = vadd.f32 %v6438, %v6408
        %v6440 = vadd.f32 %v6439, %v6409
        %v6441 = vadd.f32 %v6440, %v6410
        %v6442 = vadd.f32 %v6441, %v6411
        %v6443 = vadd.f32 %v6442, %v6412
        %v6444 = vadd.f32 %v6443, %v6413
        %v6445 = vadd.f32 %v6444, %v6414
        %v6446 = vadd.f32 %v6445, %v6415
        %v6447 = vadd.f32 %v6446, %v6416
        %v6448 = vadd.f32 %v6447, %v6417
        %v6449 = vadd.f32 %v6448, %v6418
        %v6450 = vadd.f32 %v6449, %v6419
        %v6451 = vrot.slane %v6450, 4
        %v6452 = vadd.f32 %v6450, %v6451
        %v6453 = vrot.slane %v6452, 2
        %v6454 = vadd.f32 %v6452, %v6453
        %v6455 = vrot.slane %v6454, 1
        %v6456 = vadd.f32 %v6454, %v6455
        %v6457 = vmul.f32 %v6456, 0.00390625
        %v6458 = vadd.f32 %v6457, 1e-05
        %v6459 = vrsqrt.pop %v6458
        %v6460 = vmul.f32 %v6459, %v6458
        %v6461 = vmul.f32 %v6460, %v6459
        %v6462 = vmul.f32 0.5, %v6461
        %v6463 = vsub.f32 1.5, %v6462
        %v6464 = vmul.f32 %v6459, %v6463
        %vm6465 = vweird.f32 %v6458
        %vm6466 = vweird.f32 %v6459
        %vm6467 = vmor %vm6465, %vm6466
        %v6468 = vsel %vm6467, %v6459, %v6464
        %v6469 = vmul.f32 %v6356, %v6468
        %v6470 = vmul.f32 %v6357, %v6468
        %v6471 = vmul.f32 %v6358, %v6468
        %v6472 = vmul.f32 %v6359, %v6468
        %v6473 = vmul.f32 %v6360, %v6468
        %v6474 = vmul.f32 %v6361, %v6468
        %v6475 = vmul.f32 %v6362, %v6468
        %v6476 = vmul.f32 %v6363, %v6468
        %v6477 = vmul.f32 %v6364, %v6468
        %v6478 = vmul.f32 %v6365, %v6468
        %v6479 = vmul.f32 %v6366, %v6468
        %v6480 = vmul.f32 %v6367, %v6468
        %v6481 = vmul.f32 %v6368, %v6468
        %v6482 = vmul.f32 %v6369, %v6468
        %v6483 = vmul.f32 %v6370, %v6468
        %v6484 = vmul.f32 %v6371, %v6468
        %v6485 = vmul.f32 %v6372, %v6468
        %v6486 = vmul.f32 %v6373, %v6468
        %v6487 = vmul.f32 %v6374, %v6468
        %v6488 = vmul.f32 %v6375, %v6468
        %v6489 = vmul.f32 %v6376, %v6468
        %v6490 = vmul.f32 %v6377, %v6468
        %v6491 = vmul.f32 %v6378, %v6468
        %v6492 = vmul.f32 %v6379, %v6468
        %v6493 = vmul.f32 %v6380, %v6468
        %v6494 = vmul.f32 %v6381, %v6468
        %v6495 = vmul.f32 %v6382, %v6468
        %v6496 = vmul.f32 %v6383, %v6468
        %v6497 = vmul.f32 %v6384, %v6468
        %v6498 = vmul.f32 %v6385, %v6468
        %v6499 = vmul.f32 %v6386, %v6468
        %v6500 = vmul.f32 %v6387, %v6468
        %v6501 = vld [vmem:[%s205] sm:$0xff]
        %v6502 = vld [vmem:[%s205 + $0x8] sm:$0xff]
        %v6503 = vld [vmem:[%s205 + $0x10] sm:$0xff]
        %v6504 = vld [vmem:[%s205 + $0x18] sm:$0xff]
        %v6505 = vld [vmem:[%s205 + $0x20] sm:$0xff]
        %v6506 = vld [vmem:[%s205 + $0x28] sm:$0xff]
        %v6507 = vld [vmem:[%s205 + $0x30] sm:$0xff]
        %v6508 = vld [vmem:[%s205 + $0x38] sm:$0xff]
        %v6509 = vld [vmem:[%s205 + $0x40] sm:$0xff]
        %v6510 = vld [vmem:[%s205 + $0x48] sm:$0xff]
        %v6511 = vld [vmem:[%s205 + $0x50] sm:$0xff]
        %v6512 = vld [vmem:[%s205 + $0x58] sm:$0xff]
        %v6513 = vld [vmem:[%s205 + $0x60] sm:$0xff]
        %v6514 = vld [vmem:[%s205 + $0x68] sm:$0xff]
        %v6515 = vld [vmem:[%s205 + $0x70] sm:$0xff]
        %v6516 = vld [vmem:[%s205 + $0x78] sm:$0xff]
        %v6517 = vld [vmem:[%s205 + $0x80] sm:$0xff]
        %v6518 = vld [vmem:[%s205 + $0x88] sm:$0xff]
        %v6519 = vld [vmem:[%s205 + $0x90] sm:$0xff]
        %v6520 = vld [vmem:[%s205 + $0x98] sm:$0xff]
        %v6521 = vld [vmem:[%s205 + $0xa0] sm:$0xff]
        %v6522 = vld [vmem:[%s205 + $0xa8] sm:$0xff]
        %v6523 = vld [vmem:[%s205 + $0xb0] sm:$0xff]
        %v6524 = vld [vmem:[%s205 + $0xb8] sm:$0xff]
        %v6525 = vld [vmem:[%s205 + $0xc0] sm:$0xff]
        %v6526 = vld [vmem:[%s205 + $0xc8] sm:$0xff]
        %v6527 = vld [vmem:[%s205 + $0xd0] sm:$0xff]
        %v6528 = vld [vmem:[%s205 + $0xd8] sm:$0xff]
        %v6529 = vld [vmem:[%s205 + $0xe0] sm:$0xff]
        %v6530 = vld [vmem:[%s205 + $0xe8] sm:$0xff]
        %v6531 = vld [vmem:[%s205 + $0xf0] sm:$0xff]
        %v6532 = vld [vmem:[%s205 + $0xf8] sm:$0xff]
        %v6533 = vadd.f32 %v6469, %v6501
        %v6534 = vadd.f32 %v6470, %v6502
        %v6535 = vadd.f32 %v6471, %v6503
        %v6536 = vadd.f32 %v6472, %v6504
        %v6537 = vadd.f32 %v6473, %v6505
        %v6538 = vadd.f32 %v6474, %v6506
        %v6539 = vadd.f32 %v6475, %v6507
        %v6540 = vadd.f32 %v6476, %v6508
        %v6541 = vadd.f32 %v6477, %v6509
        %v6542 = vadd.f32 %v6478, %v6510
        %v6543 = vadd.f32 %v6479, %v6511
        %v6544 = vadd.f32 %v6480, %v6512
        %v6545 = vadd.f32 %v6481, %v6513
        %v6546 = vadd.f32 %v6482, %v6514
        %v6547 = vadd.f32 %v6483, %v6515
        %v6548 = vadd.f32 %v6484, %v6516
        %v6549 = vadd.f32 %v6485, %v6517
        %v6550 = vadd.f32 %v6486, %v6518
        %v6551 = vadd.f32 %v6487, %v6519
        %v6552 = vadd.f32 %v6488, %v6520
        %v6553 = vadd.f32 %v6489, %v6521
        %v6554 = vadd.f32 %v6490, %v6522
        %v6555 = vadd.f32 %v6491, %v6523
        %v6556 = vadd.f32 %v6492, %v6524
        %v6557 = vadd.f32 %v6493, %v6525
        %v6558 = vadd.f32 %v6494, %v6526
        %v6559 = vadd.f32 %v6495, %v6527
        %v6560 = vadd.f32 %v6496, %v6528
        %v6561 = vadd.f32 %v6497, %v6529
        %v6562 = vadd.f32 %v6498, %v6530
        %v6563 = vadd.f32 %v6499, %v6531
        %v6564 = vadd.f32 %v6500, %v6532
        %6565 = vst [vmem:[%s205] sm:$0xff] %v6533
        %6566 = vst [vmem:[%s205 + $0x8] sm:$0xff] %v6534
        %6567 = vst [vmem:[%s205 + $0x10] sm:$0xff] %v6535
        %6568 = vst [vmem:[%s205 + $0x18] sm:$0xff] %v6536
        %6569 = vst [vmem:[%s205 + $0x20] sm:$0xff] %v6537
        %6570 = vst [vmem:[%s205 + $0x28] sm:$0xff] %v6538
        %6571 = vst [vmem:[%s205 + $0x30] sm:$0xff] %v6539
        %6572 = vst [vmem:[%s205 + $0x38] sm:$0xff] %v6540
        %6573 = vst [vmem:[%s205 + $0x40] sm:$0xff] %v6541
        %6574 = vst [vmem:[%s205 + $0x48] sm:$0xff] %v6542
        %6575 = vst [vmem:[%s205 + $0x50] sm:$0xff] %v6543
        %6576 = vst [vmem:[%s205 + $0x58] sm:$0xff] %v6544
        %6577 = vst [vmem:[%s205 + $0x60] sm:$0xff] %v6545
        %6578 = vst [vmem:[%s205 + $0x68] sm:$0xff] %v6546
        %6579 = vst [vmem:[%s205 + $0x70] sm:$0xff] %v6547
        %6580 = vst [vmem:[%s205 + $0x78] sm:$0xff] %v6548
        %6581 = vst [vmem:[%s205 + $0x80] sm:$0xff] %v6549
        %6582 = vst [vmem:[%s205 + $0x88] sm:$0xff] %v6550
        %6583 = vst [vmem:[%s205 + $0x90] sm:$0xff] %v6551
        %6584 = vst [vmem:[%s205 + $0x98] sm:$0xff] %v6552
        %6585 = vst [vmem:[%s205 + $0xa0] sm:$0xff] %v6553
        %6586 = vst [vmem:[%s205 + $0xa8] sm:$0xff] %v6554
        %6587 = vst [vmem:[%s205 + $0xb0] sm:$0xff] %v6555
        %6588 = vst [vmem:[%s205 + $0xb8] sm:$0xff] %v6556
        %6589 = vst [vmem:[%s205 + $0xc0] sm:$0xff] %v6557
        %6590 = vst [vmem:[%s205 + $0xc8] sm:$0xff] %v6558
        %6591 = vst [vmem:[%s205 + $0xd0] sm:$0xff] %v6559
        %6592 = vst [vmem:[%s205 + $0xd8] sm:$0xff] %v6560
        %6593 = vst [vmem:[%s205 + $0xe0] sm:$0xff] %v6561
        %6594 = vst [vmem:[%s205 + $0xe8] sm:$0xff] %v6562
        %6595 = vst [vmem:[%s205 + $0xf0] sm:$0xff] %v6563
        %6596 = vst [vmem:[%s205 + $0xf8] sm:$0xff] %v6564
        %s6597 = sand.u32 %s115, 1
        %s6598 = scalar_lea.sflag [#allocation4], %s6597
        %s6599 = sand.u32 %s115, 1
        %s6600 = smul.addr %s6599, 256
        %s6601 = scalar_lea.vmem [#allocation3], %s6600
        // Predicated region
        $region37: #{resblocks_forward.1} parent=31 // pred_check
          %p6602 = pneg %p125
        $region38: #{resblocks_forward.1} parent=31 // pred_check_branch
          %6604 = sbr.rel (%p6602) target = $region40
        $region39: #{resblocks_forward.1} parent=31 // pred_region
          %6606 = vsyncadd %s6598, 0
          %s6607 = smul.addr %s21, 32
          %s6608 = smul.addr %s6607, 8
          %s6609 = scalar_lea.hbm %s3, %s6608
          %s6610 = sshll.u32 %s6601, 4
          %s6611 = int_to_ptr.vmem [resolvable:$true] %s6610
          %s6612 = sshll.u32 %s6609, 4
          %s6613 = int_to_ptr.hbm [resolvable:$true] %s6612
          %6618 = dma.vmem_to_hbm [thread:$0]  %s6611, 4096, %s6613, %s6598, 128, 128, 8
        $region40: #{resblocks_forward.1} parent=31 // pred_fallthru
          _
      $region32: #{resblocks_forward.1} parent=5 // pred_fallthru
        _
      %p6619 = scmp.le.s32.totalorder 2, %s12
      // Predicated region
      $region41: #{resblocks_forward.1} parent=5 // pred_check
        %p6620 = pneg %p6619
      $region42: #{resblocks_forward.1} parent=5 // pred_check_branch
        %6622 = sbr.rel (%p6620) target = $region44
      $region43: #{resblocks_forward.1} parent=5 // pred_region
        %s6623 = ssub.s32 %s12, 2
        // Predicated region
        $region45: #{resblocks_forward.1} parent=43 // pred_check
          %p6624 = pneg %p131
        $region46: #{resblocks_forward.1} parent=43 // pred_check_branch
          %6626 = sbr.rel (%p6624) target = $region48
        $region47: #{resblocks_forward.1} parent=43 // pred_region
          %s6627 = sand.u32 %s116, 1
          %s6628 = scalar_lea.sflag [#allocation4], %s6627
          %s6629 = sand.u32 %s116, 1
          %s6630 = smul.addr %s6629, 256
          %s6631 = scalar_lea.vmem [#allocation3], %s6630
          %6633 = dma.done %s6628, 4096
        $region48: #{resblocks_forward.1} parent=43 // pred_fallthru
          _
      $region44: #{resblocks_forward.1} parent=5 // pred_fallthru
        _
    $region6: #{resblocks_forward.1} parent=1 // loop_footer
      %s16 = sadd.s32 1, %s12
    $region7: #{resblocks_forward.1} parent=1 // loop_footer_branch
      %11 = sbr.rel target = $region3
    $region8: #{resblocks_forward.1} parent=1 // loop_exit
      _
    %6634 = vsyncpa [#allocation4], 1
    %s6635 = scalar_lea.sflag [#allocation4], 1
    %6636 = vsyncpa %s6635, 1

</llo_original>
